<compile_context>
chip_gen: v5e
topology: v5e:2x2
jax: 0.10.0
libtpu: 0.0.40
codegen_flags: <defaults>
</compile_context>

<pallas_src>
import functools
import math

import jax
import jax.numpy as jnp
from jax.experimental import pallas as pl
from jax.experimental.pallas import tpu as pltpu


_INV_SQRT2 = 1.0 / math.sqrt(2.0)
_LN_EPS = 1e-5


# ------------------------------ tiling helpers ------------------------------

def _round_up(v, m):
    return ((v + m - 1) // m) * m


def _pick_tile(dim, pref, align):
    """Largest tile <= pref that divides dim and is `align`-aligned (or full dim)."""
    pref = min(pref, dim)
    if dim % pref == 0 and (pref % align == 0 or pref == dim):
        return pref
    t = (pref // align) * align
    while t >= align:
        if dim % t == 0:
            return t
        t -= align
    return dim  # fall back to the full (untiled) dimension


@functools.lru_cache(maxsize=None)
def _gemm_tile_config():
    """Per-generation tile preferences: tm*tn/(tm+tn) must clear the HBM roofline."""
    try:
        kind = jax.devices()[0].device_kind.lower()
    except Exception:  # pragma: no cover - defensive
        kind = ""
    if "v2" in kind or "v3" in kind:
        # Old chips with tiny VMEM: stay conservative, default scoped limit.
        return {"tm": 256, "tn": 512, "tk": 512, "vmem": None}
    if "v5" in kind:
        # v5e: ~240 FLOP/byte needed -> 512x512 (=256) suffices; 64 MiB << 128 MiB phys.
        return {"tm": 512, "tn": 512, "tk": 512, "vmem": 64 * 1024 * 1024}
    if "v6" in kind:
        # v6e: ~670 FLOP/byte needed -> 1024x2048 (~683); plenty of the 128 MiB VMEM.
        return {"tm": 1024, "tn": 2048, "tk": 512, "vmem": 100 * 1024 * 1024}
    # v7x / unknown: ~310 FLOP/byte needed -> 512x1024 (~341); 64 MiB physical VMEM.
    return {"tm": 512, "tn": 1024, "tk": 512, "vmem": 48 * 1024 * 1024}


# ----------------------------- Pallas kernels ------------------------------

def _make_gemm_kernel(has_ln, has_bias, has_res, gelu, single_k):
    """Tiled GEMM with optional fused LayerNorm prologue and bias/GELU/residual
    epilogue.  When the K grid has a single step the f32 VMEM accumulator is
    skipped entirely and the epilogue is applied directly to the dot result."""

    def kernel(*refs):
        it = iter(refs)
        x_ref = next(it)
        w_ref = next(it)
        g_ref = bln_ref = b_ref = r_ref = None
        if has_ln:
            g_ref = next(it)
            bln_ref = next(it)
        if has_bias:
            b_ref = next(it)
        if has_res:
            r_ref = next(it)
        o_ref = next(it)
        acc_ref = None if single_k else next(it)

        x = x_ref[...]
        if has_ln:
            # LayerNorm prologue (tk == K on this path); statistics in f32.
            xf = x.astype(jnp.float32)
            mu = jnp.mean(xf, axis=-1, keepdims=True)
            var = jnp.mean((xf - mu) ** 2, axis=-1, keepdims=True)
            xf = (xf - mu) * jax.lax.rsqrt(var + _LN_EPS)
            xf = xf * g_ref[...] + bln_ref[...]
            x = xf.astype(w_ref.dtype)

        def epilogue(y):
            if has_bias:
                y = y + b_ref[...]
            if gelu:
                # exact GELU (matches torch nn.GELU default)
                y = 0.5 * y * (1.0 + jax.lax.erf(y * _INV_SQRT2))
            if has_res:
                y = y + r_ref[...].astype(jnp.float32)
            return y.astype(o_ref.dtype)

        if single_k:
            o_ref[...] = epilogue(
                jnp.dot(x, w_ref[...], preferred_element_type=jnp.float32))
        else:
            kk = pl.program_id(2)

            @pl.when(kk == 0)
            def _():
                acc_ref[...] = jnp.zeros_like(acc_ref)

            acc_ref[...] += jnp.dot(x, w_ref[...],
                                    preferred_element_type=jnp.float32)

            @pl.when(kk == pl.num_programs(2) - 1)
            def _():
                o_ref[...] = epilogue(acc_ref[...])

    return kernel


def _layernorm_kernel(x_ref, g_ref, b_ref, o_ref):
    x = x_ref[...].astype(jnp.float32)
    mu = jnp.mean(x, axis=-1, keepdims=True)
    var = jnp.mean((x - mu) ** 2, axis=-1, keepdims=True)
    y = (x - mu) * jax.lax.rsqrt(var + _LN_EPS)
    o_ref[...] = (y * g_ref[...] + b_ref[...]).astype(o_ref.dtype)


def _attention_kernel(qkv_ref, o_ref, o_acc, *, num_heads, head_dim,
                      seq_valid, scale):
    """One batch element per grid step.  qkv block is the packed (1, S, 3E)
    projection; pad key columns (>= seq_valid) are masked out of the softmax."""
    E = num_heads * head_dim
    qkv = qkv_ref[0]                       # (S_pad, 3E) bf16
    S = qkv.shape[0]
    # Fold the 1/sqrt(head_dim) scale into q once (S*E mults, not H*S*S).
    q = (qkv[:, :E].astype(jnp.float32) * scale).astype(qkv.dtype)
    k = qkv[:, E:2 * E]
    v = qkv[:, 2 * E:]

    key_mask = None
    if seq_valid < S:
        key_mask = jax.lax.broadcasted_iota(jnp.int32, (S, S), 1) < seq_valid

    # TODO(synk): for >=12 heads consider lax.fori_loop over heads to bound
    # live ranges; the static loop + per-head scratch store is fine at ViT scale.
    for h in range(num_heads):
        sl = slice(h * head_dim, (h + 1) * head_dim)
        qh = q[:, sl]
        kh = k[:, sl]
        vh = v[:, sl]
        # contract on the last axis of both q and k -> no in-kernel transpose.
        s = jax.lax.dot_general(qh, kh, (((1,), (1,)), ((), ())),
                                preferred_element_type=jnp.float32)
        if key_mask is not None:
            s = jnp.where(key_mask, s, jnp.float32(-1e30))
        s = s - jnp.max(s, axis=-1, keepdims=True)
        p = jnp.exp(s)
        p = p * pl.reciprocal(jnp.sum(p, axis=-1, keepdims=True), approx=True)
        # Write each head straight into the f32 VMEM scratch at its static
        # lane offset (no jnp.concatenate lane shuffles, bounds live values).
        o_acc[:, sl] = jnp.dot(p.astype(vh.dtype), vh,
                               preferred_element_type=jnp.float32)
    # single lane-dense store (head ordering matches torch's flatten(2)).
    o_ref[0] = o_acc[...].astype(o_ref.dtype)


# ----------------------------- Pallas wrappers ------------------------------

def fused_linear(x, w, *, bias=None, ln=None, residual=None, gelu=False,
                 out_dtype=jnp.bfloat16):
    """y = [ln(x)] @ w [+ bias] [-> exact GELU] [+ residual], tiled & pipelined.

    x: (M, K), w: (K, N). bf16 compute, f32 MXU accumulation.
    """
    M, K = x.shape
    Kw, N = w.shape
    assert K == Kw
    cfg = _gemm_tile_config()
    x = x.astype(w.dtype)                       # bf16 compute dtype

    tm = _pick_tile(M, cfg["tm"], 8)
    if ln is not None:
        tk = K                                  # LN prologue needs full K per tile
        # widen tn so N is covered in <=2 tiles -> LN prologue is not recomputed
        tn = _pick_tile(N, max(cfg["tn"], -(-N // 2)), 128)
    else:
        tk = _pick_tile(K, cfg["tk"], 128)
        tn = _pick_tile(N, cfg["tn"], 128)
    grid = (M // tm, N // tn, K // tk)
    single_k = grid[2] == 1

    in_specs = [pl.BlockSpec((tm, tk), lambda i, j, k: (i, k)),
                pl.BlockSpec((tk, tn), lambda i, j, k: (k, j))]
    args = [x, w]
    if ln is not None:
        g, b_ln = ln
        in_specs += [pl.BlockSpec((1, tk), lambda i, j, k: (0, k)),
                     pl.BlockSpec((1, tk), lambda i, j, k: (0, k))]
        args += [g.reshape(1, K).astype(jnp.float32),
                 b_ln.reshape(1, K).astype(jnp.float32)]
    if bias is not None:
        in_specs.append(pl.BlockSpec((1, tn), lambda i, j, k: (0, j)))
        args.append(bias.reshape(1, N).astype(jnp.float32))
    if residual is not None:
        assert residual.shape == (M, N)
        in_specs.append(pl.BlockSpec((tm, tn), lambda i, j, k: (i, j)))
        args.append(residual)

    kernel = _make_gemm_kernel(ln is not None, bias is not None,
                               residual is not None, gelu, single_k)
    cost = pl.CostEstimate(
        flops=2 * M * N * K,
        transcendentals=(M * N if gelu else 0),
        bytes_accessed=(M * K * x.dtype.itemsize + K * N * w.dtype.itemsize
                        + M * N * jnp.dtype(out_dtype).itemsize))

    return pl.pallas_call(
        kernel,
        grid=grid,
        in_specs=in_specs,
        out_specs=pl.BlockSpec((tm, tn), lambda i, j, k: (i, j)),
        out_shape=jax.ShapeDtypeStruct((M, N), out_dtype),
        scratch_shapes=([] if single_k else [pltpu.VMEM((tm, tn), jnp.float32)]),
        compiler_params=pltpu.CompilerParams(
            dimension_semantics=("parallel", "parallel", "arbitrary"),
            vmem_limit_bytes=cfg["vmem"]),
        cost_estimate=cost,
    )(*args)


def pallas_layernorm(x, g, b, *, tm=256):
    """Row-tiled LayerNorm over the last dim of x: (M, D) -> f32."""
    M, D = x.shape
    tm = _pick_tile(M, tm, 8)
    return pl.pallas_call(
        _layernorm_kernel,
        grid=(M // tm,),
        in_specs=[pl.BlockSpec((tm, D), lambda i: (i, 0)),
                  pl.BlockSpec((1, D), lambda i: (0, 0)),
                  pl.BlockSpec((1, D), lambda i: (0, 0))],
        out_specs=pl.BlockSpec((tm, D), lambda i: (i, 0)),
        out_shape=jax.ShapeDtypeStruct((M, D), jnp.float32),
        compiler_params=pltpu.CompilerParams(dimension_semantics=("parallel",)),
    )(x, g.reshape(1, D).astype(jnp.float32), b.reshape(1, D).astype(jnp.float32))


def pallas_attention(qkv, *, num_heads, seq_valid):
    """qkv: packed (B, S_pad, 3E) -> attention output (B, S_pad, E)."""
    B, S, threeE = qkv.shape
    E = threeE // 3
    hd = E // num_heads
    kern = functools.partial(_attention_kernel, num_heads=num_heads,
                             head_dim=hd, seq_valid=seq_valid,
                             scale=1.0 / math.sqrt(hd))
    return pl.pallas_call(
        kern,
        grid=(B,),
        in_specs=[pl.BlockSpec((1, S, threeE), lambda bi: (bi, 0, 0))],
        out_specs=pl.BlockSpec((1, S, E), lambda bi: (bi, 0, 0)),
        out_shape=jax.ShapeDtypeStruct((B, S, E), qkv.dtype),
        scratch_shapes=[pltpu.VMEM((S, E), jnp.float32)],
        compiler_params=pltpu.CompilerParams(dimension_semantics=("parallel",)),
    )(qkv)


# ------------------------------- parameters --------------------------------

def init_params(key, *, image_size, patch_size, in_channels, embed_dim,
                depth, num_heads, num_classes):
    n_patches = (image_size // patch_size) ** 2
    mlp_hidden = embed_dim * 6   # MLP default mlp_ratio=6 (see note at top)
    ks = jax.random.split(key, 4 + depth)

    def w(k, shape, std=0.02, dtype=jnp.bfloat16):
        return (std * jax.random.normal(k, shape)).astype(dtype)

    params = {
        # conv weight (E, C, p, p) flattened -> (C*p*p, E)
        "patch_embed_w": w(ks[0], (in_channels * patch_size * patch_size, embed_dim)),
        "class_token": jnp.zeros((1, 1, embed_dim), jnp.float32),
        "pos_embed": jax.random.normal(ks[1], (1, n_patches + 1, embed_dim)).astype(jnp.float32),
        "cls_w": w(ks[2], (embed_dim, num_classes), dtype=jnp.float32),
        "cls_b": jnp.zeros((num_classes,), jnp.float32),
        "final_ln_g": jnp.ones((embed_dim,), jnp.float32),
        "final_ln_b": jnp.zeros((embed_dim,), jnp.float32),
        "layers": [],
    }
    for d in range(depth):
        lk = jax.random.split(ks[4 + d], 4)
        params["layers"].append({
            "ln1_g": jnp.ones((embed_dim,), jnp.float32),
            "ln1_b": jnp.zeros((embed_dim,), jnp.float32),
            "w_qkv": w(lk[0], (embed_dim, 3 * embed_dim)),     # bias=False in reference
            "w_proj": w(lk[1], (embed_dim, embed_dim)),
            "b_proj": jnp.zeros((embed_dim,), jnp.float32),
            "ln2_g": jnp.ones((embed_dim,), jnp.float32),
            "ln2_b": jnp.zeros((embed_dim,), jnp.float32),
            "w_fc1": w(lk[2], (embed_dim, mlp_hidden)),
            "b_fc1": jnp.zeros((mlp_hidden,), jnp.float32),
            "w_fc2": w(lk[3], (mlp_hidden, embed_dim)),
            "b_fc2": jnp.zeros((embed_dim,), jnp.float32),
        })
    return params


# --------------------------------- forward ---------------------------------

def vit_forward(params, x, *, patch_size, num_heads):
    # layout: x is NCHW (B, C, H, W), same as the PyTorch reference.
    B, C, H, W = x.shape
    p = patch_size
    E = params["pos_embed"].shape[-1]

    nH, nW = H // p, W // p
    n_patches = nH * nW
    S = n_patches + 1
    # Pad the token axis to a multiple of 8 so M = B*S_pad tiles cleanly on the
    # sublane axis; pad tokens are masked out of attention and dropped at the end.
    S_pad = _round_up(S, 8)

    # --- PatchEmbedding: stride==kernel conv expressed as a tiled matmul -----
    patches = x.reshape(B, C, nH, p, nW, p)
    patches = patches.transpose(0, 2, 4, 1, 3, 5).reshape(B * n_patches, C * p * p)
    emb = fused_linear(patches, params["patch_embed_w"]).reshape(B, n_patches, E)
    cls = jnp.broadcast_to(params["class_token"], (B, 1, E))
    seq = jnp.concatenate([cls, emb.astype(jnp.float32)], axis=1) + params["pos_embed"]
    seq = seq.astype(jnp.bfloat16)
    if S_pad > S:
        seq = jnp.pad(seq, ((0, 0), (0, S_pad - S), (0, 0)))

    x2d = seq.reshape(B * S_pad, E)   # activations carried in bf16

    # --- Encoder layers ------------------------------------------------------
    for layer in params["layers"]:
        h = x2d                                                   # original block input
        # QKV (bias-free) with LayerNorm1 fused as the GEMM prologue.
        qkv = fused_linear(h, layer["w_qkv"],
                           ln=(layer["ln1_g"], layer["ln1_b"]))
        # Attention consumes the packed qkv directly (no q/k/v HBM slices).
        o = pallas_attention(qkv.reshape(B, S_pad, 3 * E),
                             num_heads=num_heads, seq_valid=S)    # (B, S_pad, E)
        # proj with bias + residual(h) fused as the epilogue  -> x1 = h + attn(ln1(h))
        x1 = fused_linear(o.reshape(B * S_pad, E), layer["w_proj"],
                          bias=layer["b_proj"], residual=h)
        # fc1 with LayerNorm2 prologue, bias + exact GELU epilogue
        h1 = fused_linear(x1, layer["w_fc1"], bias=layer["b_fc1"],
                          ln=(layer["ln2_g"], layer["ln2_b"]), gelu=True)
        # fc2 with bias + residual of the ORIGINAL block input h (as in the reference)
        x2d = fused_linear(h1, layer["w_fc2"], bias=layer["b_fc2"], residual=h)

    # --- Encoder final norm, CLS token, classifier ---------------------------
    # LayerNorm is row-wise and only the CLS row feeds the classifier, so
    # normalizing just the CLS rows is exactly equivalent to norm(seq)[:, 0, :].
    cls_tok = x2d.reshape(B, S_pad, E)[:, 0, :].astype(jnp.float32)
    cls_norm = pallas_layernorm(cls_tok, params["final_ln_g"], params["final_ln_b"])
    # Classifier head is (B, num_classes) -- far below one vreg; stays in jnp.
    logits = cls_norm @ params["cls_w"] + params["cls_b"]
    return logits


# ----------------------------------- main -----------------------------------

if __name__ == "__main__":
    # Small, ViT-consistent shapes: 16x16 image, 8x8 patches -> 4 patches + CLS.
    B, C, IMG, PATCH = 2, 3, 16, 8
    EMBED, DEPTH, HEADS, CLASSES = 128, 2, 4, 10

    key = jax.random.PRNGKey(0)
    pkey, xkey = jax.random.split(key)
    params = init_params(pkey, image_size=IMG, patch_size=PATCH, in_channels=C,
                         embed_dim=EMBED, depth=DEPTH, num_heads=HEADS,
                         num_classes=CLASSES)
    x = jax.random.normal(xkey, (B, C, IMG, IMG), dtype=jnp.float32)

    fwd = jax.jit(functools.partial(vit_forward, patch_size=PATCH, num_heads=HEADS))
    logits = fwd(params, x)
    jax.block_until_ready(logits)
    assert logits.shape == (B, CLASSES), logits.shape
    assert bool(jnp.all(jnp.isfinite(logits)))
    print("KERNEL_OK")
</pallas_src>

<mosaic_0001>
module attributes {stable_mosaic.version = 11 : i64} {
  func.func @kernel(%arg0: i32, %arg1: i32, %arg2: i32, %arg3: memref<8x192xbf16, #tpu.memory_space<vmem>>, %arg4: memref<192x128xbf16, #tpu.memory_space<vmem>>, %arg5: memref<8x128xbf16, #tpu.memory_space<vmem>>) attributes {dimension_semantics = [#tpu.dimension_semantics<parallel>, #tpu.dimension_semantics<parallel>, #tpu.dimension_semantics<arbitrary>], iteration_bounds = array<i64: 1, 1, 1>, scalar_prefetch = 0 : i64, scratch_operands = 0 : i64, tpu.core_type = #tpu.core_type<tc>, window_params = [{transform_indices = @transform_0, window_bounds = array<i64: 8, 192>}, {transform_indices = @transform_1, window_bounds = array<i64: 192, 128>}, {transform_indices = @transform_2, window_bounds = array<i64: 8, 128>}]} {
    %c0 = arith.constant 0 : index
    %c0_0 = arith.constant 0 : index
    %0 = vector.load %arg3[%c0, %c0_0] : memref<8x192xbf16, #tpu.memory_space<vmem>>, vector<8x192xbf16>
    %c0_1 = arith.constant 0 : index
    %c0_2 = arith.constant 0 : index
    %1 = vector.load %arg4[%c0_1, %c0_2] : memref<192x128xbf16, #tpu.memory_space<vmem>>, vector<192x128xbf16>
    %cst = arith.constant dense<0.000000e+00> : vector<8x128xf32>
    %2 = tpu.matmul %0, %1, %cst {dimension_numbers = #tpu.dot_dimension_numbers<[1], [0], [0], [1], [0, 0, 1, 1], [], []>} : vector<8x192xbf16>, vector<192x128xbf16>, vector<8x128xf32> -> vector<8x128xf32>
    %3 = arith.truncf %2 : vector<8x128xf32> to vector<8x128xbf16>
    %c0_3 = arith.constant 0 : index
    %c0_4 = arith.constant 0 : index
    %4 = vector.load %arg5[%c0_3, %c0_4] : memref<8x128xbf16, #tpu.memory_space<vmem>>, vector<8x128xbf16>
    tpu.vector_store %arg5[%c0_3, %c0_4], %3 {strides = array<i32>} : memref<8x128xbf16, #tpu.memory_space<vmem>>, vector<8x128xbf16>,
    return
  }
  func.func @transform_0(%arg0: i32, %arg1: i32, %arg2: i32) -> (i32, i32) {
    %c0_i32 = arith.constant 0 : i32
    return %arg0, %arg2 : i32, i32
  }
  func.func @transform_1(%arg0: i32, %arg1: i32, %arg2: i32) -> (i32, i32) {
    %c0_i32 = arith.constant 0 : i32
    return %arg2, %arg1 : i32, i32
  }
  func.func @transform_2(%arg0: i32, %arg1: i32, %arg2: i32) -> (i32, i32) {
    %c0_i32 = arith.constant 0 : i32
    return %arg0, %arg1 : i32, i32
  }
}

module attributes {stable_mosaic.version = 11 : i64} {
  func.func @_attention_kernel(%arg0: i32, %arg1: memref<1x8x384xbf16, #tpu.memory_space<vmem>>, %arg2: memref<1x8x128xbf16, #tpu.memory_space<vmem>>, %arg3: memref<8x128xf32, #tpu.memory_space<vmem>>) attributes {dimension_semantics = [#tpu.dimension_semantics<parallel>], iteration_bounds = array<i64: 2>, scalar_prefetch = 0 : i64, scratch_operands = 1 : i64, tpu.core_type = #tpu.core_type<tc>, window_params = [{transform_indices = @transform_0, window_bounds = array<i64: 1, 8, 384>}, {transform_indices = @transform_1, window_bounds = array<i64: 1, 8, 128>}]} {
    %c0 = arith.constant 0 : index
    %c0_0 = arith.constant 0 : index
    %c0_1 = arith.constant 0 : index
    %0 = vector.load %arg1[%c0, %c0_0, %c0_1] : memref<1x8x384xbf16, #tpu.memory_space<vmem>>, vector<1x8x384xbf16>
    %1 = vector.shape_cast %0 : vector<1x8x384xbf16> to vector<8x384xbf16>
    %2 = vector.extract_strided_slice %1 {offsets = [0, 0], sizes = [8, 128], strides = [1, 1]} : vector<8x384xbf16> to vector<8x128xbf16>
    %3 = arith.extf %2 : vector<8x128xbf16> to vector<8x128xf32>
    %cst = arith.constant 0.176776692 : f32
    %4 = vector.broadcast %cst : f32 to vector<8x128xf32>
    %5 = arith.mulf %3, %4 : vector<8x128xf32>
    %6 = arith.truncf %5 : vector<8x128xf32> to vector<8x128xbf16>
    %7 = vector.extract_strided_slice %1 {offsets = [0, 128], sizes = [8, 128], strides = [1, 1]} : vector<8x384xbf16> to vector<8x128xbf16>
    %8 = vector.extract_strided_slice %1 {offsets = [0, 256], sizes = [8, 128], strides = [1, 1]} : vector<8x384xbf16> to vector<8x128xbf16>
    %9 = tpu.iota {dimensions = array<i32: 1>} : vector<8x8xi32>
    %c5_i32 = arith.constant 5 : i32
    %10 = vector.broadcast %c5_i32 : i32 to vector<8x8xi32>
    %11 = arith.cmpi slt, %9, %10 : vector<8x8xi32>
    %12 = vector.extract_strided_slice %6 {offsets = [0, 0], sizes = [8, 32], strides = [1, 1]} : vector<8x128xbf16> to vector<8x32xbf16>
    %13 = vector.extract_strided_slice %7 {offsets = [0, 0], sizes = [8, 32], strides = [1, 1]} : vector<8x128xbf16> to vector<8x32xbf16>
    %14 = vector.extract_strided_slice %8 {offsets = [0, 0], sizes = [8, 32], strides = [1, 1]} : vector<8x128xbf16> to vector<8x32xbf16>
    %cst_2 = arith.constant dense<0.000000e+00> : vector<8x8xf32>
    %15 = tpu.matmul %12, %13, %cst_2 {dimension_numbers = #tpu.dot_dimension_numbers<[1], [1], [0], [0], [0, 0, 1, 0], [], []>} : vector<8x32xbf16>, vector<8x32xbf16>, vector<8x8xf32> -> vector<8x8xf32>
    %cst_3 = arith.constant -1.000000e+30 : f32
    %16 = vector.broadcast %cst_3 : f32 to vector<8x8xf32>
    %17 = arith.select %11, %15, %16 : vector<8x8xi1>, vector<8x8xf32>
    %cst_4 = arith.constant dense<0xFF800000> : vector<8xf32>
    %18 = vector.multi_reduction <maximumf>, %17, %cst_4 [1] : vector<8x8xf32> to vector<8xf32>
    %19 = vector.shape_cast %18 : vector<8xf32> to vector<8x1xf32>
    %20 = vector.broadcast %19 : vector<8x1xf32> to vector<8x8xf32>
    %21 = arith.subf %17, %20 : vector<8x8xf32>
    %22 = math.exp %21 : vector<8x8xf32>
    %cst_5 = arith.constant dense<0.000000e+00> : vector<8xf32>
    %23 = vector.multi_reduction <add>, %22, %cst_5 [1] : vector<8x8xf32> to vector<8xf32>
    %24 = vector.shape_cast %23 : vector<8xf32> to vector<8x1xf32>
    %25 = tpu.reciprocal %24 {approx = true} : vector<8x1xf32> -> vector<8x1xf32>
    %26 = vector.broadcast %25 : vector<8x1xf32> to vector<8x8xf32>
    %27 = arith.mulf %22, %26 : vector<8x8xf32>
    %28 = arith.truncf %27 : vector<8x8xf32> to vector<8x8xbf16>
    %cst_6 = arith.constant dense<0.000000e+00> : vector<8x32xf32>
    %29 = tpu.matmul %28, %14, %cst_6 {dimension_numbers = #tpu.dot_dimension_numbers<[1], [0], [0], [1], [0, 0, 1, 1], [], []>} : vector<8x8xbf16>, vector<8x32xbf16>, vector<8x32xf32> -> vector<8x32xf32>
    %c0_7 = arith.constant 0 : index
    %c0_8 = arith.constant 0 : index
    %30 = vector.load %arg3[%c0_7, %c0_8] : memref<8x128xf32, #tpu.memory_space<vmem>>, vector<8x32xf32>
    tpu.vector_store %arg3[%c0_7, %c0_8], %29 {strides = array<i32>} : memref<8x128xf32, #tpu.memory_space<vmem>>, vector<8x32xf32>,
    %31 = vector.extract_strided_slice %6 {offsets = [0, 32], sizes = [8, 32], strides = [1, 1]} : vector<8x128xbf16> to vector<8x32xbf16>
    %32 = vector.extract_strided_slice %7 {offsets = [0, 32], sizes = [8, 32], strides = [1, 1]} : vector<8x128xbf16> to vector<8x32xbf16>
    %33 = vector.extract_strided_slice %8 {offsets = [0, 32], sizes = [8, 32], strides = [1, 1]} : vector<8x128xbf16> to vector<8x32xbf16>
    %cst_9 = arith.constant dense<0.000000e+00> : vector<8x8xf32>
    %34 = tpu.matmul %31, %32, %cst_9 {dimension_numbers = #tpu.dot_dimension_numbers<[1], [1], [0], [0], [0, 0, 1, 0], [], []>} : vector<8x32xbf16>, vector<8x32xbf16>, vector<8x8xf32> -> vector<8x8xf32>
    %cst_10 = arith.constant -1.000000e+30 : f32
    %35 = vector.broadcast %cst_10 : f32 to vector<8x8xf32>
    %36 = arith.select %11, %34, %35 : vector<8x8xi1>, vector<8x8xf32>
    %cst_11 = arith.constant dense<0xFF800000> : vector<8xf32>
    %37 = vector.multi_reduction <maximumf>, %36, %cst_11 [1] : vector<8x8xf32> to vector<8xf32>
    %38 = vector.shape_cast %37 : vector<8xf32> to vector<8x1xf32>
    %39 = vector.broadcast %38 : vector<8x1xf32> to vector<8x8xf32>
    %40 = arith.subf %36, %39 : vector<8x8xf32>
    %41 = math.exp %40 : vector<8x8xf32>
    %cst_12 = arith.constant dense<0.000000e+00> : vector<8xf32>
    %42 = vector.multi_reduction <add>, %41, %cst_12 [1] : vector<8x8xf32> to vector<8xf32>
    %43 = vector.shape_cast %42 : vector<8xf32> to vector<8x1xf32>
    %44 = tpu.reciprocal %43 {approx = true} : vector<8x1xf32> -> vector<8x1xf32>
    %45 = vector.broadcast %44 : vector<8x1xf32> to vector<8x8xf32>
    %46 = arith.mulf %41, %45 : vector<8x8xf32>
    %47 = arith.truncf %46 : vector<8x8xf32> to vector<8x8xbf16>
    %cst_13 = arith.constant dense<0.000000e+00> : vector<8x32xf32>
    %48 = tpu.matmul %47, %33, %cst_13 {dimension_numbers = #tpu.dot_dimension_numbers<[1], [0], [0], [1], [0, 0, 1, 1], [], []>} : vector<8x8xbf16>, vector<8x32xbf16>, vector<8x32xf32> -> vector<8x32xf32>
    %c0_14 = arith.constant 0 : index
    %c32 = arith.constant 32 : index
    %49 = vector.load %arg3[%c0_14, %c32] : memref<8x128xf32, #tpu.memory_space<vmem>>, vector<8x32xf32>
    tpu.vector_store %arg3[%c0_14, %c32], %48 {strides = array<i32>} : memref<8x128xf32, #tpu.memory_space<vmem>>, vector<8x32xf32>,
    %50 = vector.extract_strided_slice %6 {offsets = [0, 64], sizes = [8, 32], strides = [1, 1]} : vector<8x128xbf16> to vector<8x32xbf16>
    %51 = vector.extract_strided_slice %7 {offsets = [0, 64], sizes = [8, 32], strides = [1, 1]} : vector<8x128xbf16> to vector<8x32xbf16>
    %52 = vector.extract_strided_slice %8 {offsets = [0, 64], sizes = [8, 32], strides = [1, 1]} : vector<8x128xbf16> to vector<8x32xbf16>
    %cst_15 = arith.constant dense<0.000000e+00> : vector<8x8xf32>
    %53 = tpu.matmul %50, %51, %cst_15 {dimension_numbers = #tpu.dot_dimension_numbers<[1], [1], [0], [0], [0, 0, 1, 0], [], []>} : vector<8x32xbf16>, vector<8x32xbf16>, vector<8x8xf32> -> vector<8x8xf32>
    %cst_16 = arith.constant -1.000000e+30 : f32
    %54 = vector.broadcast %cst_16 : f32 to vector<8x8xf32>
    %55 = arith.select %11, %53, %54 : vector<8x8xi1>, vector<8x8xf32>
    %cst_17 = arith.constant dense<0xFF800000> : vector<8xf32>
    %56 = vector.multi_reduction <maximumf>, %55, %cst_17 [1] : vector<8x8xf32> to vector<8xf32>
    %57 = vector.shape_cast %56 : vector<8xf32> to vector<8x1xf32>
    %58 = vector.broadcast %57 : vector<8x1xf32> to vector<8x8xf32>
    %59 = arith.subf %55, %58 : vector<8x8xf32>
    %60 = math.exp %59 : vector<8x8xf32>
    %cst_18 = arith.constant dense<0.000000e+00> : vector<8xf32>
    %61 = vector.multi_reduction <add>, %60, %cst_18 [1] : vector<8x8xf32> to vector<8xf32>
    %62 = vector.shape_cast %61 : vector<8xf32> to vector<8x1xf32>
    %63 = tpu.reciprocal %62 {approx = true} : vector<8x1xf32> -> vector<8x1xf32>
    %64 = vector.broadcast %63 : vector<8x1xf32> to vector<8x8xf32>
    %65 = arith.mulf %60, %64 : vector<8x8xf32>
    %66 = arith.truncf %65 : vector<8x8xf32> to vector<8x8xbf16>
    %cst_19 = arith.constant dense<0.000000e+00> : vector<8x32xf32>
    %67 = tpu.matmul %66, %52, %cst_19 {dimension_numbers = #tpu.dot_dimension_numbers<[1], [0], [0], [1], [0, 0, 1, 1], [], []>} : vector<8x8xbf16>, vector<8x32xbf16>, vector<8x32xf32> -> vector<8x32xf32>
    %c0_20 = arith.constant 0 : index
    %c64 = arith.constant 64 : index
    %68 = vector.load %arg3[%c0_20, %c64] : memref<8x128xf32, #tpu.memory_space<vmem>>, vector<8x32xf32>
    tpu.vector_store %arg3[%c0_20, %c64], %67 {strides = array<i32>} : memref<8x128xf32, #tpu.memory_space<vmem>>, vector<8x32xf32>,
    %69 = vector.extract_strided_slice %6 {offsets = [0, 96], sizes = [8, 32], strides = [1, 1]} : vector<8x128xbf16> to vector<8x32xbf16>
    %70 = vector.extract_strided_slice %7 {offsets = [0, 96], sizes = [8, 32], strides = [1, 1]} : vector<8x128xbf16> to vector<8x32xbf16>
    %71 = vector.extract_strided_slice %8 {offsets = [0, 96], sizes = [8, 32], strides = [1, 1]} : vector<8x128xbf16> to vector<8x32xbf16>
    %cst_21 = arith.constant dense<0.000000e+00> : vector<8x8xf32>
    %72 = tpu.matmul %69, %70, %cst_21 {dimension_numbers = #tpu.dot_dimension_numbers<[1], [1], [0], [0], [0, 0, 1, 0], [], []>} : vector<8x32xbf16>, vector<8x32xbf16>, vector<8x8xf32> -> vector<8x8xf32>
    %cst_22 = arith.constant -1.000000e+30 : f32
    %73 = vector.broadcast %cst_22 : f32 to vector<8x8xf32>
    %74 = arith.select %11, %72, %73 : vector<8x8xi1>, vector<8x8xf32>
    %cst_23 = arith.constant dense<0xFF800000> : vector<8xf32>
    %75 = vector.multi_reduction <maximumf>, %74, %cst_23 [1] : vector<8x8xf32> to vector<8xf32>
    %76 = vector.shape_cast %75 : vector<8xf32> to vector<8x1xf32>
    %77 = vector.broadcast %76 : vector<8x1xf32> to vector<8x8xf32>
    %78 = arith.subf %74, %77 : vector<8x8xf32>
    %79 = math.exp %78 : vector<8x8xf32>
    %cst_24 = arith.constant dense<0.000000e+00> : vector<8xf32>
    %80 = vector.multi_reduction <add>, %79, %cst_24 [1] : vector<8x8xf32> to vector<8xf32>
    %81 = vector.shape_cast %80 : vector<8xf32> to vector<8x1xf32>
    %82 = tpu.reciprocal %81 {approx = true} : vector<8x1xf32> -> vector<8x1xf32>
    %83 = vector.broadcast %82 : vector<8x1xf32> to vector<8x8xf32>
    %84 = arith.mulf %79, %83 : vector<8x8xf32>
    %85 = arith.truncf %84 : vector<8x8xf32> to vector<8x8xbf16>
    %cst_25 = arith.constant dense<0.000000e+00> : vector<8x32xf32>
    %86 = tpu.matmul %85, %71, %cst_25 {dimension_numbers = #tpu.dot_dimension_numbers<[1], [0], [0], [1], [0, 0, 1, 1], [], []>} : vector<8x8xbf16>, vector<8x32xbf16>, vector<8x32xf32> -> vector<8x32xf32>
    %c0_26 = arith.constant 0 : index
    %c96 = arith.constant 96 : index
    %87 = vector.load %arg3[%c0_26, %c96] : memref<8x128xf32, #tpu.memory_space<vmem>>, vector<8x32xf32>
    tpu.vector_store %arg3[%c0_26, %c96], %86 {strides = array<i32>} : memref<8x128xf32, #tpu.memory_space<vmem>>, vector<8x32xf32>,
    %c0_27 = arith.constant 0 : index
    %c0_28 = arith.constant 0 : index
    %88 = vector.load %arg3[%c0_27, %c0_28] : memref<8x128xf32, #tpu.memory_space<vmem>>, vector<8x128xf32>
    %89 = arith.truncf %88 : vector<8x128xf32> to vector<8x128xbf16>
    %c0_29 = arith.constant 0 : index
    %c0_30 = arith.constant 0 : index
    %c0_31 = arith.constant 0 : index
    %90 = vector.load %arg2[%c0_29, %c0_30, %c0_31] : memref<1x8x128xbf16, #tpu.memory_space<vmem>>, vector<1x8x128xbf16>
    %91 = vector.shape_cast %90 : vector<1x8x128xbf16> to vector<8x128xbf16>
    %92 = vector.shape_cast %89 : vector<8x128xbf16> to vector<1x8x128xbf16>
    tpu.vector_store %arg2[%c0_29, %c0_30, %c0_31], %92 {strides = array<i32>} : memref<1x8x128xbf16, #tpu.memory_space<vmem>>, vector<1x8x128xbf16>,
    return
  }
  func.func @transform_0(%arg0: i32) -> (i32, i32, i32) {
    %c0_i32 = arith.constant 0 : i32
    %c0_i32_0 = arith.constant 0 : i32
    %c0_i32_1 = arith.constant 0 : i32
    return %arg0, %c0_i32, %c0_i32_0 : i32, i32, i32
  }
  func.func @transform_1(%arg0: i32) -> (i32, i32, i32) {
    %c0_i32 = arith.constant 0 : i32
    %c0_i32_0 = arith.constant 0 : i32
    %c0_i32_1 = arith.constant 0 : i32
    return %arg0, %c0_i32, %c0_i32_0 : i32, i32, i32
  }
}

module attributes {stable_mosaic.version = 11 : i64} {
  func.func @kernel(%arg0: i32, %arg1: i32, %arg2: i32, %arg3: memref<16x128xbf16, #tpu.memory_space<vmem>>, %arg4: memref<128x384xbf16, #tpu.memory_space<vmem>>, %arg5: memref<1x128xf32, #tpu.memory_space<vmem>>, %arg6: memref<1x128xf32, #tpu.memory_space<vmem>>, %arg7: memref<16x384xbf16, #tpu.memory_space<vmem>>) attributes {dimension_semantics = [#tpu.dimension_semantics<parallel>, #tpu.dimension_semantics<parallel>, #tpu.dimension_semantics<arbitrary>], iteration_bounds = array<i64: 1, 1, 1>, scalar_prefetch = 0 : i64, scratch_operands = 0 : i64, tpu.core_type = #tpu.core_type<tc>, window_params = [{transform_indices = @transform_0, window_bounds = array<i64: 16, 128>}, {transform_indices = @transform_1, window_bounds = array<i64: 128, 384>}, {transform_indices = @transform_2, window_bounds = array<i64: 1, 128>}, {transform_indices = @transform_3, window_bounds = array<i64: 1, 128>}, {transform_indices = @transform_4, window_bounds = array<i64: 16, 384>}]} {
    %c0 = arith.constant 0 : index
    %c0_0 = arith.constant 0 : index
    %0 = vector.load %arg3[%c0, %c0_0] : memref<16x128xbf16, #tpu.memory_space<vmem>>, vector<16x128xbf16>
    %1 = arith.extf %0 : vector<16x128xbf16> to vector<16x128xf32>
    %cst = arith.constant dense<0.000000e+00> : vector<16xf32>
    %2 = vector.multi_reduction <add>, %1, %cst [1] : vector<16x128xf32> to vector<16xf32>
    %3 = vector.shape_cast %2 : vector<16xf32> to vector<16x1xf32>
    %cst_1 = arith.constant 1.280000e+02 : f32
    %4 = vector.broadcast %cst_1 : f32 to vector<16x1xf32>
    %5 = arith.divf %3, %4 : vector<16x1xf32>
    %6 = vector.broadcast %5 : vector<16x1xf32> to vector<16x128xf32>
    %7 = arith.subf %1, %6 : vector<16x128xf32>
    %8 = arith.mulf %7, %7 : vector<16x128xf32>
    %cst_2 = arith.constant dense<0.000000e+00> : vector<16xf32>
    %9 = vector.multi_reduction <add>, %8, %cst_2 [1] : vector<16x128xf32> to vector<16xf32>
    %10 = vector.shape_cast %9 : vector<16xf32> to vector<16x1xf32>
    %cst_3 = arith.constant 1.280000e+02 : f32
    %11 = vector.broadcast %cst_3 : f32 to vector<16x1xf32>
    %12 = arith.divf %10, %11 : vector<16x1xf32>
    %13 = vector.broadcast %5 : vector<16x1xf32> to vector<16x128xf32>
    %14 = arith.subf %1, %13 : vector<16x128xf32>
    %cst_4 = arith.constant 9.99999974E-6 : f32
    %15 = vector.broadcast %cst_4 : f32 to vector<16x1xf32>
    %16 = arith.addf %12, %15 : vector<16x1xf32>
    %17 = math.rsqrt %16 : vector<16x1xf32>
    %18 = vector.broadcast %17 : vector<16x1xf32> to vector<16x128xf32>
    %19 = arith.mulf %14, %18 : vector<16x128xf32>
    %c0_5 = arith.constant 0 : index
    %c0_6 = arith.constant 0 : index
    %20 = vector.load %arg5[%c0_5, %c0_6] : memref<1x128xf32, #tpu.memory_space<vmem>>, vector<1x128xf32>
    %21 = vector.broadcast %20 : vector<1x128xf32> to vector<16x128xf32>
    %22 = arith.mulf %19, %21 : vector<16x128xf32>
    %c0_7 = arith.constant 0 : index
    %c0_8 = arith.constant 0 : index
    %23 = vector.load %arg6[%c0_7, %c0_8] : memref<1x128xf32, #tpu.memory_space<vmem>>, vector<1x128xf32>
    %24 = vector.broadcast %23 : vector<1x128xf32> to vector<16x128xf32>
    %25 = arith.addf %22, %24 : vector<16x128xf32>
    %26 = arith.truncf %25 : vector<16x128xf32> to vector<16x128xbf16>
    %c0_9 = arith.constant 0 : index
    %c0_10 = arith.constant 0 : index
    %27 = vector.load %arg4[%c0_9, %c0_10] : memref<128x384xbf16, #tpu.memory_space<vmem>>, vector<128x384xbf16>
    %cst_11 = arith.constant dense<0.000000e+00> : vector<16x384xf32>
    %28 = tpu.matmul %26, %27, %cst_11 {dimension_numbers = #tpu.dot_dimension_numbers<[1], [0], [0], [1], [0, 0, 1, 1], [], []>} : vector<16x128xbf16>, vector<128x384xbf16>, vector<16x384xf32> -> vector<16x384xf32>
    %29 = arith.truncf %28 : vector<16x384xf32> to vector<16x384xbf16>
    %c0_12 = arith.constant 0 : index
    %c0_13 = arith.constant 0 : index
    %30 = vector.load %arg7[%c0_12, %c0_13] : memref<16x384xbf16, #tpu.memory_space<vmem>>, vector<16x384xbf16>
    tpu.vector_store %arg7[%c0_12, %c0_13], %29 {strides = array<i32>} : memref<16x384xbf16, #tpu.memory_space<vmem>>, vector<16x384xbf16>,
    return
  }
  func.func @transform_0(%arg0: i32, %arg1: i32, %arg2: i32) -> (i32, i32) {
    %c0_i32 = arith.constant 0 : i32
    return %arg0, %arg2 : i32, i32
  }
  func.func @transform_1(%arg0: i32, %arg1: i32, %arg2: i32) -> (i32, i32) {
    %c0_i32 = arith.constant 0 : i32
    return %arg2, %arg1 : i32, i32
  }
  func.func @transform_2(%arg0: i32, %arg1: i32, %arg2: i32) -> (i32, i32) {
    %c0_i32 = arith.constant 0 : i32
    %c0_i32_0 = arith.constant 0 : i32
    return %c0_i32, %arg2 : i32, i32
  }
  func.func @transform_3(%arg0: i32, %arg1: i32, %arg2: i32) -> (i32, i32) {
    %c0_i32 = arith.constant 0 : i32
    %c0_i32_0 = arith.constant 0 : i32
    return %c0_i32, %arg2 : i32, i32
  }
  func.func @transform_4(%arg0: i32, %arg1: i32, %arg2: i32) -> (i32, i32) {
    %c0_i32 = arith.constant 0 : i32
    return %arg0, %arg1 : i32, i32
  }
}

module attributes {stable_mosaic.version = 11 : i64} {
  func.func @kernel(%arg0: i32, %arg1: i32, %arg2: i32, %arg3: memref<16x128xbf16, #tpu.memory_space<vmem>>, %arg4: memref<128x128xbf16, #tpu.memory_space<vmem>>, %arg5: memref<1x128xf32, #tpu.memory_space<vmem>>, %arg6: memref<16x128xbf16, #tpu.memory_space<vmem>>, %arg7: memref<16x128xbf16, #tpu.memory_space<vmem>>) attributes {dimension_semantics = [#tpu.dimension_semantics<parallel>, #tpu.dimension_semantics<parallel>, #tpu.dimension_semantics<arbitrary>], iteration_bounds = array<i64: 1, 1, 1>, scalar_prefetch = 0 : i64, scratch_operands = 0 : i64, tpu.core_type = #tpu.core_type<tc>, window_params = [{transform_indices = @transform_0, window_bounds = array<i64: 16, 128>}, {transform_indices = @transform_1, window_bounds = array<i64: 128, 128>}, {transform_indices = @transform_2, window_bounds = array<i64: 1, 128>}, {transform_indices = @transform_3, window_bounds = array<i64: 16, 128>}, {transform_indices = @transform_4, window_bounds = array<i64: 16, 128>}]} {
    %c0 = arith.constant 0 : index
    %c0_0 = arith.constant 0 : index
    %0 = vector.load %arg3[%c0, %c0_0] : memref<16x128xbf16, #tpu.memory_space<vmem>>, vector<16x128xbf16>
    %c0_1 = arith.constant 0 : index
    %c0_2 = arith.constant 0 : index
    %1 = vector.load %arg4[%c0_1, %c0_2] : memref<128x128xbf16, #tpu.memory_space<vmem>>, vector<128x128xbf16>
    %cst = arith.constant dense<0.000000e+00> : vector<16x128xf32>
    %2 = tpu.matmul %0, %1, %cst {dimension_numbers = #tpu.dot_dimension_numbers<[1], [0], [0], [1], [0, 0, 1, 1], [], []>} : vector<16x128xbf16>, vector<128x128xbf16>, vector<16x128xf32> -> vector<16x128xf32>
    %c0_3 = arith.constant 0 : index
    %c0_4 = arith.constant 0 : index
    %3 = vector.load %arg5[%c0_3, %c0_4] : memref<1x128xf32, #tpu.memory_space<vmem>>, vector<1x128xf32>
    %4 = vector.broadcast %3 : vector<1x128xf32> to vector<16x128xf32>
    %5 = arith.addf %2, %4 : vector<16x128xf32>
    %c0_5 = arith.constant 0 : index
    %c0_6 = arith.constant 0 : index
    %6 = vector.load %arg6[%c0_5, %c0_6] : memref<16x128xbf16, #tpu.memory_space<vmem>>, vector<16x128xbf16>
    %7 = arith.extf %6 : vector<16x128xbf16> to vector<16x128xf32>
    %8 = arith.addf %5, %7 : vector<16x128xf32>
    %9 = arith.truncf %8 : vector<16x128xf32> to vector<16x128xbf16>
    %c0_7 = arith.constant 0 : index
    %c0_8 = arith.constant 0 : index
    %10 = vector.load %arg7[%c0_7, %c0_8] : memref<16x128xbf16, #tpu.memory_space<vmem>>, vector<16x128xbf16>
    tpu.vector_store %arg7[%c0_7, %c0_8], %9 {strides = array<i32>} : memref<16x128xbf16, #tpu.memory_space<vmem>>, vector<16x128xbf16>,
    return
  }
  func.func @transform_0(%arg0: i32, %arg1: i32, %arg2: i32) -> (i32, i32) {
    %c0_i32 = arith.constant 0 : i32
    return %arg0, %arg2 : i32, i32
  }
  func.func @transform_1(%arg0: i32, %arg1: i32, %arg2: i32) -> (i32, i32) {
    %c0_i32 = arith.constant 0 : i32
    return %arg2, %arg1 : i32, i32
  }
  func.func @transform_2(%arg0: i32, %arg1: i32, %arg2: i32) -> (i32, i32) {
    %c0_i32 = arith.constant 0 : i32
    %c0_i32_0 = arith.constant 0 : i32
    return %c0_i32, %arg1 : i32, i32
  }
  func.func @transform_3(%arg0: i32, %arg1: i32, %arg2: i32) -> (i32, i32) {
    %c0_i32 = arith.constant 0 : i32
    return %arg0, %arg1 : i32, i32
  }
  func.func @transform_4(%arg0: i32, %arg1: i32, %arg2: i32) -> (i32, i32) {
    %c0_i32 = arith.constant 0 : i32
    return %arg0, %arg1 : i32, i32
  }
}

module attributes {stable_mosaic.version = 11 : i64} {
  func.func @kernel(%arg0: i32, %arg1: i32, %arg2: i32, %arg3: memref<16x384xbf16, #tpu.memory_space<vmem>>, %arg4: memref<384x128xbf16, #tpu.memory_space<vmem>>, %arg5: memref<1x128xf32, #tpu.memory_space<vmem>>, %arg6: memref<16x128xbf16, #tpu.memory_space<vmem>>, %arg7: memref<16x128xbf16, #tpu.memory_space<vmem>>, %arg8: memref<16x128xf32, #tpu.memory_space<vmem>>) attributes {dimension_semantics = [#tpu.dimension_semantics<parallel>, #tpu.dimension_semantics<parallel>, #tpu.dimension_semantics<arbitrary>], iteration_bounds = array<i64: 1, 1, 2>, scalar_prefetch = 0 : i64, scratch_operands = 1 : i64, tpu.core_type = #tpu.core_type<tc>, window_params = [{transform_indices = @transform_0, window_bounds = array<i64: 16, 384>}, {transform_indices = @transform_1, window_bounds = array<i64: 384, 128>}, {transform_indices = @transform_2, window_bounds = array<i64: 1, 128>}, {transform_indices = @transform_3, window_bounds = array<i64: 16, 128>}, {transform_indices = @transform_4, window_bounds = array<i64: 16, 128>}]} {
    %c0 = arith.constant 0 : index
    %c0_0 = arith.constant 0 : index
    %0 = vector.load %arg3[%c0, %c0_0] : memref<16x384xbf16, #tpu.memory_space<vmem>>, vector<16x384xbf16>
    %c0_i32 = arith.constant 0 : i32
    %1 = arith.cmpi eq, %arg2, %c0_i32 : i32
    %2 = arith.extui %1 : i1 to i32
    %c0_i32_1 = arith.constant 0 : i32
    %3 = arith.cmpi ne, %2, %c0_i32_1 : i32
    scf.if %3 {
      %cst_9 = arith.constant 0.000000e+00 : f32
      %12 = vector.broadcast %cst_9 : f32 to vector<16x128xf32>
      %c0_10 = arith.constant 0 : index
      %c0_11 = arith.constant 0 : index
      %13 = vector.load %arg8[%c0_10, %c0_11] : memref<16x128xf32, #tpu.memory_space<vmem>>, vector<16x128xf32>
      tpu.vector_store %arg8[%c0_10, %c0_11], %12 {strides = array<i32>} : memref<16x128xf32, #tpu.memory_space<vmem>>, vector<16x128xf32>,
    } else {
    }
    %c0_2 = arith.constant 0 : index
    %c0_3 = arith.constant 0 : index
    %4 = vector.load %arg8[%c0_2, %c0_3] : memref<16x128xf32, #tpu.memory_space<vmem>>, vector<16x128xf32>
    %c0_4 = arith.constant 0 : index
    %c0_5 = arith.constant 0 : index
    %5 = vector.load %arg4[%c0_4, %c0_5] : memref<384x128xbf16, #tpu.memory_space<vmem>>, vector<384x128xbf16>
    %cst = arith.constant dense<0.000000e+00> : vector<16x128xf32>
    %6 = tpu.matmul %0, %5, %cst {dimension_numbers = #tpu.dot_dimension_numbers<[1], [0], [0], [1], [0, 0, 1, 1], [], []>} : vector<16x384xbf16>, vector<384x128xbf16>, vector<16x128xf32> -> vector<16x128xf32>
    %7 = arith.addf %4, %6 : vector<16x128xf32>
    %c0_6 = arith.constant 0 : index
    %c0_7 = arith.constant 0 : index
    %8 = vector.load %arg8[%c0_6, %c0_7] : memref<16x128xf32, #tpu.memory_space<vmem>>, vector<16x128xf32>
    tpu.vector_store %arg8[%c0_6, %c0_7], %7 {strides = array<i32>} : memref<16x128xf32, #tpu.memory_space<vmem>>, vector<16x128xf32>,
    %c1_i32 = arith.constant 1 : i32
    %9 = arith.cmpi eq, %arg2, %c1_i32 : i32
    %10 = arith.extui %9 : i1 to i32
    %c0_i32_8 = arith.constant 0 : i32
    %11 = arith.cmpi ne, %10, %c0_i32_8 : i32
    scf.if %11 {
      %c0_9 = arith.constant 0 : index
      %c0_10 = arith.constant 0 : index
      %12 = vector.load %arg8[%c0_9, %c0_10] : memref<16x128xf32, #tpu.memory_space<vmem>>, vector<16x128xf32>
      %c0_11 = arith.constant 0 : index
      %c0_12 = arith.constant 0 : index
      %13 = vector.load %arg5[%c0_11, %c0_12] : memref<1x128xf32, #tpu.memory_space<vmem>>, vector<1x128xf32>
      %14 = vector.broadcast %13 : vector<1x128xf32> to vector<16x128xf32>
      %15 = arith.addf %12, %14 : vector<16x128xf32>
      %c0_13 = arith.constant 0 : index
      %c0_14 = arith.constant 0 : index
      %16 = vector.load %arg6[%c0_13, %c0_14] : memref<16x128xbf16, #tpu.memory_space<vmem>>, vector<16x128xbf16>
      %17 = arith.extf %16 : vector<16x128xbf16> to vector<16x128xf32>
      %18 = arith.addf %15, %17 : vector<16x128xf32>
      %19 = arith.truncf %18 : vector<16x128xf32> to vector<16x128xbf16>
      %c0_15 = arith.constant 0 : index
      %c0_16 = arith.constant 0 : index
      %20 = vector.load %arg7[%c0_15, %c0_16] : memref<16x128xbf16, #tpu.memory_space<vmem>>, vector<16x128xbf16>
      tpu.vector_store %arg7[%c0_15, %c0_16], %19 {strides = array<i32>} : memref<16x128xbf16, #tpu.memory_space<vmem>>, vector<16x128xbf16>,
    } else {
    }
    return
  }
  func.func @transform_0(%arg0: i32, %arg1: i32, %arg2: i32) -> (i32, i32) {
    %c0_i32 = arith.constant 0 : i32
    return %arg0, %arg2 : i32, i32
  }
  func.func @transform_1(%arg0: i32, %arg1: i32, %arg2: i32) -> (i32, i32) {
    %c0_i32 = arith.constant 0 : i32
    return %arg2, %arg1 : i32, i32
  }
  func.func @transform_2(%arg0: i32, %arg1: i32, %arg2: i32) -> (i32, i32) {
    %c0_i32 = arith.constant 0 : i32
    %c0_i32_0 = arith.constant 0 : i32
    return %c0_i32, %arg1 : i32, i32
  }
  func.func @transform_3(%arg0: i32, %arg1: i32, %arg2: i32) -> (i32, i32) {
    %c0_i32 = arith.constant 0 : i32
    return %arg0, %arg1 : i32, i32
  }
  func.func @transform_4(%arg0: i32, %arg1: i32, %arg2: i32) -> (i32, i32) {
    %c0_i32 = arith.constant 0 : i32
    return %arg0, %arg1 : i32, i32
  }
}

module attributes {stable_mosaic.version = 11 : i64} {
  func.func @kernel(%arg0: i32, %arg1: i32, %arg2: i32, %arg3: memref<16x128xbf16, #tpu.memory_space<vmem>>, %arg4: memref<128x768xbf16, #tpu.memory_space<vmem>>, %arg5: memref<1x128xf32, #tpu.memory_space<vmem>>, %arg6: memref<1x128xf32, #tpu.memory_space<vmem>>, %arg7: memref<1x768xf32, #tpu.memory_space<vmem>>, %arg8: memref<16x768xbf16, #tpu.memory_space<vmem>>) attributes {dimension_semantics = [#tpu.dimension_semantics<parallel>, #tpu.dimension_semantics<parallel>, #tpu.dimension_semantics<arbitrary>], iteration_bounds = array<i64: 1, 1, 1>, scalar_prefetch = 0 : i64, scratch_operands = 0 : i64, tpu.core_type = #tpu.core_type<tc>, window_params = [{transform_indices = @transform_0, window_bounds = array<i64: 16, 128>}, {transform_indices = @transform_1, window_bounds = array<i64: 128, 768>}, {transform_indices = @transform_2, window_bounds = array<i64: 1, 128>}, {transform_indices = @transform_3, window_bounds = array<i64: 1, 128>}, {transform_indices = @transform_4, window_bounds = array<i64: 1, 768>}, {transform_indices = @transform_5, window_bounds = array<i64: 16, 768>}]} {
    %c0 = arith.constant 0 : index
    %c0_0 = arith.constant 0 : index
    %0 = vector.load %arg3[%c0, %c0_0] : memref<16x128xbf16, #tpu.memory_space<vmem>>, vector<16x128xbf16>
    %1 = arith.extf %0 : vector<16x128xbf16> to vector<16x128xf32>
    %cst = arith.constant dense<0.000000e+00> : vector<16xf32>
    %2 = vector.multi_reduction <add>, %1, %cst [1] : vector<16x128xf32> to vector<16xf32>
    %3 = vector.shape_cast %2 : vector<16xf32> to vector<16x1xf32>
    %cst_1 = arith.constant 1.280000e+02 : f32
    %4 = vector.broadcast %cst_1 : f32 to vector<16x1xf32>
    %5 = arith.divf %3, %4 : vector<16x1xf32>
    %6 = vector.broadcast %5 : vector<16x1xf32> to vector<16x128xf32>
    %7 = arith.subf %1, %6 : vector<16x128xf32>
    %8 = arith.mulf %7, %7 : vector<16x128xf32>
    %cst_2 = arith.constant dense<0.000000e+00> : vector<16xf32>
    %9 = vector.multi_reduction <add>, %8, %cst_2 [1] : vector<16x128xf32> to vector<16xf32>
    %10 = vector.shape_cast %9 : vector<16xf32> to vector<16x1xf32>
    %cst_3 = arith.constant 1.280000e+02 : f32
    %11 = vector.broadcast %cst_3 : f32 to vector<16x1xf32>
    %12 = arith.divf %10, %11 : vector<16x1xf32>
    %13 = vector.broadcast %5 : vector<16x1xf32> to vector<16x128xf32>
    %14 = arith.subf %1, %13 : vector<16x128xf32>
    %cst_4 = arith.constant 9.99999974E-6 : f32
    %15 = vector.broadcast %cst_4 : f32 to vector<16x1xf32>
    %16 = arith.addf %12, %15 : vector<16x1xf32>
    %17 = math.rsqrt %16 : vector<16x1xf32>
    %18 = vector.broadcast %17 : vector<16x1xf32> to vector<16x128xf32>
    %19 = arith.mulf %14, %18 : vector<16x128xf32>
    %c0_5 = arith.constant 0 : index
    %c0_6 = arith.constant 0 : index
    %20 = vector.load %arg5[%c0_5, %c0_6] : memref<1x128xf32, #tpu.memory_space<vmem>>, vector<1x128xf32>
    %21 = vector.broadcast %20 : vector<1x128xf32> to vector<16x128xf32>
    %22 = arith.mulf %19, %21 : vector<16x128xf32>
    %c0_7 = arith.constant 0 : index
    %c0_8 = arith.constant 0 : index
    %23 = vector.load %arg6[%c0_7, %c0_8] : memref<1x128xf32, #tpu.memory_space<vmem>>, vector<1x128xf32>
    %24 = vector.broadcast %23 : vector<1x128xf32> to vector<16x128xf32>
    %25 = arith.addf %22, %24 : vector<16x128xf32>
    %26 = arith.truncf %25 : vector<16x128xf32> to vector<16x128xbf16>
    %c0_9 = arith.constant 0 : index
    %c0_10 = arith.constant 0 : index
    %27 = vector.load %arg4[%c0_9, %c0_10] : memref<128x768xbf16, #tpu.memory_space<vmem>>, vector<128x768xbf16>
    %cst_11 = arith.constant dense<0.000000e+00> : vector<16x768xf32>
    %28 = tpu.matmul %26, %27, %cst_11 {dimension_numbers = #tpu.dot_dimension_numbers<[1], [0], [0], [1], [0, 0, 1, 1], [], []>} : vector<16x128xbf16>, vector<128x768xbf16>, vector<16x768xf32> -> vector<16x768xf32>
    %c0_12 = arith.constant 0 : index
    %c0_13 = arith.constant 0 : index
    %29 = vector.load %arg7[%c0_12, %c0_13] : memref<1x768xf32, #tpu.memory_space<vmem>>, vector<1x768xf32>
    %30 = vector.broadcast %29 : vector<1x768xf32> to vector<16x768xf32>
    %31 = arith.addf %28, %30 : vector<16x768xf32>
    %cst_14 = arith.constant 5.000000e-01 : f32
    %32 = vector.broadcast %cst_14 : f32 to vector<16x768xf32>
    %33 = arith.mulf %32, %31 : vector<16x768xf32>
    %cst_15 = arith.constant 0.707106769 : f32
    %34 = vector.broadcast %cst_15 : f32 to vector<16x768xf32>
    %35 = arith.mulf %31, %34 : vector<16x768xf32>
    %36 = math.erf %35 : vector<16x768xf32>
    %cst_16 = arith.constant 1.000000e+00 : f32
    %37 = vector.broadcast %cst_16 : f32 to vector<16x768xf32>
    %38 = arith.addf %37, %36 : vector<16x768xf32>
    %39 = arith.mulf %33, %38 : vector<16x768xf32>
    %40 = arith.truncf %39 : vector<16x768xf32> to vector<16x768xbf16>
    %c0_17 = arith.constant 0 : index
    %c0_18 = arith.constant 0 : index
    %41 = vector.load %arg8[%c0_17, %c0_18] : memref<16x768xbf16, #tpu.memory_space<vmem>>, vector<16x768xbf16>
    tpu.vector_store %arg8[%c0_17, %c0_18], %40 {strides = array<i32>} : memref<16x768xbf16, #tpu.memory_space<vmem>>, vector<16x768xbf16>,
    return
  }
  func.func @transform_0(%arg0: i32, %arg1: i32, %arg2: i32) -> (i32, i32) {
    %c0_i32 = arith.constant 0 : i32
    return %arg0, %arg2 : i32, i32
  }
  func.func @transform_1(%arg0: i32, %arg1: i32, %arg2: i32) -> (i32, i32) {
    %c0_i32 = arith.constant 0 : i32
    return %arg2, %arg1 : i32, i32
  }
  func.func @transform_2(%arg0: i32, %arg1: i32, %arg2: i32) -> (i32, i32) {
    %c0_i32 = arith.constant 0 : i32
    %c0_i32_0 = arith.constant 0 : i32
    return %c0_i32, %arg2 : i32, i32
  }
  func.func @transform_3(%arg0: i32, %arg1: i32, %arg2: i32) -> (i32, i32) {
    %c0_i32 = arith.constant 0 : i32
    %c0_i32_0 = arith.constant 0 : i32
    return %c0_i32, %arg2 : i32, i32
  }
  func.func @transform_4(%arg0: i32, %arg1: i32, %arg2: i32) -> (i32, i32) {
    %c0_i32 = arith.constant 0 : i32
    %c0_i32_0 = arith.constant 0 : i32
    return %c0_i32, %arg1 : i32, i32
  }
  func.func @transform_5(%arg0: i32, %arg1: i32, %arg2: i32) -> (i32, i32) {
    %c0_i32 = arith.constant 0 : i32
    return %arg0, %arg1 : i32, i32
  }
}

module attributes {stable_mosaic.version = 11 : i64} {
  func.func @_layernorm_kernel(%arg0: i32, %arg1: memref<2x128xf32, #tpu.memory_space<vmem>>, %arg2: memref<1x128xf32, #tpu.memory_space<vmem>>, %arg3: memref<1x128xf32, #tpu.memory_space<vmem>>, %arg4: memref<2x128xf32, #tpu.memory_space<vmem>>) attributes {dimension_semantics = [#tpu.dimension_semantics<parallel>], iteration_bounds = array<i64: 1>, scalar_prefetch = 0 : i64, scratch_operands = 0 : i64, tpu.core_type = #tpu.core_type<tc>, window_params = [{transform_indices = @transform_0, window_bounds = array<i64: 2, 128>}, {pipeline_mode = #tpu.pipeline_mode<synchronous>, transform_indices = @transform_1, window_bounds = array<i64: 1, 128>}, {pipeline_mode = #tpu.pipeline_mode<synchronous>, transform_indices = @transform_2, window_bounds = array<i64: 1, 128>}, {transform_indices = @transform_3, window_bounds = array<i64: 2, 128>}]} {
    %c0 = arith.constant 0 : index
    %c0_0 = arith.constant 0 : index
    %0 = vector.load %arg1[%c0, %c0_0] : memref<2x128xf32, #tpu.memory_space<vmem>>, vector<2x128xf32>
    %cst = arith.constant dense<0.000000e+00> : vector<2xf32>
    %1 = vector.multi_reduction <add>, %0, %cst [1] : vector<2x128xf32> to vector<2xf32>
    %2 = vector.shape_cast %1 : vector<2xf32> to vector<2x1xf32>
    %cst_1 = arith.constant 1.280000e+02 : f32
    %3 = vector.broadcast %cst_1 : f32 to vector<2x1xf32>
    %4 = arith.divf %2, %3 : vector<2x1xf32>
    %5 = vector.broadcast %4 : vector<2x1xf32> to vector<2x128xf32>
    %6 = arith.subf %0, %5 : vector<2x128xf32>
    %7 = arith.mulf %6, %6 : vector<2x128xf32>
    %cst_2 = arith.constant dense<0.000000e+00> : vector<2xf32>
    %8 = vector.multi_reduction <add>, %7, %cst_2 [1] : vector<2x128xf32> to vector<2xf32>
    %9 = vector.shape_cast %8 : vector<2xf32> to vector<2x1xf32>
    %cst_3 = arith.constant 1.280000e+02 : f32
    %10 = vector.broadcast %cst_3 : f32 to vector<2x1xf32>
    %11 = arith.divf %9, %10 : vector<2x1xf32>
    %12 = vector.broadcast %4 : vector<2x1xf32> to vector<2x128xf32>
    %13 = arith.subf %0, %12 : vector<2x128xf32>
    %cst_4 = arith.constant 9.99999974E-6 : f32
    %14 = vector.broadcast %cst_4 : f32 to vector<2x1xf32>
    %15 = arith.addf %11, %14 : vector<2x1xf32>
    %16 = math.rsqrt %15 : vector<2x1xf32>
    %17 = vector.broadcast %16 : vector<2x1xf32> to vector<2x128xf32>
    %18 = arith.mulf %13, %17 : vector<2x128xf32>
    %c0_5 = arith.constant 0 : index
    %c0_6 = arith.constant 0 : index
    %19 = vector.load %arg2[%c0_5, %c0_6] : memref<1x128xf32, #tpu.memory_space<vmem>>, vector<1x128xf32>
    %20 = vector.broadcast %19 : vector<1x128xf32> to vector<2x128xf32>
    %21 = arith.mulf %18, %20 : vector<2x128xf32>
    %c0_7 = arith.constant 0 : index
    %c0_8 = arith.constant 0 : index
    %22 = vector.load %arg3[%c0_7, %c0_8] : memref<1x128xf32, #tpu.memory_space<vmem>>, vector<1x128xf32>
    %23 = vector.broadcast %22 : vector<1x128xf32> to vector<2x128xf32>
    %24 = arith.addf %21, %23 : vector<2x128xf32>
    %c0_9 = arith.constant 0 : index
    %c0_10 = arith.constant 0 : index
    %25 = vector.load %arg4[%c0_9, %c0_10] : memref<2x128xf32, #tpu.memory_space<vmem>>, vector<2x128xf32>
    tpu.vector_store %arg4[%c0_9, %c0_10], %24 {strides = array<i32>} : memref<2x128xf32, #tpu.memory_space<vmem>>, vector<2x128xf32>,
    return
  }
  func.func @transform_0(%arg0: i32) -> (i32, i32) {
    %c0_i32 = arith.constant 0 : i32
    %c0_i32_0 = arith.constant 0 : i32
    return %arg0, %c0_i32 : i32, i32
  }
  func.func @transform_1(%arg0: i32) -> (i32, i32) {
    %c0_i32 = arith.constant 0 : i32
    %c0_i32_0 = arith.constant 0 : i32
    %c0_i32_1 = arith.constant 0 : i32
    return %c0_i32, %c0_i32_0 : i32, i32
  }
  func.func @transform_2(%arg0: i32) -> (i32, i32) {
    %c0_i32 = arith.constant 0 : i32
    %c0_i32_0 = arith.constant 0 : i32
    %c0_i32_1 = arith.constant 0 : i32
    return %c0_i32, %c0_i32_0 : i32, i32
  }
  func.func @transform_3(%arg0: i32) -> (i32, i32) {
    %c0_i32 = arith.constant 0 : i32
    %c0_i32_0 = arith.constant 0 : i32
    return %arg0, %c0_i32 : i32, i32
  }
}

</mosaic_0001>

<llo_original>
// kernel: vit_forward.14
$region0: #{vit_forward.14}
  #allocation0 [shape = 'u32[]', space=smem, size = 0x4, offset = 0x4, fixed_abs, tag = 'smem constant byte address 0x4 - core index']
  #allocation1 [shape = 'u32[72,128]{1,0:T(1,128)}', space=vmem, size = 0x9000, scoped, tag = 'internal scratch']
  #allocation2 [shape = 'f32[8,128]{1,0:T(8,128)}', space=vmem, size = 0x1000, scoped, tag = 'scratch operand']
  %s0 = inlined_call_operand.vmem [shape: bf16[2,8,384], index: 0, kind: input, shape index: {}]
  %s1 = inlined_call_operand.vmem [shape: bf16[2,8,128], index: 1, kind: output, shape index: {}]
  %s2 = sld [smem:[#allocation0]]
  $region37: #{vit_forward.14} parent=0
    _
  %s4 = ssub.s32 1, %s2
  %s5 = scalar_select 0, %s4, %s2
  loop: start=0, step=1, limit=4
  $region2: #{vit_forward.14} parent=0 // loop_pre_header
    _
  $region3: #{vit_forward.14} parent=0 // loop_header
    %s7 = sphi 0, %s11
    %p8 = scmp.ge.s32.totalorder %s7, 4
    %s17 = sphi 0, %s19
    %s20 = sphi 0, %s17
    %s21 = sphi 0, %s20
    %s37 = sphi 0, %s21
    %s43 = sphi 0, %s45
    %s46 = sphi 0, %s43
    %s47 = sphi 0, %s46
    %s63 = sphi 0, %s47
  $region4: #{vit_forward.14} parent=0 // loop_header_branch
    %10 = sbr.rel (%p8) target = $region8
  $region5: #{vit_forward.14} parent=0 // loop_body
    %s12 = ssub.s32 %s7, 1
    %s13 = ssub.s32 %s7, 2
    %s14 = sadd.s32 %s7, 1
    %s15 = ssub.s32 %s7, %s14
    %p16 = scmp.eq.s32.totalorder %s15, 0
    %s18 = sadd.s32 %s17, 1
    %s19 = scalar_select %p16, %s17, %s18
    %p22 = pneg %p16
    %p23 = scmp.eq.s32.totalorder %s7, 1
    %p24 = por %p22, %p23
    %p25 = scmp.ne.s32.totalorder %s17, %s20
    %p26 = scmp.eq.s32.totalorder %s7, 0
    %p27 = por %p25, %p26
    %p28 = scmp.ne.s32.totalorder %s17, %s20
    %p29 = scmp.eq.s32.totalorder %s12, 1
    %p30 = por %p28, %p29
    %p31 = scmp.ne.s32.totalorder %s20, %s21
    %p32 = scmp.eq.s32.totalorder %s12, 0
    %p33 = por %p31, %p32
    %p34 = scmp.ne.s32.totalorder %s20, %s21
    %p35 = scmp.eq.s32.totalorder %s13, 1
    %p36 = por %p34, %p35
    %p38 = scmp.ne.s32.totalorder %s21, %s37
    %p39 = scmp.eq.s32.totalorder %s13, 0
    %p40 = por %p38, %p39
    %s41 = ssub.s32 %s7, %s14
    %p42 = scmp.eq.s32.totalorder %s41, 0
    %s44 = sadd.s32 %s43, 1
    %s45 = scalar_select %p42, %s43, %s44
    %p48 = pneg %p42
    %p49 = scmp.eq.s32.totalorder %s7, 1
    %p50 = por %p48, %p49
    %p51 = scmp.ne.s32.totalorder %s43, %s46
    %p52 = scmp.eq.s32.totalorder %s7, 0
    %p53 = por %p51, %p52
    %p54 = scmp.ne.s32.totalorder %s43, %s46
    %p55 = scmp.eq.s32.totalorder %s12, 1
    %p56 = por %p54, %p55
    %p57 = scmp.ne.s32.totalorder %s46, %s47
    %p58 = scmp.eq.s32.totalorder %s12, 0
    %p59 = por %p57, %p58
    %p60 = scmp.ne.s32.totalorder %s46, %s47
    %p61 = scmp.eq.s32.totalorder %s13, 1
    %p62 = por %p60, %p61
    %p64 = scmp.ne.s32.totalorder %s47, %s63
    %p65 = scmp.eq.s32.totalorder %s13, 0
    %p66 = por %p64, %p65
    %p67 = scmp.le.s32.totalorder 1, %s7
    %p68 = scmp.lt.s32.totalorder %s7, 3
    %p69 = pnand %p67, %p68
    %p70 = pneg %p69
    // Predicated region
    $region9: #{vit_forward.14} parent=5 // pred_check
      _
    $region10: #{vit_forward.14} parent=5 // pred_check_branch
      %72 = sbr.rel (%p69) target = $region12
    $region11: #{vit_forward.14} parent=5 // pred_region
      %s73 = ssub.s32 %s7, 1
    $region12: #{vit_forward.14} parent=5 // pred_fallthru
      _
    %p74 = scmp.lt.s32.totalorder %s7, 2
    // Predicated region
    $region13: #{vit_forward.14} parent=5 // pred_check
      %p75 = pneg %p74
    $region14: #{vit_forward.14} parent=5 // pred_check_branch
      %77 = sbr.rel (%p75) target = $region16
    $region15: #{vit_forward.14} parent=5 // pred_region
      // Predicated region
      $region17: #{vit_forward.14} parent=15 // pred_check
        %p78 = pneg %p27
      $region18: #{vit_forward.14} parent=15 // pred_check_branch
        %80 = sbr.rel (%p78) target = $region20
      $region19: #{vit_forward.14} parent=15 // pred_region
        %p81 = scmp.lt.s32.totalorder %s7, 1
        %s82 = scalar_select %p81, %s7, 1
        %s83 = smul.addr %s82, 3
        %s84 = smul.addr %s83, 4
        %s85 = scalar_lea.vmem %s0, %s84
      $region20: #{vit_forward.14} parent=15 // pred_fallthru
        _
    $region16: #{vit_forward.14} parent=5 // pred_fallthru
      _
    %p86 = scmp.le.s32.totalorder 1, %s7
    %p87 = scmp.lt.s32.totalorder %s7, 3
    %p88 = pnand %p86, %p87
    %p89 = pneg %p88
    // Predicated region
    $region21: #{vit_forward.14} parent=5 // pred_check
      _
    $region22: #{vit_forward.14} parent=5 // pred_check_branch
      %91 = sbr.rel (%p88) target = $region24
    $region23: #{vit_forward.14} parent=5 // pred_region
      %s92 = ssub.s32 %s7, 1
      %p93 = scmp.lt.s32.totalorder %s12, 1
      %s94 = scalar_select %p93, %s12, 1
      %s95 = smul.addr %s94, 3
      %s96 = smul.addr %s95, 4
      %s97 = scalar_lea.vmem %s0, %s96
      %p98 = pneg %p33
      %p99 = pneg %p30
      %p100 = pneg %p59
      %p101 = pneg %p56
      %p102 = scmp.lt.s32.totalorder %s12, 1
      %s103 = scalar_select %p102, %s12, 1
      %s104 = smul.addr %s103, 4
      %s105 = scalar_lea.vmem %s1, %s104
      %p106 = scmp.lt.s32.totalorder %s12, 1
      %s107 = scalar_select %p106, %s12, 1
      %s108 = smul.addr %s107, 3
      %s109 = smul.addr %s108, 4
      %s110 = scalar_lea.vmem %s0, %s109
      %p111 = scmp.lt.s32.totalorder %s12, 1
      %s112 = scalar_select %p111, %s12, 1
      %s113 = smul.addr %s112, 4
      %s114 = scalar_lea.vmem %s1, %s113
      %v116 = vld [vmem:[%s110] sm:$0xff]
      %v117 = vld [vmem:[%s110 + $0x8] sm:$0xf]
      %v118 = vunpack.c.l.bf16 %v116
      %v119 = vmul.f32 %v118, 0.17677669
      %v120 = vpack.c.bf16 %v119, %v119
      %v121 = vlaneseq
      %v122 = vand.u32 %v121, 127
      %vm123 = vcmp.lt.s32.totalorder %v122, 5
      %v125 = vunpack.c.h.b16 %v116
      %v126 = vpack.c.b16 %v125, %v125
      %vm127 = vcmask 261120
      %v129 = vsel %vm127, %v120, 0
      %v132 = vsel %vm127, %v126, 0
      %134 = vmatpush.bf16.xpose.msra.mxu0 0
      %135 = vmatpush.bf16.xpose.msra.mxu0 0
      %136 = vmatpush.bf16.xpose.msra.mxu0 0
      %137 = vmatpush.bf16.xpose.msra.mxu0 0
      %138 = vmatpush.bf16.xpose.msra.mxu0 0
      %139 = vmatpush.bf16.xpose.msra.mxu0 0
      %140 = vmatpush.bf16.xpose.msra.mxu0 0
      %141 = vmatpush.bf16.xpose.msra.mxu0 %v132
      %142 = vmatmul.bf16.gmra.mxu0 %v129
      %v143 = vpop.f32.mrf.mxu0
      %v144 = vadd.f32 0.0, %v143
      %v145 = vpop.f32.mrf.mxu0
      %146 = vdwg.mxu0
      %v147 = vsel %vm123, %v144, -1e+30
      %vm148 = vcmask 64512
      %v149 = vsel %vm148, %v147, -inf
      %150 = vmax.xlane.f32.xlu0 %v149
      %v151 = vpop.xlane.xlu0 %150
      %v152 = vsub.f32 %v147, %v151
      %v153 = vmul.f32 %v152, 1.442695
      %v154 = vpow.pop %v153
      %v155 = vsel %vm148, %v154, 0.0
      %156 = vadd.xlane.f32.xlu0 %v155
      %v157 = vpop.xlane.xlu0 %156
      %v158 = vrcp.pop %v157
      %v159 = vmul.f32 %v154, %v158
      %v160 = vpack.c.bf16 %v159, %v159
      %v162 = vsel %vm148, %v160, 0
      %vm164 = vcmask 1043456
      %v166 = vsel %vm164, %v117, 0
      %168 = vmatpush.bf16.msra.mxu0 0
      %169 = vmatpush.bf16.msra.mxu0 0
      %170 = vmatpush.bf16.msra.mxu0 0
      %171 = vmatpush.bf16.msra.mxu0 0
      %172 = vmatpush.bf16.msra.mxu0 0
      %173 = vmatpush.bf16.msra.mxu0 0
      %174 = vmatpush.bf16.msra.mxu0 0
      %175 = vmatpush.bf16.msra.mxu0 %v166
      %176 = vmatmul.bf16.gmra.mxu0 %v162
      %v177 = vpop.f32.mrf.mxu0
      %v178 = vadd.f32 0.0, %v177
      %v179 = vpop.f32.mrf.mxu0
      %180 = vdwg.mxu0
      %181 = vst.msk [vmem:[#allocation2] sm:$0xff] %vm127, %v178
      %v183 = vunpack.c.l.b16 %v120
      %v184 = vpack.c.b16 %v183, %v183
      %185 = vrot.lane.b32.xlu0 %v184, 96
      %v186 = vpop.permute.xlu0 %185
      %187 = vrot.lane.b32.xlu0 %v126, 96
      %v188 = vpop.permute.xlu0 %187
      %v190 = vsel %vm127, %v186, 0
      %v193 = vsel %vm127, %v188, 0
      %195 = vmatpush.bf16.xpose.msra.mxu0 0
      %196 = vmatpush.bf16.xpose.msra.mxu0 0
      %197 = vmatpush.bf16.xpose.msra.mxu0 0
      %198 = vmatpush.bf16.xpose.msra.mxu0 0
      %199 = vmatpush.bf16.xpose.msra.mxu0 0
      %200 = vmatpush.bf16.xpose.msra.mxu0 0
      %201 = vmatpush.bf16.xpose.msra.mxu0 0
      %202 = vmatpush.bf16.xpose.msra.mxu0 %v193
      %203 = vmatmul.bf16.gmra.mxu0 %v190
      %v204 = vpop.f32.mrf.mxu0
      %v205 = vadd.f32 0.0, %v204
      %v206 = vpop.f32.mrf.mxu0
      %207 = vdwg.mxu0
      %v208 = vsel %vm123, %v205, -1e+30
      %v209 = vsel %vm148, %v208, -inf
      %210 = vmax.xlane.f32.xlu0 %v209
      %v211 = vpop.xlane.xlu0 %210
      %v212 = vsub.f32 %v208, %v211
      %v213 = vmul.f32 %v212, 1.442695
      %v214 = vpow.pop %v213
      %v215 = vsel %vm148, %v214, 0.0
      %216 = vadd.xlane.f32.xlu0 %v215
      %v217 = vpop.xlane.xlu0 %216
      %v218 = vrcp.pop %v217
      %v219 = vmul.f32 %v214, %v218
      %v220 = vpack.c.bf16 %v219, %v219
      %v222 = vunpack.c.l.b16 %v117
      %v223 = vpack.c.b16 %v222, %v222
      %224 = vrot.lane.b32.xlu0 %v223, 96
      %v225 = vpop.permute.xlu0 %224
      %v227 = vsel %vm148, %v220, 0
      %v230 = vsel %vm164, %v225, 0
      %232 = vmatpush.bf16.msra.mxu0 0
      %233 = vmatpush.bf16.msra.mxu0 0
      %234 = vmatpush.bf16.msra.mxu0 0
      %235 = vmatpush.bf16.msra.mxu0 0
      %236 = vmatpush.bf16.msra.mxu0 0
      %237 = vmatpush.bf16.msra.mxu0 0
      %238 = vmatpush.bf16.msra.mxu0 0
      %239 = vmatpush.bf16.msra.mxu0 %v230
      %240 = vmatmul.bf16.gmra.mxu0 %v227
      %v241 = vpop.f32.mrf.mxu0
      %v242 = vadd.f32 0.0, %v241
      %v243 = vpop.f32.mrf.mxu0
      %244 = vdwg.mxu0
      %246 = vrot.lane.b32.xlu0 %v242, 32
      %v247 = vpop.permute.xlu0 %246
      %vm249 = vcmask 523520
      %250 = vst.msk [vmem:[#allocation2] sm:$0xff] %vm249, %v247
      %251 = vrot.lane.b32.xlu0 %v184, 64
      %v252 = vpop.permute.xlu0 %251
      %253 = vrot.lane.b32.xlu0 %v126, 64
      %v254 = vpop.permute.xlu0 %253
      %v256 = vsel %vm127, %v252, 0
      %v259 = vsel %vm127, %v254, 0
      %261 = vmatpush.bf16.xpose.msra.mxu0 0
      %262 = vmatpush.bf16.xpose.msra.mxu0 0
      %263 = vmatpush.bf16.xpose.msra.mxu0 0
      %264 = vmatpush.bf16.xpose.msra.mxu0 0
      %265 = vmatpush.bf16.xpose.msra.mxu0 0
      %266 = vmatpush.bf16.xpose.msra.mxu0 0
      %267 = vmatpush.bf16.xpose.msra.mxu0 0
      %268 = vmatpush.bf16.xpose.msra.mxu0 %v259
      %269 = vmatmul.bf16.gmra.mxu0 %v256
      %v270 = vpop.f32.mrf.mxu0
      %v271 = vadd.f32 0.0, %v270
      %v272 = vpop.f32.mrf.mxu0
      %273 = vdwg.mxu0
      %v274 = vsel %vm123, %v271, -1e+30
      %v275 = vsel %vm148, %v274, -inf
      %276 = vmax.xlane.f32.xlu0 %v275
      %v277 = vpop.xlane.xlu0 %276
      %v278 = vsub.f32 %v274, %v277
      %v279 = vmul.f32 %v278, 1.442695
      %v280 = vpow.pop %v279
      %v281 = vsel %vm148, %v280, 0.0
      %282 = vadd.xlane.f32.xlu0 %v281
      %v283 = vpop.xlane.xlu0 %282
      %v284 = vrcp.pop %v283
      %v285 = vmul.f32 %v280, %v284
      %v286 = vpack.c.bf16 %v285, %v285
      %287 = vrot.lane.b32.xlu0 %v223, 64
      %v288 = vpop.permute.xlu0 %287
      %v290 = vsel %vm148, %v286, 0
      %v293 = vsel %vm164, %v288, 0
      %295 = vmatpush.bf16.msra.mxu0 0
      %296 = vmatpush.bf16.msra.mxu0 0
      %297 = vmatpush.bf16.msra.mxu0 0
      %298 = vmatpush.bf16.msra.mxu0 0
      %299 = vmatpush.bf16.msra.mxu0 0
      %300 = vmatpush.bf16.msra.mxu0 0
      %301 = vmatpush.bf16.msra.mxu0 0
      %302 = vmatpush.bf16.msra.mxu0 %v293
      %303 = vmatmul.bf16.gmra.mxu0 %v290
      %v304 = vpop.f32.mrf.mxu0
      %v305 = vadd.f32 0.0, %v304
      %v306 = vpop.f32.mrf.mxu0
      %307 = vdwg.mxu0
      %309 = vrot.lane.b32.xlu0 %v305, 64
      %v310 = vpop.permute.xlu0 %309
      %vm312 = vcmask 785920
      %313 = vst.msk [vmem:[#allocation2] sm:$0xff] %vm312, %v310
      %314 = vrot.lane.b32.xlu0 %v184, 32
      %v315 = vpop.permute.xlu0 %314
      %316 = vrot.lane.b32.xlu0 %v126, 32
      %v317 = vpop.permute.xlu0 %316
      %v319 = vsel %vm127, %v315, 0
      %v322 = vsel %vm127, %v317, 0
      %324 = vmatpush.bf16.xpose.msra.mxu0 0
      %325 = vmatpush.bf16.xpose.msra.mxu0 0
      %326 = vmatpush.bf16.xpose.msra.mxu0 0
      %327 = vmatpush.bf16.xpose.msra.mxu0 0
      %328 = vmatpush.bf16.xpose.msra.mxu0 0
      %329 = vmatpush.bf16.xpose.msra.mxu0 0
      %330 = vmatpush.bf16.xpose.msra.mxu0 0
      %331 = vmatpush.bf16.xpose.msra.mxu0 %v322
      %332 = vmatmul.bf16.gmra.mxu0 %v319
      %v333 = vpop.f32.mrf.mxu0
      %v334 = vadd.f32 0.0, %v333
      %v335 = vpop.f32.mrf.mxu0
      %336 = vdwg.mxu0
      %v337 = vsel %vm123, %v334, -1e+30
      %v338 = vsel %vm148, %v337, -inf
      %339 = vmax.xlane.f32.xlu0 %v338
      %v340 = vpop.xlane.xlu0 %339
      %v341 = vsub.f32 %v337, %v340
      %v342 = vmul.f32 %v341, 1.442695
      %v343 = vpow.pop %v342
      %v344 = vsel %vm148, %v343, 0.0
      %345 = vadd.xlane.f32.xlu0 %v344
      %v346 = vpop.xlane.xlu0 %345
      %v347 = vrcp.pop %v346
      %v348 = vmul.f32 %v343, %v347
      %v349 = vpack.c.bf16 %v348, %v348
      %350 = vrot.lane.b32.xlu0 %v223, 32
      %v351 = vpop.permute.xlu0 %350
      %v353 = vsel %vm148, %v349, 0
      %v356 = vsel %vm164, %v351, 0
      %358 = vmatpush.bf16.msra.mxu0 0
      %359 = vmatpush.bf16.msra.mxu0 0
      %360 = vmatpush.bf16.msra.mxu0 0
      %361 = vmatpush.bf16.msra.mxu0 0
      %362 = vmatpush.bf16.msra.mxu0 0
      %363 = vmatpush.bf16.msra.mxu0 0
      %364 = vmatpush.bf16.msra.mxu0 0
      %365 = vmatpush.bf16.msra.mxu0 %v356
      %366 = vmatmul.bf16.gmra.mxu0 %v353
      %v367 = vpop.f32.mrf.mxu0
      %v368 = vadd.f32 0.0, %v367
      %v369 = vpop.f32.mrf.mxu0
      %370 = vdwg.mxu0
      %372 = vrot.lane.b32.xlu0 %v368, 96
      %v373 = vpop.permute.xlu0 %372
      %vm375 = vcmask 1048320
      %376 = vst.msk [vmem:[#allocation2] sm:$0xff] %vm375, %v373
      %v377 = vld [vmem:[#allocation2] sm:$0xff]
      %v378 = vpack.c.bf16 %v377, %v377
      %379 = vst [vmem:[%s114] sm:$0xf] %v378
      %p380 = scmp.lt.s32.totalorder %s12, 1
      %s381 = scalar_select %p380, %s12, 1
      %s382 = smul.addr %s381, 4
      %s383 = scalar_lea.vmem %s1, %s382
      // Predicated region
      $region25: #{vit_forward.14} parent=23 // pred_check
        %p384 = pneg %p56
      $region26: #{vit_forward.14} parent=23 // pred_check_branch
        %386 = sbr.rel (%p384) target = $region28
      $region27: #{vit_forward.14} parent=23 // pred_region
        _
      $region28: #{vit_forward.14} parent=23 // pred_fallthru
        _
    $region24: #{vit_forward.14} parent=5 // pred_fallthru
      _
    %p387 = scmp.le.s32.totalorder 2, %s7
    // Predicated region
    $region29: #{vit_forward.14} parent=5 // pred_check
      %p388 = pneg %p387
    $region30: #{vit_forward.14} parent=5 // pred_check_branch
      %390 = sbr.rel (%p388) target = $region32
    $region31: #{vit_forward.14} parent=5 // pred_region
      %s391 = ssub.s32 %s7, 2
      // Predicated region
      $region33: #{vit_forward.14} parent=31 // pred_check
        %p392 = pneg %p62
      $region34: #{vit_forward.14} parent=31 // pred_check_branch
        %394 = sbr.rel (%p392) target = $region36
      $region35: #{vit_forward.14} parent=31 // pred_region
        %p395 = scmp.lt.s32.totalorder %s13, 1
        %s396 = scalar_select %p395, %s13, 1
        %s397 = smul.addr %s396, 4
        %s398 = scalar_lea.vmem %s1, %s397
      $region36: #{vit_forward.14} parent=31 // pred_fallthru
        _
    $region32: #{vit_forward.14} parent=5 // pred_fallthru
      _
  $region6: #{vit_forward.14} parent=0 // loop_footer
    %s11 = sadd.s32 1, %s7
  $region7: #{vit_forward.14} parent=0 // loop_footer_branch
    %6 = sbr.rel target = $region3
  $region8: #{vit_forward.14} parent=0 // loop_exit
    _

// kernel: vit_forward.12
$region0: #{vit_forward.12}
  #allocation0 [shape = 'u32[]', space=smem, size = 0x4, offset = 0x4, fixed_abs, tag = 'smem constant byte address 0x4 - core index']
  #allocation1 [shape = 'u32[72,128]{1,0:T(1,128)}', space=vmem, size = 0x9000, scoped, tag = 'internal scratch']
  %s0 = inlined_call_operand.vmem [shape: bf16[8,192], index: 0, kind: input, shape index: {}]
  %s1 = inlined_call_operand.vmem [shape: bf16[192,128], index: 1, kind: input, shape index: {}]
  %s2 = inlined_call_operand.vmem [shape: bf16[8,128], index: 2, kind: output, shape index: {}]
  %s3 = sld [smem:[#allocation0]]
  $region18: #{vit_forward.12} parent=0
    _
  %s5 = ssub.s32 1, %s3
  %s6 = scalar_select 0, %s5, %s3
  // Predicated region
  $region2: #{vit_forward.12} parent=0 // pred_check
    _
  $region3: #{vit_forward.12} parent=0 // pred_check_branch
    %8 = sbr.rel (0) target = $region5
  $region4: #{vit_forward.12} parent=0 // pred_region
    _
  $region5: #{vit_forward.12} parent=0 // pred_fallthru
    _
  // Predicated region
  $region6: #{vit_forward.12} parent=0 // pred_check
    _
  $region7: #{vit_forward.12} parent=0 // pred_check_branch
    %10 = sbr.rel (0) target = $region9
  $region8: #{vit_forward.12} parent=0 // pred_region
    _
  $region9: #{vit_forward.12} parent=0 // pred_fallthru
    _
  %v12 = vld [vmem:[%s0] sm:$0xff]
  %v13 = vld [vmem:[%s1] sm:$0xf]
  %v14 = vld [vmem:[%s1 + $0x4] sm:$0xf]
  %v15 = vld [vmem:[%s1 + $0x8] sm:$0xf]
  %v16 = vld [vmem:[%s1 + $0xc] sm:$0xf]
  %v17 = vld [vmem:[%s1 + $0x10] sm:$0xf]
  %v18 = vld [vmem:[%s1 + $0x14] sm:$0xf]
  %v19 = vld [vmem:[%s1 + $0x18] sm:$0xf]
  %v20 = vld [vmem:[%s1 + $0x1c] sm:$0xf]
  %v21 = vld [vmem:[%s1 + $0x20] sm:$0xf]
  %v22 = vld [vmem:[%s1 + $0x24] sm:$0xf]
  %v23 = vld [vmem:[%s1 + $0x28] sm:$0xf]
  %v24 = vld [vmem:[%s1 + $0x2c] sm:$0xf]
  %v25 = vld [vmem:[%s1 + $0x30] sm:$0xf]
  %v26 = vld [vmem:[%s1 + $0x34] sm:$0xf]
  %v27 = vld [vmem:[%s1 + $0x38] sm:$0xf]
  %v28 = vld [vmem:[%s1 + $0x3c] sm:$0xf]
  %v29 = vld [vmem:[%s1 + $0x40] sm:$0xf]
  %v30 = vld [vmem:[%s1 + $0x44] sm:$0xf]
  %v31 = vld [vmem:[%s1 + $0x48] sm:$0xf]
  %v32 = vld [vmem:[%s1 + $0x4c] sm:$0xf]
  %v33 = vld [vmem:[%s1 + $0x50] sm:$0xf]
  %v34 = vld [vmem:[%s1 + $0x54] sm:$0xf]
  %v35 = vld [vmem:[%s1 + $0x58] sm:$0xf]
  %v36 = vld [vmem:[%s1 + $0x5c] sm:$0xf]
  %v38 = vunpack.c.l.b16 %v12
  %v39 = vunpack.c.h.b16 %v12
  %v40 = vpack.c.b16 %v38, %v38
  %v41 = vpack.c.b16 %v39, %v39
  %v67 = vunpack.c.l.b16 %v13
  %v68 = vunpack.c.l.b16 %v14
  %v69 = vunpack.c.l.b16 %v15
  %v70 = vunpack.c.l.b16 %v16
  %v71 = vunpack.c.l.b16 %v17
  %v72 = vunpack.c.l.b16 %v18
  %v73 = vunpack.c.l.b16 %v19
  %v74 = vunpack.c.l.b16 %v20
  %v75 = vunpack.c.l.b16 %v21
  %v76 = vunpack.c.l.b16 %v22
  %v77 = vunpack.c.l.b16 %v23
  %v78 = vunpack.c.l.b16 %v24
  %v79 = vunpack.c.l.b16 %v25
  %v80 = vunpack.c.l.b16 %v26
  %v81 = vunpack.c.l.b16 %v27
  %v82 = vunpack.c.l.b16 %v28
  %v83 = vunpack.c.l.b16 %v29
  %v84 = vunpack.c.l.b16 %v30
  %v85 = vunpack.c.l.b16 %v31
  %v86 = vunpack.c.l.b16 %v32
  %v87 = vunpack.c.l.b16 %v33
  %v88 = vunpack.c.l.b16 %v34
  %v89 = vunpack.c.l.b16 %v35
  %v90 = vunpack.c.l.b16 %v36
  %v91 = vpack.c.b16 %v68, %v67
  %v92 = vpack.c.b16 %v70, %v69
  %v93 = vpack.c.b16 %v72, %v71
  %v94 = vpack.c.b16 %v74, %v73
  %v95 = vpack.c.b16 %v76, %v75
  %v96 = vpack.c.b16 %v78, %v77
  %v97 = vpack.c.b16 %v80, %v79
  %v98 = vpack.c.b16 %v82, %v81
  %v99 = vpack.c.b16 %v84, %v83
  %v100 = vpack.c.b16 %v86, %v85
  %v101 = vpack.c.b16 %v88, %v87
  %v102 = vpack.c.b16 %v90, %v89
  %vm115 = vcmask 523264
  %v117 = vsel %vm115, %v41, 0
  %119 = vmatpush.bf16.msra.mxu0 %v98
  %120 = vmatpush.bf16.msra.mxu0 %v97
  %121 = vmatpush.bf16.msra.mxu0 %v96
  %122 = vmatpush.bf16.msra.mxu0 %v95
  %123 = vmatpush.bf16.msra.mxu0 %v94
  %124 = vmatpush.bf16.msra.mxu0 %v93
  %125 = vmatpush.bf16.msra.mxu0 %v92
  %126 = vmatpush.bf16.msra.mxu0 %v91
  %127 = vmatmul.bf16.gmra.mxu0 %v40
  %v128 = vpop.f32.mrf.mxu0
  %v129 = vadd.f32 0.0, %v128
  %v130 = vpop.f32.mrf.mxu0
  %131 = vdwg.mxu0
  %132 = vmatpush.bf16.msra.mxu0 0
  %133 = vmatpush.bf16.msra.mxu0 0
  %134 = vmatpush.bf16.msra.mxu0 0
  %135 = vmatpush.bf16.msra.mxu0 0
  %136 = vmatpush.bf16.msra.mxu0 %v102
  %137 = vmatpush.bf16.msra.mxu0 %v101
  %138 = vmatpush.bf16.msra.mxu0 %v100
  %139 = vmatpush.bf16.msra.mxu0 %v99
  %140 = vmatmul.bf16.gmra.mxu0 %v117
  %v141 = vpop.f32.mrf.mxu0
  %v142 = vadd.f32 %v129, %v141
  %v143 = vpop.f32.mrf.mxu0
  %144 = vdwg.mxu0
  %v145 = vpack.c.bf16 %v142, %v142
  %146 = vst [vmem:[%s2] sm:$0xf] %v145
  // Predicated region
  $region10: #{vit_forward.12} parent=0 // pred_check
    _
  $region11: #{vit_forward.12} parent=0 // pred_check_branch
    %148 = sbr.rel (0) target = $region13
  $region12: #{vit_forward.12} parent=0 // pred_region
    _
  $region13: #{vit_forward.12} parent=0 // pred_fallthru
    _
  // Predicated region
  $region14: #{vit_forward.12} parent=0 // pred_check
    _
  $region15: #{vit_forward.12} parent=0 // pred_check_branch
    %150 = sbr.rel (0) target = $region17
  $region16: #{vit_forward.12} parent=0 // pred_region
    _
  $region17: #{vit_forward.12} parent=0 // pred_fallthru
    _

// kernel: vit_forward.13
$region0: #{vit_forward.13}
  #allocation0 [shape = 'u32[]', space=smem, size = 0x4, offset = 0x4, fixed_abs, tag = 'smem constant byte address 0x4 - core index']
  #allocation1 [shape = 'u32[72,128]{1,0:T(1,128)}', space=vmem, size = 0x9000, scoped, tag = 'internal scratch']
  %s0 = inlined_call_operand.vmem [shape: bf16[16,128], index: 0, kind: input, shape index: {}]
  %s1 = inlined_call_operand.vmem [shape: bf16[128,384], index: 1, kind: input, shape index: {}]
  %s2 = inlined_call_operand.vmem [shape: f32[1,128], index: 2, kind: input, shape index: {}]
  %s3 = inlined_call_operand.vmem [shape: f32[1,128], index: 3, kind: input, shape index: {}]
  %s4 = inlined_call_operand.vmem [shape: bf16[16,384], index: 4, kind: output, shape index: {}]
  %s5 = sld [smem:[#allocation0]]
  $region26: #{vit_forward.13} parent=0
    _
  %s7 = ssub.s32 1, %s5
  %s8 = scalar_select 0, %s7, %s5
  // Predicated region
  $region2: #{vit_forward.13} parent=0 // pred_check
    _
  $region3: #{vit_forward.13} parent=0 // pred_check_branch
    %10 = sbr.rel (0) target = $region5
  $region4: #{vit_forward.13} parent=0 // pred_region
    _
  $region5: #{vit_forward.13} parent=0 // pred_fallthru
    _
  // Predicated region
  $region6: #{vit_forward.13} parent=0 // pred_check
    _
  $region7: #{vit_forward.13} parent=0 // pred_check_branch
    %12 = sbr.rel (0) target = $region9
  $region8: #{vit_forward.13} parent=0 // pred_region
    _
  $region9: #{vit_forward.13} parent=0 // pred_fallthru
    _
  // Predicated region
  $region10: #{vit_forward.13} parent=0 // pred_check
    _
  $region11: #{vit_forward.13} parent=0 // pred_check_branch
    %14 = sbr.rel (0) target = $region13
  $region12: #{vit_forward.13} parent=0 // pred_region
    _
  $region13: #{vit_forward.13} parent=0 // pred_fallthru
    _
  // Predicated region
  $region14: #{vit_forward.13} parent=0 // pred_check
    _
  $region15: #{vit_forward.13} parent=0 // pred_check_branch
    %16 = sbr.rel (0) target = $region17
  $region16: #{vit_forward.13} parent=0 // pred_region
    _
  $region17: #{vit_forward.13} parent=0 // pred_fallthru
    _
  %v17 = vld [vmem:[%s0] sm:$0xf]
  %v18 = vld [vmem:[%s0 + $0x4] sm:$0xf]
  %v19 = vunpack.c.l.bf16 %v17
  %v20 = vunpack.c.l.bf16 %v18
  %21 = vadd.xlane.f32.xlu0 %v19
  %v22 = vpop.xlane.xlu0 %21
  %23 = vadd.xlane.f32.xlu0 %v20
  %v24 = vpop.xlane.xlu0 %23
  %v25 = vrcp.pop 128.0
  %v26 = vmul.f32 128.0, %v25
  %v27 = vsub.f32 1.0, %v26
  %v28 = vmul.f32 %v25, %v27
  %v29 = vadd.f32 %v25, %v28
  %vm30 = vweird.f32 %v25
  %v31 = vsel %vm30, %v25, %v29
  %v32 = vmul.f32 %v22, %v31
  %v33 = vmul.f32 %v24, %v31
  %v34 = vsub.f32 %v19, %v32
  %v35 = vsub.f32 %v20, %v33
  %v36 = vmul.f32 %v34, %v34
  %v37 = vmul.f32 %v35, %v35
  %38 = vadd.xlane.f32.xlu0 %v36
  %v39 = vpop.xlane.xlu0 %38
  %40 = vadd.xlane.f32.xlu0 %v37
  %v41 = vpop.xlane.xlu0 %40
  %v42 = vmul.f32 %v39, %v31
  %v43 = vmul.f32 %v41, %v31
  %v44 = vadd.f32 %v42, 1e-05
  %v45 = vadd.f32 %v43, 1e-05
  %v46 = vrsqrt.pop %v44
  %v47 = vmul.f32 %v46, %v44
  %v48 = vmul.f32 %v47, %v46
  %v49 = vmul.f32 0.5, %v48
  %v50 = vsub.f32 1.5, %v49
  %v51 = vmul.f32 %v46, %v50
  %vm52 = vweird.f32 %v44
  %vm53 = vweird.f32 %v46
  %vm54 = vmor %vm52, %vm53
  %v55 = vsel %vm54, %v46, %v51
  %v56 = vrsqrt.pop %v45
  %v57 = vmul.f32 %v56, %v45
  %v58 = vmul.f32 %v57, %v56
  %v59 = vmul.f32 0.5, %v58
  %v60 = vsub.f32 1.5, %v59
  %v61 = vmul.f32 %v56, %v60
  %vm62 = vweird.f32 %v45
  %vm63 = vweird.f32 %v56
  %vm64 = vmor %vm62, %vm63
  %v65 = vsel %vm64, %v56, %v61
  %v66 = vmul.f32 %v34, %v55
  %v67 = vmul.f32 %v35, %v65
  %v68 = vld [vmem:[%s2] sm:$0x1]
  %v70 = vperm.slane %v68, 0
  %v72 = vmul.f32 %v66, %v70
  %v73 = vmul.f32 %v67, %v70
  %v74 = vld [vmem:[%s3] sm:$0x1]
  %v76 = vperm.slane %v74, 0
  %v78 = vadd.f32 %v72, %v76
  %v79 = vadd.f32 %v73, %v76
  %v80 = vpack.c.bf16 %v79, %v78
  %v81 = vld [vmem:[%s1] sm:$0xff]
  %v82 = vld [vmem:[%s1 + $0x8] sm:$0xf]
  %v83 = vld [vmem:[%s1 + $0xc] sm:$0xff]
  %v84 = vld [vmem:[%s1 + $0x14] sm:$0xf]
  %v85 = vld [vmem:[%s1 + $0x18] sm:$0xff]
  %v86 = vld [vmem:[%s1 + $0x20] sm:$0xf]
  %v87 = vld [vmem:[%s1 + $0x24] sm:$0xff]
  %v88 = vld [vmem:[%s1 + $0x2c] sm:$0xf]
  %v89 = vld [vmem:[%s1 + $0x30] sm:$0xff]
  %v90 = vld [vmem:[%s1 + $0x38] sm:$0xf]
  %v91 = vld [vmem:[%s1 + $0x3c] sm:$0xff]
  %v92 = vld [vmem:[%s1 + $0x44] sm:$0xf]
  %v93 = vld [vmem:[%s1 + $0x48] sm:$0xff]
  %v94 = vld [vmem:[%s1 + $0x50] sm:$0xf]
  %v95 = vld [vmem:[%s1 + $0x54] sm:$0xff]
  %v96 = vld [vmem:[%s1 + $0x5c] sm:$0xf]
  %v97 = vld [vmem:[%s1 + $0x60] sm:$0xff]
  %v98 = vld [vmem:[%s1 + $0x68] sm:$0xf]
  %v99 = vld [vmem:[%s1 + $0x6c] sm:$0xff]
  %v100 = vld [vmem:[%s1 + $0x74] sm:$0xf]
  %v101 = vld [vmem:[%s1 + $0x78] sm:$0xff]
  %v102 = vld [vmem:[%s1 + $0x80] sm:$0xf]
  %v103 = vld [vmem:[%s1 + $0x84] sm:$0xff]
  %v104 = vld [vmem:[%s1 + $0x8c] sm:$0xf]
  %v105 = vld [vmem:[%s1 + $0x90] sm:$0xff]
  %v106 = vld [vmem:[%s1 + $0x98] sm:$0xf]
  %v107 = vld [vmem:[%s1 + $0x9c] sm:$0xff]
  %v108 = vld [vmem:[%s1 + $0xa4] sm:$0xf]
  %v109 = vld [vmem:[%s1 + $0xa8] sm:$0xff]
  %v110 = vld [vmem:[%s1 + $0xb0] sm:$0xf]
  %v111 = vld [vmem:[%s1 + $0xb4] sm:$0xff]
  %v112 = vld [vmem:[%s1 + $0xbc] sm:$0xf]
  %v145 = vunpack.c.l.b16 %v81
  %v146 = vunpack.c.h.b16 %v81
  %v147 = vunpack.c.l.b16 %v82
  %v148 = vunpack.c.l.b16 %v83
  %v149 = vunpack.c.h.b16 %v83
  %v150 = vunpack.c.l.b16 %v84
  %v151 = vunpack.c.l.b16 %v85
  %v152 = vunpack.c.h.b16 %v85
  %v153 = vunpack.c.l.b16 %v86
  %v154 = vunpack.c.l.b16 %v87
  %v155 = vunpack.c.h.b16 %v87
  %v156 = vunpack.c.l.b16 %v88
  %v157 = vunpack.c.l.b16 %v89
  %v158 = vunpack.c.h.b16 %v89
  %v159 = vunpack.c.l.b16 %v90
  %v160 = vunpack.c.l.b16 %v91
  %v161 = vunpack.c.h.b16 %v91
  %v162 = vunpack.c.l.b16 %v92
  %v163 = vunpack.c.l.b16 %v93
  %v164 = vunpack.c.h.b16 %v93
  %v165 = vunpack.c.l.b16 %v94
  %v166 = vunpack.c.l.b16 %v95
  %v167 = vunpack.c.h.b16 %v95
  %v168 = vunpack.c.l.b16 %v96
  %v169 = vunpack.c.l.b16 %v97
  %v170 = vunpack.c.h.b16 %v97
  %v171 = vunpack.c.l.b16 %v98
  %v172 = vunpack.c.l.b16 %v99
  %v173 = vunpack.c.h.b16 %v99
  %v174 = vunpack.c.l.b16 %v100
  %v175 = vunpack.c.l.b16 %v101
  %v176 = vunpack.c.h.b16 %v101
  %v177 = vunpack.c.l.b16 %v102
  %v178 = vunpack.c.l.b16 %v103
  %v179 = vunpack.c.h.b16 %v103
  %v180 = vunpack.c.l.b16 %v104
  %v181 = vunpack.c.l.b16 %v105
  %v182 = vunpack.c.h.b16 %v105
  %v183 = vunpack.c.l.b16 %v106
  %v184 = vunpack.c.l.b16 %v107
  %v185 = vunpack.c.h.b16 %v107
  %v186 = vunpack.c.l.b16 %v108
  %v187 = vunpack.c.l.b16 %v109
  %v188 = vunpack.c.h.b16 %v109
  %v189 = vunpack.c.l.b16 %v110
  %v190 = vunpack.c.l.b16 %v111
  %v191 = vunpack.c.h.b16 %v111
  %v192 = vunpack.c.l.b16 %v112
  %v193 = vpack.c.b16 %v148, %v145
  %v194 = vpack.c.b16 %v149, %v146
  %v195 = vpack.c.b16 %v150, %v147
  %v196 = vpack.c.b16 %v154, %v151
  %v197 = vpack.c.b16 %v155, %v152
  %v198 = vpack.c.b16 %v156, %v153
  %v199 = vpack.c.b16 %v160, %v157
  %v200 = vpack.c.b16 %v161, %v158
  %v201 = vpack.c.b16 %v162, %v159
  %v202 = vpack.c.b16 %v166, %v163
  %v203 = vpack.c.b16 %v167, %v164
  %v204 = vpack.c.b16 %v168, %v165
  %v205 = vpack.c.b16 %v172, %v169
  %v206 = vpack.c.b16 %v173, %v170
  %v207 = vpack.c.b16 %v174, %v171
  %v208 = vpack.c.b16 %v178, %v175
  %v209 = vpack.c.b16 %v179, %v176
  %v210 = vpack.c.b16 %v180, %v177
  %v211 = vpack.c.b16 %v184, %v181
  %v212 = vpack.c.b16 %v185, %v182
  %v213 = vpack.c.b16 %v186, %v183
  %v214 = vpack.c.b16 %v190, %v187
  %v215 = vpack.c.b16 %v191, %v188
  %v216 = vpack.c.b16 %v192, %v189
  %241 = vmatpush.bf16.msra.mxu0 %v214
  %242 = vmatpush.bf16.msra.mxu0 %v211
  %243 = vmatpush.bf16.msra.mxu0 %v208
  %244 = vmatpush.bf16.msra.mxu0 %v205
  %245 = vmatpush.bf16.msra.mxu0 %v202
  %246 = vmatpush.bf16.msra.mxu0 %v199
  %247 = vmatpush.bf16.msra.mxu0 %v196
  %248 = vmatpush.bf16.msra.mxu0 %v193
  %249 = vmatmul.bf16.gmra.mxu0 %v80
  %v250 = vpop.f32.mrf.mxu0
  %v251 = vadd.f32 0.0, %v250
  %v252 = vpop.f32.mrf.mxu0
  %v253 = vadd.f32 0.0, %v252
  %254 = vdwg.mxu0
  %255 = vmatpush.bf16.msra.mxu0 %v215
  %256 = vmatpush.bf16.msra.mxu0 %v212
  %257 = vmatpush.bf16.msra.mxu0 %v209
  %258 = vmatpush.bf16.msra.mxu0 %v206
  %259 = vmatpush.bf16.msra.mxu0 %v203
  %260 = vmatpush.bf16.msra.mxu0 %v200
  %261 = vmatpush.bf16.msra.mxu0 %v197
  %262 = vmatpush.bf16.msra.mxu0 %v194
  %263 = vmatmul.bf16.gmra.mxu0 %v80
  %v264 = vpop.f32.mrf.mxu0
  %v265 = vadd.f32 0.0, %v264
  %v266 = vpop.f32.mrf.mxu0
  %v267 = vadd.f32 0.0, %v266
  %268 = vdwg.mxu0
  %269 = vmatpush.bf16.msra.mxu0 %v216
  %270 = vmatpush.bf16.msra.mxu0 %v213
  %271 = vmatpush.bf16.msra.mxu0 %v210
  %272 = vmatpush.bf16.msra.mxu0 %v207
  %273 = vmatpush.bf16.msra.mxu0 %v204
  %274 = vmatpush.bf16.msra.mxu0 %v201
  %275 = vmatpush.bf16.msra.mxu0 %v198
  %276 = vmatpush.bf16.msra.mxu0 %v195
  %277 = vmatmul.bf16.gmra.mxu0 %v80
  %v278 = vpop.f32.mrf.mxu0
  %v279 = vadd.f32 0.0, %v278
  %v280 = vpop.f32.mrf.mxu0
  %v281 = vadd.f32 0.0, %v280
  %282 = vdwg.mxu0
  %v283 = vpack.c.bf16 %v265, %v251
  %v284 = vpack.c.bf16 %v279, %v279
  %v285 = vpack.c.bf16 %v267, %v253
  %v286 = vpack.c.bf16 %v281, %v281
  %287 = vst [vmem:[%s4] sm:$0xff] %v283
  %288 = vst [vmem:[%s4 + $0x8] sm:$0xf] %v284
  %289 = vst [vmem:[%s4 + $0xc] sm:$0xff] %v285
  %290 = vst [vmem:[%s4 + $0x14] sm:$0xf] %v286
  // Predicated region
  $region18: #{vit_forward.13} parent=0 // pred_check
    _
  $region19: #{vit_forward.13} parent=0 // pred_check_branch
    %292 = sbr.rel (0) target = $region21
  $region20: #{vit_forward.13} parent=0 // pred_region
    _
  $region21: #{vit_forward.13} parent=0 // pred_fallthru
    _
  // Predicated region
  $region22: #{vit_forward.13} parent=0 // pred_check
    _
  $region23: #{vit_forward.13} parent=0 // pred_check_branch
    %294 = sbr.rel (0) target = $region25
  $region24: #{vit_forward.13} parent=0 // pred_region
    _
  $region25: #{vit_forward.13} parent=0 // pred_fallthru
    _

// kernel: vit_forward.15
$region0: #{vit_forward.15}
  #allocation0 [shape = 'u32[]', space=smem, size = 0x4, offset = 0x4, fixed_abs, tag = 'smem constant byte address 0x4 - core index']
  #allocation1 [shape = 'u32[72,128]{1,0:T(1,128)}', space=vmem, size = 0x9000, scoped, tag = 'internal scratch']
  %s0 = inlined_call_operand.vmem [shape: bf16[16,128], index: 0, kind: input, shape index: {}]
  %s1 = inlined_call_operand.vmem [shape: bf16[128,128], index: 1, kind: input, shape index: {}]
  %s2 = inlined_call_operand.vmem [shape: f32[1,128], index: 2, kind: input, shape index: {}]
  %s3 = inlined_call_operand.vmem [shape: bf16[16,128], index: 3, kind: input, shape index: {}]
  %s4 = inlined_call_operand.vmem [shape: bf16[16,128], index: 4, kind: output, shape index: {}]
  %s5 = sld [smem:[#allocation0]]
  $region26: #{vit_forward.15} parent=0
    _
  %s7 = ssub.s32 1, %s5
  %s8 = scalar_select 0, %s7, %s5
  // Predicated region
  $region2: #{vit_forward.15} parent=0 // pred_check
    _
  $region3: #{vit_forward.15} parent=0 // pred_check_branch
    %10 = sbr.rel (0) target = $region5
  $region4: #{vit_forward.15} parent=0 // pred_region
    _
  $region5: #{vit_forward.15} parent=0 // pred_fallthru
    _
  // Predicated region
  $region6: #{vit_forward.15} parent=0 // pred_check
    _
  $region7: #{vit_forward.15} parent=0 // pred_check_branch
    %12 = sbr.rel (0) target = $region9
  $region8: #{vit_forward.15} parent=0 // pred_region
    _
  $region9: #{vit_forward.15} parent=0 // pred_fallthru
    _
  // Predicated region
  $region10: #{vit_forward.15} parent=0 // pred_check
    _
  $region11: #{vit_forward.15} parent=0 // pred_check_branch
    %14 = sbr.rel (0) target = $region13
  $region12: #{vit_forward.15} parent=0 // pred_region
    _
  $region13: #{vit_forward.15} parent=0 // pred_fallthru
    _
  // Predicated region
  $region14: #{vit_forward.15} parent=0 // pred_check
    _
  $region15: #{vit_forward.15} parent=0 // pred_check_branch
    %16 = sbr.rel (0) target = $region17
  $region16: #{vit_forward.15} parent=0 // pred_region
    _
  $region17: #{vit_forward.15} parent=0 // pred_fallthru
    _
  %v17 = vld [vmem:[%s0] sm:$0xf]
  %v18 = vld [vmem:[%s0 + $0x4] sm:$0xf]
  %v19 = vld [vmem:[%s1] sm:$0xf]
  %v20 = vld [vmem:[%s1 + $0x4] sm:$0xf]
  %v21 = vld [vmem:[%s1 + $0x8] sm:$0xf]
  %v22 = vld [vmem:[%s1 + $0xc] sm:$0xf]
  %v23 = vld [vmem:[%s1 + $0x10] sm:$0xf]
  %v24 = vld [vmem:[%s1 + $0x14] sm:$0xf]
  %v25 = vld [vmem:[%s1 + $0x18] sm:$0xf]
  %v26 = vld [vmem:[%s1 + $0x1c] sm:$0xf]
  %v27 = vld [vmem:[%s1 + $0x20] sm:$0xf]
  %v28 = vld [vmem:[%s1 + $0x24] sm:$0xf]
  %v29 = vld [vmem:[%s1 + $0x28] sm:$0xf]
  %v30 = vld [vmem:[%s1 + $0x2c] sm:$0xf]
  %v31 = vld [vmem:[%s1 + $0x30] sm:$0xf]
  %v32 = vld [vmem:[%s1 + $0x34] sm:$0xf]
  %v33 = vld [vmem:[%s1 + $0x38] sm:$0xf]
  %v34 = vld [vmem:[%s1 + $0x3c] sm:$0xf]
  %v35 = vld [vmem:[%s2] sm:$0x1]
  %v37 = vperm.slane %v35, 0
  %v41 = vunpack.c.l.b16 %v17
  %v42 = vunpack.c.l.b16 %v18
  %v43 = vpack.c.b16 %v42, %v41
  %v61 = vunpack.c.l.b16 %v19
  %v62 = vunpack.c.l.b16 %v20
  %v63 = vunpack.c.l.b16 %v21
  %v64 = vunpack.c.l.b16 %v22
  %v65 = vunpack.c.l.b16 %v23
  %v66 = vunpack.c.l.b16 %v24
  %v67 = vunpack.c.l.b16 %v25
  %v68 = vunpack.c.l.b16 %v26
  %v69 = vunpack.c.l.b16 %v27
  %v70 = vunpack.c.l.b16 %v28
  %v71 = vunpack.c.l.b16 %v29
  %v72 = vunpack.c.l.b16 %v30
  %v73 = vunpack.c.l.b16 %v31
  %v74 = vunpack.c.l.b16 %v32
  %v75 = vunpack.c.l.b16 %v33
  %v76 = vunpack.c.l.b16 %v34
  %v77 = vpack.c.b16 %v62, %v61
  %v78 = vpack.c.b16 %v64, %v63
  %v79 = vpack.c.b16 %v66, %v65
  %v80 = vpack.c.b16 %v68, %v67
  %v81 = vpack.c.b16 %v70, %v69
  %v82 = vpack.c.b16 %v72, %v71
  %v83 = vpack.c.b16 %v74, %v73
  %v84 = vpack.c.b16 %v76, %v75
  %93 = vmatpush.bf16.msra.mxu0 %v84
  %94 = vmatpush.bf16.msra.mxu0 %v83
  %95 = vmatpush.bf16.msra.mxu0 %v82
  %96 = vmatpush.bf16.msra.mxu0 %v81
  %97 = vmatpush.bf16.msra.mxu0 %v80
  %98 = vmatpush.bf16.msra.mxu0 %v79
  %99 = vmatpush.bf16.msra.mxu0 %v78
  %100 = vmatpush.bf16.msra.mxu0 %v77
  %101 = vmatmul.bf16.gmra.mxu0 %v43
  %v102 = vpop.f32.mrf.mxu0
  %v103 = vadd.f32 %v37, %v102
  %v104 = vpop.f32.mrf.mxu0
  %v105 = vadd.f32 %v37, %v104
  %106 = vdwg.mxu0
  %v107 = vld [vmem:[%s3] sm:$0xf]
  %v108 = vld [vmem:[%s3 + $0x4] sm:$0xf]
  %v109 = vunpack.c.l.bf16 %v107
  %v110 = vunpack.c.l.bf16 %v108
  %v111 = vadd.f32 %v103, %v109
  %v112 = vadd.f32 %v105, %v110
  %v113 = vpack.c.bf16 %v111, %v111
  %v114 = vpack.c.bf16 %v112, %v112
  %115 = vst [vmem:[%s4] sm:$0xf] %v113
  %116 = vst [vmem:[%s4 + $0x4] sm:$0xf] %v114
  // Predicated region
  $region18: #{vit_forward.15} parent=0 // pred_check
    _
  $region19: #{vit_forward.15} parent=0 // pred_check_branch
    %118 = sbr.rel (0) target = $region21
  $region20: #{vit_forward.15} parent=0 // pred_region
    _
  $region21: #{vit_forward.15} parent=0 // pred_fallthru
    _
  // Predicated region
  $region22: #{vit_forward.15} parent=0 // pred_check
    _
  $region23: #{vit_forward.15} parent=0 // pred_check_branch
    %120 = sbr.rel (0) target = $region25
  $region24: #{vit_forward.15} parent=0 // pred_region
    _
  $region25: #{vit_forward.15} parent=0 // pred_fallthru
    _

// kernel: vit_forward.23
$region0: #{vit_forward.23}
  #allocation0 [shape = 'u32[]', space=smem, size = 0x4, offset = 0x4, fixed_abs, tag = 'smem constant byte address 0x4 - core index']
  #allocation1 [shape = 'u32[72,128]{1,0:T(1,128)}', space=vmem, size = 0x9000, scoped, tag = 'internal scratch']
  %s0 = inlined_call_operand.vmem [shape: f32[2,128], index: 0, kind: input, shape index: {}]
  %s1 = inlined_call_operand.vmem [shape: f32[1,128], index: 1, kind: input, shape index: {}]
  %s2 = inlined_call_operand.vmem [shape: f32[1,128], index: 2, kind: input, shape index: {}]
  %s3 = inlined_call_operand.vmem [shape: f32[2,128], index: 3, kind: output, shape index: {}]
  %s4 = sld [smem:[#allocation0]]
  $region22: #{vit_forward.23} parent=0
    _
  %s6 = ssub.s32 1, %s4
  %s7 = scalar_select 0, %s6, %s4
  // Predicated region
  $region2: #{vit_forward.23} parent=0 // pred_check
    _
  $region3: #{vit_forward.23} parent=0 // pred_check_branch
    %9 = sbr.rel (0) target = $region5
  $region4: #{vit_forward.23} parent=0 // pred_region
    _
  $region5: #{vit_forward.23} parent=0 // pred_fallthru
    _
  // Predicated region
  $region6: #{vit_forward.23} parent=0 // pred_check
    _
  $region7: #{vit_forward.23} parent=0 // pred_check_branch
    %11 = sbr.rel (0) target = $region9
  $region8: #{vit_forward.23} parent=0 // pred_region
    _
  $region9: #{vit_forward.23} parent=0 // pred_fallthru
    _
  // Predicated region
  $region10: #{vit_forward.23} parent=0 // pred_check
    _
  $region11: #{vit_forward.23} parent=0 // pred_check_branch
    %13 = sbr.rel (0) target = $region13
  $region12: #{vit_forward.23} parent=0 // pred_region
    _
  $region13: #{vit_forward.23} parent=0 // pred_fallthru
    _
  %v14 = vld [vmem:[%s0] sm:$0x3]
  %vm15 = vcmask 1041408
  %v16 = vsel %vm15, %v14, 0.0
  %17 = vadd.xlane.f32.xlu0 %v16
  %v18 = vpop.xlane.xlu0 %17
  %v19 = vrcp.pop 128.0
  %v20 = vmul.f32 128.0, %v19
  %v21 = vsub.f32 1.0, %v20
  %v22 = vmul.f32 %v19, %v21
  %v23 = vadd.f32 %v19, %v22
  %vm24 = vweird.f32 %v19
  %v25 = vsel %vm24, %v19, %v23
  %v26 = vmul.f32 %v18, %v25
  %v27 = vsub.f32 %v14, %v26
  %v28 = vmul.f32 %v27, %v27
  %v29 = vsel %vm15, %v28, 0.0
  %30 = vadd.xlane.f32.xlu0 %v29
  %v31 = vpop.xlane.xlu0 %30
  %v32 = vmul.f32 %v31, %v25
  %v33 = vadd.f32 %v32, 1e-05
  %v34 = vrsqrt.pop %v33
  %v35 = vmul.f32 %v34, %v33
  %v36 = vmul.f32 %v35, %v34
  %v37 = vmul.f32 0.5, %v36
  %v38 = vsub.f32 1.5, %v37
  %v39 = vmul.f32 %v34, %v38
  %vm40 = vweird.f32 %v33
  %vm41 = vweird.f32 %v34
  %vm42 = vmor %vm40, %vm41
  %v43 = vsel %vm42, %v34, %v39
  %v44 = vmul.f32 %v27, %v43
  %v45 = vld [vmem:[%s1] sm:$0x1]
  %v47 = vperm.slane %v45, 0
  %v49 = vmul.f32 %v44, %v47
  %v50 = vld [vmem:[%s2] sm:$0x1]
  %v52 = vperm.slane %v50, 0
  %v54 = vadd.f32 %v49, %v52
  %55 = vst [vmem:[%s3] sm:$0x3] %v54
  // Predicated region
  $region14: #{vit_forward.23} parent=0 // pred_check
    _
  $region15: #{vit_forward.23} parent=0 // pred_check_branch
    %57 = sbr.rel (0) target = $region17
  $region16: #{vit_forward.23} parent=0 // pred_region
    _
  $region17: #{vit_forward.23} parent=0 // pred_fallthru
    _
  // Predicated region
  $region18: #{vit_forward.23} parent=0 // pred_check
    _
  $region19: #{vit_forward.23} parent=0 // pred_check_branch
    %59 = sbr.rel (0) target = $region21
  $region20: #{vit_forward.23} parent=0 // pred_region
    _
  $region21: #{vit_forward.23} parent=0 // pred_fallthru
    _

// kernel: vit_forward.17
$region0: #{vit_forward.17}
  #allocation0 [shape = 'u32[]', space=smem, size = 0x4, offset = 0x4, fixed_abs, tag = 'smem constant byte address 0x4 - core index']
  #allocation1 [shape = 'u32[72,128]{1,0:T(1,128)}', space=vmem, size = 0x9000, scoped, tag = 'internal scratch']
  #allocation2 [shape = 'f32[16,128]{1,0:T(8,128)}', space=vmem, size = 0x2000, scoped, tag = 'scratch operand']
  %s0 = inlined_call_operand.vmem [shape: bf16[16,768], index: 0, kind: input, shape index: {}]
  %s1 = inlined_call_operand.vmem [shape: bf16[768,128], index: 1, kind: input, shape index: {}]
  %s2 = inlined_call_operand.vmem [shape: f32[1,128], index: 2, kind: input, shape index: {}]
  %s3 = inlined_call_operand.vmem [shape: bf16[16,128], index: 3, kind: input, shape index: {}]
  %s4 = inlined_call_operand.vmem [shape: bf16[16,128], index: 4, kind: output, shape index: {}]
  %s5 = sld [smem:[#allocation0]]
  $region83: #{vit_forward.17} parent=0
    _
  %s7 = ssub.s32 1, %s5
  %s8 = scalar_select 0, %s7, %s5
  $region1: #{vit_forward.17} parent=0
    #allocation3 [shape = 'u8[24576]{0}', space=vmem, size = 0x6000, scoped, tag = 'input window, operand 0']
    loop: start=0, step=1, limit=4
    $region2: #{vit_forward.17} parent=1 // loop_pre_header
      _
    $region3: #{vit_forward.17} parent=1 // loop_header
      %s10 = sphi 0, %s14
      %p11 = scmp.ge.s32.totalorder %s10, 4
      %s17 = sphi 0, %s36
      %s18 = sphi 0, %s32
      %s19 = sphi 0, %s28
      %s20 = sphi 0, %s17
      %s21 = sphi 0, %s18
      %s22 = sphi 0, %s19
      %s23 = sphi 0, %s20
      %s24 = sphi 0, %s21
      %s25 = sphi 0, %s22
      %s41 = sphi 0, %s43
      %s44 = sphi 0, %s41
      %s45 = sphi 0, %s44
      %s61 = sphi 0, %s45
      %s69 = sphi 0, %s71
      %s72 = sphi 0, %s69
      %s73 = sphi 0, %s72
      %s89 = sphi 0, %s73
      %s95 = sphi 0, %s97
      %s98 = sphi 0, %s95
      %s99 = sphi 0, %s98
      %s115 = sphi 0, %s99
      %s123 = sphi 0, %s125
      %s126 = sphi 0, %s123
      %s127 = sphi 0, %s126
      %s143 = sphi 0, %s127
      %s151 = sphi 0, %s153
      %s154 = sphi 0, %s151
      %s155 = sphi 0, %s154
      %s171 = sphi 0, %s155
    $region4: #{vit_forward.17} parent=1 // loop_header_branch
      %13 = sbr.rel (%p11) target = $region8
    $region5: #{vit_forward.17} parent=1 // loop_body
      %s15 = ssub.s32 %s10, 1
      %s16 = ssub.s32 %s10, 2
      %s26 = sadd.s32 1, %s19
      %p27 = scmp.ge.s32.totalorder %s26, 2
      %s28 = scalar_select %p27, 0, %s26
      %s29 = sadd.s32 1, %s18
      %s30 = scalar_select %p27, %s29, %s18
      %p31 = scmp.ge.s32.totalorder %s30, 1
      %s32 = scalar_select %p31, 0, %s30
      %s33 = sadd.s32 1, %s17
      %s34 = scalar_select %p31, %s33, %s17
      %p35 = scmp.ge.s32.totalorder %s34, 1
      %s36 = scalar_select %p35, 0, %s34
      %s37 = ssub.s32 %s17, %s36
      %s38 = ssub.s32 %s19, %s28
      %s39 = sor.u32 %s37, %s38
      %p40 = scmp.eq.s32.totalorder %s39, 0
      %s42 = sadd.s32 %s41, 1
      %s43 = scalar_select %p40, %s41, %s42
      %p46 = pneg %p40
      %p47 = scmp.eq.s32.totalorder %s10, 1
      %p48 = por %p46, %p47
      %p49 = scmp.ne.s32.totalorder %s41, %s44
      %p50 = scmp.eq.s32.totalorder %s10, 0
      %p51 = por %p49, %p50
      %p52 = scmp.ne.s32.totalorder %s41, %s44
      %p53 = scmp.eq.s32.totalorder %s15, 1
      %p54 = por %p52, %p53
      %p55 = scmp.ne.s32.totalorder %s44, %s45
      %p56 = scmp.eq.s32.totalorder %s15, 0
      %p57 = por %p55, %p56
      %p58 = scmp.ne.s32.totalorder %s44, %s45
      %p59 = scmp.eq.s32.totalorder %s16, 1
      %p60 = por %p58, %p59
      %p62 = scmp.ne.s32.totalorder %s45, %s61
      %p63 = scmp.eq.s32.totalorder %s16, 0
      %p64 = por %p62, %p63
      %s65 = ssub.s32 %s19, %s28
      %s66 = ssub.s32 %s18, %s32
      %s67 = sor.u32 %s65, %s66
      %p68 = scmp.eq.s32.totalorder %s67, 0
      %s70 = sadd.s32 %s69, 1
      %s71 = scalar_select %p68, %s69, %s70
      %p74 = pneg %p68
      %p75 = scmp.eq.s32.totalorder %s10, 1
      %p76 = por %p74, %p75
      %p77 = scmp.ne.s32.totalorder %s69, %s72
      %p78 = scmp.eq.s32.totalorder %s10, 0
      %p79 = por %p77, %p78
      %p80 = scmp.ne.s32.totalorder %s69, %s72
      %p81 = scmp.eq.s32.totalorder %s15, 1
      %p82 = por %p80, %p81
      %p83 = scmp.ne.s32.totalorder %s72, %s73
      %p84 = scmp.eq.s32.totalorder %s15, 0
      %p85 = por %p83, %p84
      %p86 = scmp.ne.s32.totalorder %s72, %s73
      %p87 = scmp.eq.s32.totalorder %s16, 1
      %p88 = por %p86, %p87
      %p90 = scmp.ne.s32.totalorder %s73, %s89
      %p91 = scmp.eq.s32.totalorder %s16, 0
      %p92 = por %p90, %p91
      %s93 = ssub.s32 %s18, %s32
      %p94 = scmp.eq.s32.totalorder %s93, 0
      %s96 = sadd.s32 %s95, 1
      %s97 = scalar_select %p94, %s95, %s96
      %p100 = pneg %p94
      %p101 = scmp.eq.s32.totalorder %s10, 1
      %p102 = por %p100, %p101
      %p103 = scmp.ne.s32.totalorder %s95, %s98
      %p104 = scmp.eq.s32.totalorder %s10, 0
      %p105 = por %p103, %p104
      %p106 = scmp.ne.s32.totalorder %s95, %s98
      %p107 = scmp.eq.s32.totalorder %s15, 1
      %p108 = por %p106, %p107
      %p109 = scmp.ne.s32.totalorder %s98, %s99
      %p110 = scmp.eq.s32.totalorder %s15, 0
      %p111 = por %p109, %p110
      %p112 = scmp.ne.s32.totalorder %s98, %s99
      %p113 = scmp.eq.s32.totalorder %s16, 1
      %p114 = por %p112, %p113
      %p116 = scmp.ne.s32.totalorder %s99, %s115
      %p117 = scmp.eq.s32.totalorder %s16, 0
      %p118 = por %p116, %p117
      %s119 = ssub.s32 %s17, %s36
      %s120 = ssub.s32 %s18, %s32
      %s121 = sor.u32 %s119, %s120
      %p122 = scmp.eq.s32.totalorder %s121, 0
      %s124 = sadd.s32 %s123, 1
      %s125 = scalar_select %p122, %s123, %s124
      %p128 = pneg %p122
      %p129 = scmp.eq.s32.totalorder %s10, 1
      %p130 = por %p128, %p129
      %p131 = scmp.ne.s32.totalorder %s123, %s126
      %p132 = scmp.eq.s32.totalorder %s10, 0
      %p133 = por %p131, %p132
      %p134 = scmp.ne.s32.totalorder %s123, %s126
      %p135 = scmp.eq.s32.totalorder %s15, 1
      %p136 = por %p134, %p135
      %p137 = scmp.ne.s32.totalorder %s126, %s127
      %p138 = scmp.eq.s32.totalorder %s15, 0
      %p139 = por %p137, %p138
      %p140 = scmp.ne.s32.totalorder %s126, %s127
      %p141 = scmp.eq.s32.totalorder %s16, 1
      %p142 = por %p140, %p141
      %p144 = scmp.ne.s32.totalorder %s127, %s143
      %p145 = scmp.eq.s32.totalorder %s16, 0
      %p146 = por %p144, %p145
      %s147 = ssub.s32 %s17, %s36
      %s148 = ssub.s32 %s18, %s32
      %s149 = sor.u32 %s147, %s148
      %p150 = scmp.eq.s32.totalorder %s149, 0
      %s152 = sadd.s32 %s151, 1
      %s153 = scalar_select %p150, %s151, %s152
      %p156 = pneg %p150
      %p157 = scmp.eq.s32.totalorder %s10, 1
      %p158 = por %p156, %p157
      %p159 = scmp.ne.s32.totalorder %s151, %s154
      %p160 = scmp.eq.s32.totalorder %s10, 0
      %p161 = por %p159, %p160
      %p162 = scmp.ne.s32.totalorder %s151, %s154
      %p163 = scmp.eq.s32.totalorder %s15, 1
      %p164 = por %p162, %p163
      %p165 = scmp.ne.s32.totalorder %s154, %s155
      %p166 = scmp.eq.s32.totalorder %s15, 0
      %p167 = por %p165, %p166
      %p168 = scmp.ne.s32.totalorder %s154, %s155
      %p169 = scmp.eq.s32.totalorder %s16, 1
      %p170 = por %p168, %p169
      %p172 = scmp.ne.s32.totalorder %s155, %s171
      %p173 = scmp.eq.s32.totalorder %s16, 0
      %p174 = por %p172, %p173
      %p175 = scmp.le.s32.totalorder 1, %s10
      %p176 = scmp.lt.s32.totalorder %s10, 3
      %p177 = pnand %p175, %p176
      %p178 = pneg %p177
      // Predicated region
      $region9: #{vit_forward.17} parent=5 // pred_check
        _
      $region10: #{vit_forward.17} parent=5 // pred_check_branch
        %180 = sbr.rel (%p177) target = $region12
      $region11: #{vit_forward.17} parent=5 // pred_region
        %s181 = ssub.s32 %s10, 1
        // Predicated region
        $region13: #{vit_forward.17} parent=11 // pred_check
          %p182 = pneg %p111
        $region14: #{vit_forward.17} parent=11 // pred_check_branch
          %184 = sbr.rel (%p182) target = $region16
        $region15: #{vit_forward.17} parent=11 // pred_region
          %p185 = scmp.lt.s32.totalorder %s21, 0
          %s186 = scalar_select %p185, %s21, 0
          %s187 = scalar_lea.vmem %s2, %s186
        $region16: #{vit_forward.17} parent=11 // pred_fallthru
          _
        // Predicated region
        $region17: #{vit_forward.17} parent=11 // pred_check
          %p188 = pneg %p139
        $region18: #{vit_forward.17} parent=11 // pred_check_branch
          %190 = sbr.rel (%p188) target = $region20
        $region19: #{vit_forward.17} parent=11 // pred_region
          %s191 = smul.u32 2, %s20
          %p192 = scmp.lt.s32.totalorder %s191, 1
          %s193 = scalar_select %p192, %s191, 1
          %p194 = scmp.lt.s32.totalorder %s21, 0
          %s195 = scalar_select %p194, %s21, 0
          %s196 = sadd.s32 %s195, %s193
          %s197 = smul.addr %s196, 4
          %s198 = scalar_lea.vmem %s3, %s197
          %s199 = smul.u32 2, %s20
        $region20: #{vit_forward.17} parent=11 // pred_fallthru
          _
      $region12: #{vit_forward.17} parent=5 // pred_fallthru
        _
      %p200 = scmp.lt.s32.totalorder %s10, 2
      // Predicated region
      $region21: #{vit_forward.17} parent=5 // pred_check
        %p201 = pneg %p200
      $region22: #{vit_forward.17} parent=5 // pred_check_branch
        %203 = sbr.rel (%p201) target = $region24
      $region23: #{vit_forward.17} parent=5 // pred_region
        // Predicated region
        $region25: #{vit_forward.17} parent=23 // pred_check
          %p204 = pneg %p51
        $region26: #{vit_forward.17} parent=23 // pred_check_branch
          %206 = sbr.rel (%p204) target = $region28
        $region27: #{vit_forward.17} parent=23 // pred_region
          %s207 = sand.u32 %s41, 1
          %s208 = sand.u32 %s41, 1
          %s209 = smul.addr %s208, 24
          %s210 = scalar_lea.vmem [#allocation3], %s209
          %s211 = smul.u32 2, %s17
          %s212 = smul.u32 3, %s19
          %s213 = smul.addr %s211, 6
          %s214 = sadd.s32 %s212, %s213
          %s215 = smul.addr %s214, 4
          %s216 = scalar_lea.vmem %s0, %s215
          // Predicated region
          $region29: #{vit_forward.17} parent=27 // pred_check
            _
          $region30: #{vit_forward.17} parent=27 // pred_check_branch
            %218 = sbr.rel (0) target = $region32
          $region31: #{vit_forward.17} parent=27 // pred_region
            // Predicated region
            $region33: #{vit_forward.17} parent=31 // pred_check
              _
            $region34: #{vit_forward.17} parent=31 // pred_check_branch
              %220 = sbr.rel (0) target = $region36
            $region35: #{vit_forward.17} parent=31 // pred_region
              %s221 = scalar_lea.vmem %s216, 8
              %s222 = scalar_lea.vmem %s210, 8 [#allocation3]
              loop: start=0, step=1, limit=1
              $region37: #{vit_forward.17} parent=35 // loop_pre_header
                _
              $region38: #{vit_forward.17} parent=35 // loop_header
                %s224 = sphi 0, %s228
                %p225 = scmp.ge.s32.totalorder %s224, 1
                %s229 = sphi %s216, %s216
                %s230 = sphi %s210, %s210
              $region39: #{vit_forward.17} parent=35 // loop_header_branch
                %227 = sbr.rel (%p225) target = $region43
              $region40: #{vit_forward.17} parent=35 // loop_body
                %v231 = vld [vmem:[%s229] sm:$0xff]
                %232 = vst [vmem:[%s230] sm:$0xff] %v231
                %v233 = vld [vmem:[%s229 + $0x18] sm:$0xff]
                %234 = vst [vmem:[%s230 + $0xc] sm:$0xff] %v233
              $region41: #{vit_forward.17} parent=35 // loop_footer
                %s228 = sadd.s32 1, %s224
              $region42: #{vit_forward.17} parent=35 // loop_footer_branch
                %223 = sbr.rel target = $region38
              $region43: #{vit_forward.17} parent=35 // loop_exit
                _
              %s236 = ssub.s32 16, 1
              loop: start=0, step=1, limit=1
              $region44: #{vit_forward.17} parent=35 // loop_pre_header
                _
              $region45: #{vit_forward.17} parent=35 // loop_header
                %s238 = sphi 0, %s242
                %p239 = scmp.ge.s32.totalorder %s238, 1
                %s243 = sphi %s221, %s221
                %s244 = sphi %s222, %s222
              $region46: #{vit_forward.17} parent=35 // loop_header_branch
                %241 = sbr.rel (%p239) target = $region50
              $region47: #{vit_forward.17} parent=35 // loop_body
                %v245 = vld [vmem:[%s243] sm:%s236]
                %246 = vst [vmem:[%s244] sm:%s236] %v245
                %v247 = vld [vmem:[%s243 + $0x18] sm:%s236]
                %248 = vst [vmem:[%s244 + $0xc] sm:%s236] %v247
              $region48: #{vit_forward.17} parent=35 // loop_footer
                %s242 = sadd.s32 1, %s238
              $region49: #{vit_forward.17} parent=35 // loop_footer_branch
                %237 = sbr.rel target = $region45
              $region50: #{vit_forward.17} parent=35 // loop_exit
                _
            $region36: #{vit_forward.17} parent=31 // pred_fallthru
              _
          $region32: #{vit_forward.17} parent=27 // pred_fallthru
            _
          %249 = vnop
        $region28: #{vit_forward.17} parent=23 // pred_fallthru
          _
        // Predicated region
        $region51: #{vit_forward.17} parent=23 // pred_check
          %p250 = pneg %p79
        $region52: #{vit_forward.17} parent=23 // pred_check_branch
          %252 = sbr.rel (%p250) target = $region54
        $region53: #{vit_forward.17} parent=23 // pred_region
          %s253 = smul.u32 48, %s19
          %p254 = scmp.lt.s32.totalorder %s253, 95
          %s255 = scalar_select %p254, %s253, 95
          %p256 = scmp.lt.s32.totalorder %s18, 0
          %s257 = scalar_select %p256, %s18, 0
          %s258 = sadd.s32 %s257, %s255
          %s259 = smul.addr %s258, 4
          %s260 = scalar_lea.vmem %s1, %s259
          %s261 = smul.u32 48, %s19
        $region54: #{vit_forward.17} parent=23 // pred_fallthru
          _
      $region24: #{vit_forward.17} parent=5 // pred_fallthru
        _
      %p262 = scmp.le.s32.totalorder 1, %s10
      %p263 = scmp.lt.s32.totalorder %s10, 3
      %p264 = pnand %p262, %p263
      %p265 = pneg %p264
      // Predicated region
      $region55: #{vit_forward.17} parent=5 // pred_check
        _
      $region56: #{vit_forward.17} parent=5 // pred_check_branch
        %267 = sbr.rel (%p264) target = $region58
      $region57: #{vit_forward.17} parent=5 // pred_region
        %s268 = ssub.s32 %s10, 1
        %s269 = sand.u32 %s44, 1
        %s270 = sand.u32 %s44, 1
        %s271 = smul.addr %s270, 24
        %s272 = scalar_lea.vmem [#allocation3], %s271
        // Predicated region
        $region59: #{vit_forward.17} parent=57 // pred_check
          %p273 = pneg %p57
        $region60: #{vit_forward.17} parent=57 // pred_check_branch
          %275 = sbr.rel (%p273) target = $region62
        $region61: #{vit_forward.17} parent=57 // pred_region
          _
        $region62: #{vit_forward.17} parent=57 // pred_fallthru
          _
        %s276 = sand.u32 %s44, 1
        %s277 = sand.u32 %s44, 1
        %s278 = smul.addr %s277, 24
        %s279 = scalar_lea.vmem [#allocation3], %s278
        %p280 = pneg %p57
        %p281 = pneg %p54
        %s282 = smul.u32 48, %s22
        %p283 = scmp.lt.s32.totalorder %s282, 95
        %s284 = scalar_select %p283, %s282, 95
        %p285 = scmp.lt.s32.totalorder %s21, 0
        %s286 = scalar_select %p285, %s21, 0
        %s287 = sadd.s32 %s286, %s284
        %s288 = smul.addr %s287, 4
        %s289 = scalar_lea.vmem %s1, %s288
        %p290 = pneg %p85
        %p291 = pneg %p82
        %p292 = scmp.lt.s32.totalorder %s21, 0
        %s293 = scalar_select %p292, %s21, 0
        %s294 = scalar_lea.vmem %s2, %s293
        %p295 = pneg %p111
        %p296 = pneg %p108
        %s297 = smul.u32 2, %s20
        %p298 = scmp.lt.s32.totalorder %s297, 1
        %s299 = scalar_select %p298, %s297, 1
        %p300 = scmp.lt.s32.totalorder %s21, 0
        %s301 = scalar_select %p300, %s21, 0
        %s302 = sadd.s32 %s301, %s299
        %s303 = smul.addr %s302, 4
        %s304 = scalar_lea.vmem %s3, %s303
        %p305 = pneg %p139
        %p306 = pneg %p136
        %p307 = pneg %p167
        %p308 = pneg %p164
        %s309 = smul.u32 2, %s20
        %p310 = scmp.lt.s32.totalorder %s309, 1
        %s311 = scalar_select %p310, %s309, 1
        %p312 = scmp.lt.s32.totalorder %s21, 0
        %s313 = scalar_select %p312, %s21, 0
        %s314 = sadd.s32 %s313, %s311
        %s315 = smul.addr %s314, 4
        %s316 = scalar_lea.vmem %s4, %s315
        %s317 = smul.u32 2, %s20
        %s318 = smul.u32 3, %s22
        %s319 = smul.u32 48, %s22
        %p320 = scmp.lt.s32.totalorder %s319, 95
        %s321 = scalar_select %p320, %s319, 95
        %p322 = scmp.lt.s32.totalorder %s21, 0
        %s323 = scalar_select %p322, %s21, 0
        %s324 = sadd.s32 %s323, %s321
        %s325 = smul.addr %s324, 4
        %s326 = scalar_lea.vmem %s1, %s325
        %s327 = smul.u32 48, %s22
        %p328 = scmp.lt.s32.totalorder %s21, 0
        %s329 = scalar_select %p328, %s21, 0
        %s330 = scalar_lea.vmem %s2, %s329
        %s331 = smul.u32 2, %s20
        %p332 = scmp.lt.s32.totalorder %s331, 1
        %s333 = scalar_select %p332, %s331, 1
        %p334 = scmp.lt.s32.totalorder %s21, 0
        %s335 = scalar_select %p334, %s21, 0
        %s336 = sadd.s32 %s335, %s333
        %s337 = smul.addr %s336, 4
        %s338 = scalar_lea.vmem %s3, %s337
        %s339 = smul.u32 2, %s20
        %s340 = smul.u32 2, %s20
        %p341 = scmp.lt.s32.totalorder %s340, 1
        %s342 = scalar_select %p341, %s340, 1
        %p343 = scmp.lt.s32.totalorder %s21, 0
        %s344 = scalar_select %p343, %s21, 0
        %s345 = sadd.s32 %s344, %s342
        %s346 = smul.addr %s345, 4
        %s347 = scalar_lea.vmem %s4, %s346
        %s348 = smul.u32 2, %s20
        %v349 = vld [vmem:[%s272] sm:$0xff]
        %v350 = vld [vmem:[%s272 + $0x8] sm:$0xf]
        %v351 = vld [vmem:[%s272 + $0xc] sm:$0xff]
        %v352 = vld [vmem:[%s272 + $0x14] sm:$0xf]
        %p353 = scmp.eq.s32.totalorder %s22, 0
        // Predicated region
        $region63: #{vit_forward.17} parent=57 // pred_check
          %p354 = pneg %p353
        $region64: #{vit_forward.17} parent=57 // pred_check_branch
          %356 = sbr.rel (%p354) target = $region66
        $region65: #{vit_forward.17} parent=57 // pred_region
          %357 = vst [vmem:[#allocation2] sm:$0xff] 0.0
          %358 = vst [vmem:[#allocation2 + $0x8] sm:$0xff] 0.0
        $region66: #{vit_forward.17} parent=57 // pred_fallthru
          _
        %v359 = vld [vmem:[#allocation2] sm:$0xff]
        %v360 = vld [vmem:[#allocation2 + $0x8] sm:$0xff]
        %v361 = vld [vmem:[%s326] sm:$0xf]
        %v362 = vld [vmem:[%s326 + $0x4] sm:$0xf]
        %v363 = vld [vmem:[%s326 + $0x8] sm:$0xf]
        %v364 = vld [vmem:[%s326 + $0xc] sm:$0xf]
        %v365 = vld [vmem:[%s326 + $0x10] sm:$0xf]
        %v366 = vld [vmem:[%s326 + $0x14] sm:$0xf]
        %v367 = vld [vmem:[%s326 + $0x18] sm:$0xf]
        %v368 = vld [vmem:[%s326 + $0x1c] sm:$0xf]
        %v369 = vld [vmem:[%s326 + $0x20] sm:$0xf]
        %v370 = vld [vmem:[%s326 + $0x24] sm:$0xf]
        %v371 = vld [vmem:[%s326 + $0x28] sm:$0xf]
        %v372 = vld [vmem:[%s326 + $0x2c] sm:$0xf]
        %v373 = vld [vmem:[%s326 + $0x30] sm:$0xf]
        %v374 = vld [vmem:[%s326 + $0x34] sm:$0xf]
        %v375 = vld [vmem:[%s326 + $0x38] sm:$0xf]
        %v376 = vld [vmem:[%s326 + $0x3c] sm:$0xf]
        %v377 = vld [vmem:[%s326 + $0x40] sm:$0xf]
        %v378 = vld [vmem:[%s326 + $0x44] sm:$0xf]
        %v379 = vld [vmem:[%s326 + $0x48] sm:$0xf]
        %v380 = vld [vmem:[%s326 + $0x4c] sm:$0xf]
        %v381 = vld [vmem:[%s326 + $0x50] sm:$0xf]
        %v382 = vld [vmem:[%s326 + $0x54] sm:$0xf]
        %v383 = vld [vmem:[%s326 + $0x58] sm:$0xf]
        %v384 = vld [vmem:[%s326 + $0x5c] sm:$0xf]
        %v385 = vld [vmem:[%s326 + $0x60] sm:$0xf]
        %v386 = vld [vmem:[%s326 + $0x64] sm:$0xf]
        %v387 = vld [vmem:[%s326 + $0x68] sm:$0xf]
        %v388 = vld [vmem:[%s326 + $0x6c] sm:$0xf]
        %v389 = vld [vmem:[%s326 + $0x70] sm:$0xf]
        %v390 = vld [vmem:[%s326 + $0x74] sm:$0xf]
        %v391 = vld [vmem:[%s326 + $0x78] sm:$0xf]
        %v392 = vld [vmem:[%s326 + $0x7c] sm:$0xf]
        %v393 = vld [vmem:[%s326 + $0x80] sm:$0xf]
        %v394 = vld [vmem:[%s326 + $0x84] sm:$0xf]
        %v395 = vld [vmem:[%s326 + $0x88] sm:$0xf]
        %v396 = vld [vmem:[%s326 + $0x8c] sm:$0xf]
        %v397 = vld [vmem:[%s326 + $0x90] sm:$0xf]
        %v398 = vld [vmem:[%s326 + $0x94] sm:$0xf]
        %v399 = vld [vmem:[%s326 + $0x98] sm:$0xf]
        %v400 = vld [vmem:[%s326 + $0x9c] sm:$0xf]
        %v401 = vld [vmem:[%s326 + $0xa0] sm:$0xf]
        %v402 = vld [vmem:[%s326 + $0xa4] sm:$0xf]
        %v403 = vld [vmem:[%s326 + $0xa8] sm:$0xf]
        %v404 = vld [vmem:[%s326 + $0xac] sm:$0xf]
        %v405 = vld [vmem:[%s326 + $0xb0] sm:$0xf]
        %v406 = vld [vmem:[%s326 + $0xb4] sm:$0xf]
        %v407 = vld [vmem:[%s326 + $0xb8] sm:$0xf]
        %v408 = vld [vmem:[%s326 + $0xbc] sm:$0xf]
        %v413 = vunpack.c.l.b16 %v349
        %v414 = vunpack.c.h.b16 %v349
        %v415 = vunpack.c.l.b16 %v350
        %v416 = vunpack.c.l.b16 %v351
        %v417 = vunpack.c.h.b16 %v351
        %v418 = vunpack.c.l.b16 %v352
        %v419 = vpack.c.b16 %v416, %v413
        %v420 = vpack.c.b16 %v417, %v414
        %v421 = vpack.c.b16 %v418, %v415
        %v473 = vunpack.c.l.b16 %v361
        %v474 = vunpack.c.l.b16 %v362
        %v475 = vunpack.c.l.b16 %v363
        %v476 = vunpack.c.l.b16 %v364
        %v477 = vunpack.c.l.b16 %v365
        %v478 = vunpack.c.l.b16 %v366
        %v479 = vunpack.c.l.b16 %v367
        %v480 = vunpack.c.l.b16 %v368
        %v481 = vunpack.c.l.b16 %v369
        %v482 = vunpack.c.l.b16 %v370
        %v483 = vunpack.c.l.b16 %v371
        %v484 = vunpack.c.l.b16 %v372
        %v485 = vunpack.c.l.b16 %v373
        %v486 = vunpack.c.l.b16 %v374
        %v487 = vunpack.c.l.b16 %v375
        %v488 = vunpack.c.l.b16 %v376
        %v489 = vunpack.c.l.b16 %v377
        %v490 = vunpack.c.l.b16 %v378
        %v491 = vunpack.c.l.b16 %v379
        %v492 = vunpack.c.l.b16 %v380
        %v493 = vunpack.c.l.b16 %v381
        %v494 = vunpack.c.l.b16 %v382
        %v495 = vunpack.c.l.b16 %v383
        %v496 = vunpack.c.l.b16 %v384
        %v497 = vunpack.c.l.b16 %v385
        %v498 = vunpack.c.l.b16 %v386
        %v499 = vunpack.c.l.b16 %v387
        %v500 = vunpack.c.l.b16 %v388
        %v501 = vunpack.c.l.b16 %v389
        %v502 = vunpack.c.l.b16 %v390
        %v503 = vunpack.c.l.b16 %v391
        %v504 = vunpack.c.l.b16 %v392
        %v505 = vunpack.c.l.b16 %v393
        %v506 = vunpack.c.l.b16 %v394
        %v507 = vunpack.c.l.b16 %v395
        %v508 = vunpack.c.l.b16 %v396
        %v509 = vunpack.c.l.b16 %v397
        %v510 = vunpack.c.l.b16 %v398
        %v511 = vunpack.c.l.b16 %v399
        %v512 = vunpack.c.l.b16 %v400
        %v513 = vunpack.c.l.b16 %v401
        %v514 = vunpack.c.l.b16 %v402
        %v515 = vunpack.c.l.b16 %v403
        %v516 = vunpack.c.l.b16 %v404
        %v517 = vunpack.c.l.b16 %v405
        %v518 = vunpack.c.l.b16 %v406
        %v519 = vunpack.c.l.b16 %v407
        %v520 = vunpack.c.l.b16 %v408
        %v521 = vpack.c.b16 %v474, %v473
        %v522 = vpack.c.b16 %v476, %v475
        %v523 = vpack.c.b16 %v478, %v477
        %v524 = vpack.c.b16 %v480, %v479
        %v525 = vpack.c.b16 %v482, %v481
        %v526 = vpack.c.b16 %v484, %v483
        %v527 = vpack.c.b16 %v486, %v485
        %v528 = vpack.c.b16 %v488, %v487
        %v529 = vpack.c.b16 %v490, %v489
        %v530 = vpack.c.b16 %v492, %v491
        %v531 = vpack.c.b16 %v494, %v493
        %v532 = vpack.c.b16 %v496, %v495
        %v533 = vpack.c.b16 %v498, %v497
        %v534 = vpack.c.b16 %v500, %v499
        %v535 = vpack.c.b16 %v502, %v501
        %v536 = vpack.c.b16 %v504, %v503
        %v537 = vpack.c.b16 %v506, %v505
        %v538 = vpack.c.b16 %v508, %v507
        %v539 = vpack.c.b16 %v510, %v509
        %v540 = vpack.c.b16 %v512, %v511
        %v541 = vpack.c.b16 %v514, %v513
        %v542 = vpack.c.b16 %v516, %v515
        %v543 = vpack.c.b16 %v518, %v517
        %v544 = vpack.c.b16 %v520, %v519
        %569 = vmatpush.bf16.msra.mxu0 %v528
        %570 = vmatpush.bf16.msra.mxu0 %v527
        %571 = vmatpush.bf16.msra.mxu0 %v526
        %572 = vmatpush.bf16.msra.mxu0 %v525
        %573 = vmatpush.bf16.msra.mxu0 %v524
        %574 = vmatpush.bf16.msra.mxu0 %v523
        %575 = vmatpush.bf16.msra.mxu0 %v522
        %576 = vmatpush.bf16.msra.mxu0 %v521
        %577 = vmatmul.bf16.gmra.mxu0 %v419
        %v578 = vpop.f32.mrf.mxu0
        %v579 = vadd.f32 0.0, %v578
        %v580 = vpop.f32.mrf.mxu0
        %v581 = vadd.f32 0.0, %v580
        %582 = vdwg.mxu0
        %583 = vmatpush.bf16.msra.mxu0 %v536
        %584 = vmatpush.bf16.msra.mxu0 %v535
        %585 = vmatpush.bf16.msra.mxu0 %v534
        %586 = vmatpush.bf16.msra.mxu0 %v533
        %587 = vmatpush.bf16.msra.mxu0 %v532
        %588 = vmatpush.bf16.msra.mxu0 %v531
        %589 = vmatpush.bf16.msra.mxu0 %v530
        %590 = vmatpush.bf16.msra.mxu0 %v529
        %591 = vmatmul.bf16.gmra.mxu0 %v420
        %v592 = vpop.f32.mrf.mxu0
        %v593 = vadd.f32 %v579, %v592
        %v594 = vpop.f32.mrf.mxu0
        %v595 = vadd.f32 %v581, %v594
        %596 = vdwg.mxu0
        %597 = vmatpush.bf16.msra.mxu0 %v544
        %598 = vmatpush.bf16.msra.mxu0 %v543
        %599 = vmatpush.bf16.msra.mxu0 %v542
        %600 = vmatpush.bf16.msra.mxu0 %v541
        %601 = vmatpush.bf16.msra.mxu0 %v540
        %602 = vmatpush.bf16.msra.mxu0 %v539
        %603 = vmatpush.bf16.msra.mxu0 %v538
        %604 = vmatpush.bf16.msra.mxu0 %v537
        %605 = vmatmul.bf16.gmra.mxu0 %v421
        %v606 = vpop.f32.mrf.mxu0
        %v607 = vadd.f32 %v593, %v606
        %v608 = vpop.f32.mrf.mxu0
        %v609 = vadd.f32 %v595, %v608
        %610 = vdwg.mxu0
        %v611 = vadd.f32 %v359, %v607
        %v612 = vadd.f32 %v360, %v609
        %613 = vst [vmem:[#allocation2] sm:$0xff] %v611
        %614 = vst [vmem:[#allocation2 + $0x8] sm:$0xff] %v612
        %p615 = scmp.eq.s32.totalorder %s22, 1
        // Predicated region
        $region67: #{vit_forward.17} parent=57 // pred_check
          %p616 = pneg %p615
        $region68: #{vit_forward.17} parent=57 // pred_check_branch
          %618 = sbr.rel (%p616) target = $region70
        $region69: #{vit_forward.17} parent=57 // pred_region
          %v619 = vld [vmem:[#allocation2] sm:$0xff]
          %v620 = vld [vmem:[#allocation2 + $0x8] sm:$0xff]
          %v621 = vld [vmem:[%s330] sm:$0x1]
          %v623 = vperm.slane %v621, 0
          %v625 = vadd.f32 %v619, %v623
          %v626 = vadd.f32 %v620, %v623
          %v627 = vld [vmem:[%s338] sm:$0xf]
          %v628 = vld [vmem:[%s338 + $0x4] sm:$0xf]
          %v629 = vunpack.c.l.bf16 %v627
          %v630 = vunpack.c.l.bf16 %v628
          %v631 = vadd.f32 %v625, %v629
          %v632 = vadd.f32 %v626, %v630
          %v633 = vpack.c.bf16 %v631, %v631
          %v634 = vpack.c.bf16 %v632, %v632
          %635 = vst [vmem:[%s347] sm:$0xf] %v633
          %636 = vst [vmem:[%s347 + $0x4] sm:$0xf] %v634
        $region70: #{vit_forward.17} parent=57 // pred_fallthru
          _
        %s637 = smul.u32 2, %s20
        %p638 = scmp.lt.s32.totalorder %s637, 1
        %s639 = scalar_select %p638, %s637, 1
        %p640 = scmp.lt.s32.totalorder %s21, 0
        %s641 = scalar_select %p640, %s21, 0
        %s642 = sadd.s32 %s641, %s639
        %s643 = smul.addr %s642, 4
        %s644 = scalar_lea.vmem %s4, %s643
        // Predicated region
        $region71: #{vit_forward.17} parent=57 // pred_check
          %p645 = pneg %p164
        $region72: #{vit_forward.17} parent=57 // pred_check_branch
          %647 = sbr.rel (%p645) target = $region74
        $region73: #{vit_forward.17} parent=57 // pred_region
          %s648 = smul.u32 2, %s20
        $region74: #{vit_forward.17} parent=57 // pred_fallthru
          _
        // Predicated region
        $region75: #{vit_forward.17} parent=57 // pred_check
          %p649 = pneg %p164
        $region76: #{vit_forward.17} parent=57 // pred_check_branch
          %651 = sbr.rel (%p649) target = $region78
        $region77: #{vit_forward.17} parent=57 // pred_region
          %s652 = smul.u32 2, %s20
          %p653 = scmp.lt.s32.totalorder %s652, 1
          %s654 = scalar_select %p653, %s652, 1
          %p655 = scmp.lt.s32.totalorder %s21, 0
          %s656 = scalar_select %p655, %s21, 0
          %s657 = sadd.s32 %s656, %s654
          %s658 = smul.addr %s657, 4
          %s659 = scalar_lea.vmem %s4, %s658
        $region78: #{vit_forward.17} parent=57 // pred_fallthru
          _
      $region58: #{vit_forward.17} parent=5 // pred_fallthru
        _
      %p660 = scmp.le.s32.totalorder 2, %s10
      // Predicated region
      $region79: #{vit_forward.17} parent=5 // pred_check
        %p661 = pneg %p660
      $region80: #{vit_forward.17} parent=5 // pred_check_branch
        %663 = sbr.rel (%p661) target = $region82
      $region81: #{vit_forward.17} parent=5 // pred_region
        %s664 = ssub.s32 %s10, 2
      $region82: #{vit_forward.17} parent=5 // pred_fallthru
        _
    $region6: #{vit_forward.17} parent=1 // loop_footer
      %s14 = sadd.s32 1, %s10
    $region7: #{vit_forward.17} parent=1 // loop_footer_branch
      %9 = sbr.rel target = $region3
    $region8: #{vit_forward.17} parent=1 // loop_exit
      _

// kernel: vit_forward.16
$region0: #{vit_forward.16}
  #allocation0 [shape = 'u32[]', space=smem, size = 0x4, offset = 0x4, fixed_abs, tag = 'smem constant byte address 0x4 - core index']
  #allocation1 [shape = 'u32[72,128]{1,0:T(1,128)}', space=vmem, size = 0x9000, scoped, tag = 'internal scratch']
  %s0 = inlined_call_operand.vmem [shape: bf16[16,128], index: 0, kind: input, shape index: {}]
  %s1 = inlined_call_operand.vmem [shape: bf16[128,768], index: 1, kind: input, shape index: {}]
  %s2 = inlined_call_operand.vmem [shape: f32[1,128], index: 2, kind: input, shape index: {}]
  %s3 = inlined_call_operand.vmem [shape: f32[1,128], index: 3, kind: input, shape index: {}]
  %s4 = inlined_call_operand.vmem [shape: f32[1,768], index: 4, kind: input, shape index: {}]
  %s5 = inlined_call_operand.vmem [shape: bf16[16,768], index: 5, kind: output, shape index: {}]
  %s6 = sld [smem:[#allocation0]]
  $region30: #{vit_forward.16} parent=0
    _
  %s8 = ssub.s32 1, %s6
  %s9 = scalar_select 0, %s8, %s6
  // Predicated region
  $region2: #{vit_forward.16} parent=0 // pred_check
    _
  $region3: #{vit_forward.16} parent=0 // pred_check_branch
    %11 = sbr.rel (0) target = $region5
  $region4: #{vit_forward.16} parent=0 // pred_region
    _
  $region5: #{vit_forward.16} parent=0 // pred_fallthru
    _
  // Predicated region
  $region6: #{vit_forward.16} parent=0 // pred_check
    _
  $region7: #{vit_forward.16} parent=0 // pred_check_branch
    %13 = sbr.rel (0) target = $region9
  $region8: #{vit_forward.16} parent=0 // pred_region
    _
  $region9: #{vit_forward.16} parent=0 // pred_fallthru
    _
  // Predicated region
  $region10: #{vit_forward.16} parent=0 // pred_check
    _
  $region11: #{vit_forward.16} parent=0 // pred_check_branch
    %15 = sbr.rel (0) target = $region13
  $region12: #{vit_forward.16} parent=0 // pred_region
    _
  $region13: #{vit_forward.16} parent=0 // pred_fallthru
    _
  // Predicated region
  $region14: #{vit_forward.16} parent=0 // pred_check
    _
  $region15: #{vit_forward.16} parent=0 // pred_check_branch
    %17 = sbr.rel (0) target = $region17
  $region16: #{vit_forward.16} parent=0 // pred_region
    _
  $region17: #{vit_forward.16} parent=0 // pred_fallthru
    _
  // Predicated region
  $region18: #{vit_forward.16} parent=0 // pred_check
    _
  $region19: #{vit_forward.16} parent=0 // pred_check_branch
    %19 = sbr.rel (0) target = $region21
  $region20: #{vit_forward.16} parent=0 // pred_region
    _
  $region21: #{vit_forward.16} parent=0 // pred_fallthru
    _
  %v20 = vld [vmem:[%s0] sm:$0xf]
  %v21 = vld [vmem:[%s0 + $0x4] sm:$0xf]
  %v22 = vunpack.c.l.bf16 %v20
  %v23 = vunpack.c.l.bf16 %v21
  %24 = vadd.xlane.f32.xlu0 %v22
  %v25 = vpop.xlane.xlu0 %24
  %26 = vadd.xlane.f32.xlu0 %v23
  %v27 = vpop.xlane.xlu0 %26
  %v28 = vrcp.pop 128.0
  %v29 = vmul.f32 128.0, %v28
  %v30 = vsub.f32 1.0, %v29
  %v31 = vmul.f32 %v28, %v30
  %v32 = vadd.f32 %v28, %v31
  %vm33 = vweird.f32 %v28
  %v34 = vsel %vm33, %v28, %v32
  %v35 = vmul.f32 %v25, %v34
  %v36 = vmul.f32 %v27, %v34
  %v37 = vsub.f32 %v22, %v35
  %v38 = vsub.f32 %v23, %v36
  %v39 = vmul.f32 %v37, %v37
  %v40 = vmul.f32 %v38, %v38
  %41 = vadd.xlane.f32.xlu0 %v39
  %v42 = vpop.xlane.xlu0 %41
  %43 = vadd.xlane.f32.xlu0 %v40
  %v44 = vpop.xlane.xlu0 %43
  %v45 = vmul.f32 %v42, %v34
  %v46 = vmul.f32 %v44, %v34
  %v47 = vadd.f32 %v45, 1e-05
  %v48 = vadd.f32 %v46, 1e-05
  %v49 = vrsqrt.pop %v47
  %v50 = vmul.f32 %v49, %v47
  %v51 = vmul.f32 %v50, %v49
  %v52 = vmul.f32 0.5, %v51
  %v53 = vsub.f32 1.5, %v52
  %v54 = vmul.f32 %v49, %v53
  %vm55 = vweird.f32 %v47
  %vm56 = vweird.f32 %v49
  %vm57 = vmor %vm55, %vm56
  %v58 = vsel %vm57, %v49, %v54
  %v59 = vrsqrt.pop %v48
  %v60 = vmul.f32 %v59, %v48
  %v61 = vmul.f32 %v60, %v59
  %v62 = vmul.f32 0.5, %v61
  %v63 = vsub.f32 1.5, %v62
  %v64 = vmul.f32 %v59, %v63
  %vm65 = vweird.f32 %v48
  %vm66 = vweird.f32 %v59
  %vm67 = vmor %vm65, %vm66
  %v68 = vsel %vm67, %v59, %v64
  %v69 = vmul.f32 %v37, %v58
  %v70 = vmul.f32 %v38, %v68
  %v71 = vld [vmem:[%s2] sm:$0x1]
  %v73 = vperm.slane %v71, 0
  %v75 = vmul.f32 %v69, %v73
  %v76 = vmul.f32 %v70, %v73
  %v77 = vld [vmem:[%s3] sm:$0x1]
  %v79 = vperm.slane %v77, 0
  %v81 = vadd.f32 %v75, %v79
  %v82 = vadd.f32 %v76, %v79
  %v83 = vpack.c.bf16 %v82, %v81
  %v84 = vld [vmem:[%s1] sm:$0xff]
  %v85 = vld [vmem:[%s1 + $0x8] sm:$0xff]
  %v86 = vld [vmem:[%s1 + $0x10] sm:$0xff]
  %v87 = vld [vmem:[%s1 + $0x18] sm:$0xff]
  %v88 = vld [vmem:[%s1 + $0x20] sm:$0xff]
  %v89 = vld [vmem:[%s1 + $0x28] sm:$0xff]
  %v90 = vld [vmem:[%s1 + $0x30] sm:$0xff]
  %v91 = vld [vmem:[%s1 + $0x38] sm:$0xff]
  %v92 = vld [vmem:[%s1 + $0x40] sm:$0xff]
  %v93 = vld [vmem:[%s1 + $0x48] sm:$0xff]
  %v94 = vld [vmem:[%s1 + $0x50] sm:$0xff]
  %v95 = vld [vmem:[%s1 + $0x58] sm:$0xff]
  %v96 = vld [vmem:[%s1 + $0x60] sm:$0xff]
  %v97 = vld [vmem:[%s1 + $0x68] sm:$0xff]
  %v98 = vld [vmem:[%s1 + $0x70] sm:$0xff]
  %v99 = vld [vmem:[%s1 + $0x78] sm:$0xff]
  %v100 = vld [vmem:[%s1 + $0x80] sm:$0xff]
  %v101 = vld [vmem:[%s1 + $0x88] sm:$0xff]
  %v102 = vld [vmem:[%s1 + $0x90] sm:$0xff]
  %v103 = vld [vmem:[%s1 + $0x98] sm:$0xff]
  %v104 = vld [vmem:[%s1 + $0xa0] sm:$0xff]
  %v105 = vld [vmem:[%s1 + $0xa8] sm:$0xff]
  %v106 = vld [vmem:[%s1 + $0xb0] sm:$0xff]
  %v107 = vld [vmem:[%s1 + $0xb8] sm:$0xff]
  %v108 = vld [vmem:[%s1 + $0xc0] sm:$0xff]
  %v109 = vld [vmem:[%s1 + $0xc8] sm:$0xff]
  %v110 = vld [vmem:[%s1 + $0xd0] sm:$0xff]
  %v111 = vld [vmem:[%s1 + $0xd8] sm:$0xff]
  %v112 = vld [vmem:[%s1 + $0xe0] sm:$0xff]
  %v113 = vld [vmem:[%s1 + $0xe8] sm:$0xff]
  %v114 = vld [vmem:[%s1 + $0xf0] sm:$0xff]
  %v115 = vld [vmem:[%s1 + $0xf8] sm:$0xff]
  %v116 = vld [vmem:[%s1 + $0x100] sm:$0xff]
  %v117 = vld [vmem:[%s1 + $0x108] sm:$0xff]
  %v118 = vld [vmem:[%s1 + $0x110] sm:$0xff]
  %v119 = vld [vmem:[%s1 + $0x118] sm:$0xff]
  %v120 = vld [vmem:[%s1 + $0x120] sm:$0xff]
  %v121 = vld [vmem:[%s1 + $0x128] sm:$0xff]
  %v122 = vld [vmem:[%s1 + $0x130] sm:$0xff]
  %v123 = vld [vmem:[%s1 + $0x138] sm:$0xff]
  %v124 = vld [vmem:[%s1 + $0x140] sm:$0xff]
  %v125 = vld [vmem:[%s1 + $0x148] sm:$0xff]
  %v126 = vld [vmem:[%s1 + $0x150] sm:$0xff]
  %v127 = vld [vmem:[%s1 + $0x158] sm:$0xff]
  %v128 = vld [vmem:[%s1 + $0x160] sm:$0xff]
  %v129 = vld [vmem:[%s1 + $0x168] sm:$0xff]
  %v130 = vld [vmem:[%s1 + $0x170] sm:$0xff]
  %v131 = vld [vmem:[%s1 + $0x178] sm:$0xff]
  %v132 = vld [vmem:[%s4] sm:$0x3f]
  %v134 = vperm.slane %v132, 0
  %v135 = vperm.slane %v132, 1
  %v136 = vperm.slane %v132, 2
  %v137 = vperm.slane %v132, 3
  %v138 = vperm.slane %v132, 4
  %v139 = vperm.slane %v132, 5
  %v194 = vunpack.c.l.b16 %v84
  %v195 = vunpack.c.h.b16 %v84
  %v196 = vunpack.c.l.b16 %v85
  %v197 = vunpack.c.h.b16 %v85
  %v198 = vunpack.c.l.b16 %v86
  %v199 = vunpack.c.h.b16 %v86
  %v200 = vunpack.c.l.b16 %v87
  %v201 = vunpack.c.h.b16 %v87
  %v202 = vunpack.c.l.b16 %v88
  %v203 = vunpack.c.h.b16 %v88
  %v204 = vunpack.c.l.b16 %v89
  %v205 = vunpack.c.h.b16 %v89
  %v206 = vunpack.c.l.b16 %v90
  %v207 = vunpack.c.h.b16 %v90
  %v208 = vunpack.c.l.b16 %v91
  %v209 = vunpack.c.h.b16 %v91
  %v210 = vunpack.c.l.b16 %v92
  %v211 = vunpack.c.h.b16 %v92
  %v212 = vunpack.c.l.b16 %v93
  %v213 = vunpack.c.h.b16 %v93
  %v214 = vunpack.c.l.b16 %v94
  %v215 = vunpack.c.h.b16 %v94
  %v216 = vunpack.c.l.b16 %v95
  %v217 = vunpack.c.h.b16 %v95
  %v218 = vunpack.c.l.b16 %v96
  %v219 = vunpack.c.h.b16 %v96
  %v220 = vunpack.c.l.b16 %v97
  %v221 = vunpack.c.h.b16 %v97
  %v222 = vunpack.c.l.b16 %v98
  %v223 = vunpack.c.h.b16 %v98
  %v224 = vunpack.c.l.b16 %v99
  %v225 = vunpack.c.h.b16 %v99
  %v226 = vunpack.c.l.b16 %v100
  %v227 = vunpack.c.h.b16 %v100
  %v228 = vunpack.c.l.b16 %v101
  %v229 = vunpack.c.h.b16 %v101
  %v230 = vunpack.c.l.b16 %v102
  %v231 = vunpack.c.h.b16 %v102
  %v232 = vunpack.c.l.b16 %v103
  %v233 = vunpack.c.h.b16 %v103
  %v234 = vunpack.c.l.b16 %v104
  %v235 = vunpack.c.h.b16 %v104
  %v236 = vunpack.c.l.b16 %v105
  %v237 = vunpack.c.h.b16 %v105
  %v238 = vunpack.c.l.b16 %v106
  %v239 = vunpack.c.h.b16 %v106
  %v240 = vunpack.c.l.b16 %v107
  %v241 = vunpack.c.h.b16 %v107
  %v242 = vunpack.c.l.b16 %v108
  %v243 = vunpack.c.h.b16 %v108
  %v244 = vunpack.c.l.b16 %v109
  %v245 = vunpack.c.h.b16 %v109
  %v246 = vunpack.c.l.b16 %v110
  %v247 = vunpack.c.h.b16 %v110
  %v248 = vunpack.c.l.b16 %v111
  %v249 = vunpack.c.h.b16 %v111
  %v250 = vunpack.c.l.b16 %v112
  %v251 = vunpack.c.h.b16 %v112
  %v252 = vunpack.c.l.b16 %v113
  %v253 = vunpack.c.h.b16 %v113
  %v254 = vunpack.c.l.b16 %v114
  %v255 = vunpack.c.h.b16 %v114
  %v256 = vunpack.c.l.b16 %v115
  %v257 = vunpack.c.h.b16 %v115
  %v258 = vunpack.c.l.b16 %v116
  %v259 = vunpack.c.h.b16 %v116
  %v260 = vunpack.c.l.b16 %v117
  %v261 = vunpack.c.h.b16 %v117
  %v262 = vunpack.c.l.b16 %v118
  %v263 = vunpack.c.h.b16 %v118
  %v264 = vunpack.c.l.b16 %v119
  %v265 = vunpack.c.h.b16 %v119
  %v266 = vunpack.c.l.b16 %v120
  %v267 = vunpack.c.h.b16 %v120
  %v268 = vunpack.c.l.b16 %v121
  %v269 = vunpack.c.h.b16 %v121
  %v270 = vunpack.c.l.b16 %v122
  %v271 = vunpack.c.h.b16 %v122
  %v272 = vunpack.c.l.b16 %v123
  %v273 = vunpack.c.h.b16 %v123
  %v274 = vunpack.c.l.b16 %v124
  %v275 = vunpack.c.h.b16 %v124
  %v276 = vunpack.c.l.b16 %v125
  %v277 = vunpack.c.h.b16 %v125
  %v278 = vunpack.c.l.b16 %v126
  %v279 = vunpack.c.h.b16 %v126
  %v280 = vunpack.c.l.b16 %v127
  %v281 = vunpack.c.h.b16 %v127
  %v282 = vunpack.c.l.b16 %v128
  %v283 = vunpack.c.h.b16 %v128
  %v284 = vunpack.c.l.b16 %v129
  %v285 = vunpack.c.h.b16 %v129
  %v286 = vunpack.c.l.b16 %v130
  %v287 = vunpack.c.h.b16 %v130
  %v288 = vunpack.c.l.b16 %v131
  %v289 = vunpack.c.h.b16 %v131
  %v290 = vpack.c.b16 %v200, %v194
  %v291 = vpack.c.b16 %v201, %v195
  %v292 = vpack.c.b16 %v202, %v196
  %v293 = vpack.c.b16 %v203, %v197
  %v294 = vpack.c.b16 %v204, %v198
  %v295 = vpack.c.b16 %v205, %v199
  %v296 = vpack.c.b16 %v212, %v206
  %v297 = vpack.c.b16 %v213, %v207
  %v298 = vpack.c.b16 %v214, %v208
  %v299 = vpack.c.b16 %v215, %v209
  %v300 = vpack.c.b16 %v216, %v210
  %v301 = vpack.c.b16 %v217, %v211
  %v302 = vpack.c.b16 %v224, %v218
  %v303 = vpack.c.b16 %v225, %v219
  %v304 = vpack.c.b16 %v226, %v220
  %v305 = vpack.c.b16 %v227, %v221
  %v306 = vpack.c.b16 %v228, %v222
  %v307 = vpack.c.b16 %v229, %v223
  %v308 = vpack.c.b16 %v236, %v230
  %v309 = vpack.c.b16 %v237, %v231
  %v310 = vpack.c.b16 %v238, %v232
  %v311 = vpack.c.b16 %v239, %v233
  %v312 = vpack.c.b16 %v240, %v234
  %v313 = vpack.c.b16 %v241, %v235
  %v314 = vpack.c.b16 %v248, %v242
  %v315 = vpack.c.b16 %v249, %v243
  %v316 = vpack.c.b16 %v250, %v244
  %v317 = vpack.c.b16 %v251, %v245
  %v318 = vpack.c.b16 %v252, %v246
  %v319 = vpack.c.b16 %v253, %v247
  %v320 = vpack.c.b16 %v260, %v254
  %v321 = vpack.c.b16 %v261, %v255
  %v322 = vpack.c.b16 %v262, %v256
  %v323 = vpack.c.b16 %v263, %v257
  %v324 = vpack.c.b16 %v264, %v258
  %v325 = vpack.c.b16 %v265, %v259
  %v326 = vpack.c.b16 %v272, %v266
  %v327 = vpack.c.b16 %v273, %v267
  %v328 = vpack.c.b16 %v274, %v268
  %v329 = vpack.c.b16 %v275, %v269
  %v330 = vpack.c.b16 %v276, %v270
  %v331 = vpack.c.b16 %v277, %v271
  %v332 = vpack.c.b16 %v284, %v278
  %v333 = vpack.c.b16 %v285, %v279
  %v334 = vpack.c.b16 %v286, %v280
  %v335 = vpack.c.b16 %v287, %v281
  %v336 = vpack.c.b16 %v288, %v282
  %v337 = vpack.c.b16 %v289, %v283
  %386 = vmatpush.bf16.msra.mxu0 %v332
  %387 = vmatpush.bf16.msra.mxu0 %v326
  %388 = vmatpush.bf16.msra.mxu0 %v320
  %389 = vmatpush.bf16.msra.mxu0 %v314
  %390 = vmatpush.bf16.msra.mxu0 %v308
  %391 = vmatpush.bf16.msra.mxu0 %v302
  %392 = vmatpush.bf16.msra.mxu0 %v296
  %393 = vmatpush.bf16.msra.mxu0 %v290
  %394 = vmatmul.bf16.gmra.mxu0 %v83
  %v395 = vpop.f32.mrf.mxu0
  %v396 = vadd.f32 %v134, %v395
  %v397 = vpop.f32.mrf.mxu0
  %v398 = vadd.f32 %v134, %v397
  %399 = vdwg.mxu0
  %400 = vmatpush.bf16.msra.mxu0 %v333
  %401 = vmatpush.bf16.msra.mxu0 %v327
  %402 = vmatpush.bf16.msra.mxu0 %v321
  %403 = vmatpush.bf16.msra.mxu0 %v315
  %404 = vmatpush.bf16.msra.mxu0 %v309
  %405 = vmatpush.bf16.msra.mxu0 %v303
  %406 = vmatpush.bf16.msra.mxu0 %v297
  %407 = vmatpush.bf16.msra.mxu0 %v291
  %408 = vmatmul.bf16.gmra.mxu0 %v83
  %v409 = vpop.f32.mrf.mxu0
  %v410 = vadd.f32 %v135, %v409
  %v411 = vpop.f32.mrf.mxu0
  %v412 = vadd.f32 %v135, %v411
  %413 = vdwg.mxu0
  %414 = vmatpush.bf16.msra.mxu0 %v334
  %415 = vmatpush.bf16.msra.mxu0 %v328
  %416 = vmatpush.bf16.msra.mxu0 %v322
  %417 = vmatpush.bf16.msra.mxu0 %v316
  %418 = vmatpush.bf16.msra.mxu0 %v310
  %419 = vmatpush.bf16.msra.mxu0 %v304
  %420 = vmatpush.bf16.msra.mxu0 %v298
  %421 = vmatpush.bf16.msra.mxu0 %v292
  %422 = vmatmul.bf16.gmra.mxu0 %v83
  %v423 = vpop.f32.mrf.mxu0
  %v424 = vadd.f32 %v136, %v423
  %v425 = vpop.f32.mrf.mxu0
  %v426 = vadd.f32 %v136, %v425
  %427 = vdwg.mxu0
  %428 = vmatpush.bf16.msra.mxu0 %v335
  %429 = vmatpush.bf16.msra.mxu0 %v329
  %430 = vmatpush.bf16.msra.mxu0 %v323
  %431 = vmatpush.bf16.msra.mxu0 %v317
  %432 = vmatpush.bf16.msra.mxu0 %v311
  %433 = vmatpush.bf16.msra.mxu0 %v305
  %434 = vmatpush.bf16.msra.mxu0 %v299
  %435 = vmatpush.bf16.msra.mxu0 %v293
  %436 = vmatmul.bf16.gmra.mxu0 %v83
  %v437 = vpop.f32.mrf.mxu0
  %v438 = vadd.f32 %v137, %v437
  %v439 = vpop.f32.mrf.mxu0
  %v440 = vadd.f32 %v137, %v439
  %441 = vdwg.mxu0
  %442 = vmatpush.bf16.msra.mxu0 %v336
  %443 = vmatpush.bf16.msra.mxu0 %v330
  %444 = vmatpush.bf16.msra.mxu0 %v324
  %445 = vmatpush.bf16.msra.mxu0 %v318
  %446 = vmatpush.bf16.msra.mxu0 %v312
  %447 = vmatpush.bf16.msra.mxu0 %v306
  %448 = vmatpush.bf16.msra.mxu0 %v300
  %449 = vmatpush.bf16.msra.mxu0 %v294
  %450 = vmatmul.bf16.gmra.mxu0 %v83
  %v451 = vpop.f32.mrf.mxu0
  %v452 = vadd.f32 %v138, %v451
  %v453 = vpop.f32.mrf.mxu0
  %v454 = vadd.f32 %v138, %v453
  %455 = vdwg.mxu0
  %456 = vmatpush.bf16.msra.mxu0 %v337
  %457 = vmatpush.bf16.msra.mxu0 %v331
  %458 = vmatpush.bf16.msra.mxu0 %v325
  %459 = vmatpush.bf16.msra.mxu0 %v319
  %460 = vmatpush.bf16.msra.mxu0 %v313
  %461 = vmatpush.bf16.msra.mxu0 %v307
  %462 = vmatpush.bf16.msra.mxu0 %v301
  %463 = vmatpush.bf16.msra.mxu0 %v295
  %464 = vmatmul.bf16.gmra.mxu0 %v83
  %v465 = vpop.f32.mrf.mxu0
  %v466 = vadd.f32 %v139, %v465
  %v467 = vpop.f32.mrf.mxu0
  %v468 = vadd.f32 %v139, %v467
  %469 = vdwg.mxu0
  %v470 = vmul.f32 %v396, 0.5
  %v471 = vmul.f32 %v410, 0.5
  %v472 = vmul.f32 %v424, 0.5
  %v473 = vmul.f32 %v438, 0.5
  %v474 = vmul.f32 %v452, 0.5
  %v475 = vmul.f32 %v466, 0.5
  %v476 = vmul.f32 %v398, 0.5
  %v477 = vmul.f32 %v412, 0.5
  %v478 = vmul.f32 %v426, 0.5
  %v479 = vmul.f32 %v440, 0.5
  %v480 = vmul.f32 %v454, 0.5
  %v481 = vmul.f32 %v468, 0.5
  %v482 = vmul.f32 %v396, 0.70710677
  %v483 = vmul.f32 %v410, 0.70710677
  %v484 = vmul.f32 %v424, 0.70710677
  %v485 = vmul.f32 %v438, 0.70710677
  %v486 = vmul.f32 %v452, 0.70710677
  %v487 = vmul.f32 %v466, 0.70710677
  %v488 = vmul.f32 %v398, 0.70710677
  %v489 = vmul.f32 %v412, 0.70710677
  %v490 = vmul.f32 %v426, 0.70710677
  %v491 = vmul.f32 %v440, 0.70710677
  %v492 = vmul.f32 %v454, 0.70710677
  %v493 = vmul.f32 %v468, 0.70710677
  %v494 = vmul.f32 %v482, %v482
  %v495 = vmin.f32 16.0, %v494
  %v496 = vmul.f32 %v495, 2.1237322e-06
  %v497 = vadd.f32 %v496, 0.00028619796
  %v498 = vmul.f32 %v495, %v497
  %v499 = vadd.f32 %v498, 0.0036580483
  %v500 = vmul.f32 %v495, %v499
  %v501 = vadd.f32 %v500, 0.05243302
  %v502 = vmul.f32 %v495, %v501
  %v503 = vadd.f32 %v502, 0.18741608
  %v504 = vmul.f32 %v495, %v503
  %v505 = vadd.f32 %v504, 1.1283791
  %v506 = vmul.f32 %v482, %v505
  %v507 = vmul.f32 %v495, 3.8918573e-05
  %v508 = vadd.f32 %v507, 0.001143296
  %v509 = vmul.f32 %v495, %v508
  %v510 = vadd.f32 %v509, 0.014752088
  %v511 = vmul.f32 %v495, %v510
  %v512 = vadd.f32 %v511, 0.112945676
  %v513 = vmul.f32 %v495, %v512
  %v514 = vadd.f32 %v513, 0.4994258
  %v515 = vmul.f32 %v495, %v514
  %v516 = vadd.f32 %v515, 1.0
  %v517 = vrcp.pop %v516
  %v518 = vmul.f32 %v516, %v517
  %v519 = vsub.f32 1.0, %v518
  %v520 = vmul.f32 %v517, %v519
  %v521 = vadd.f32 %v517, %v520
  %vm522 = vweird.f32 %v516
  %vm523 = vweird.f32 %v517
  %vm524 = vmor %vm522, %vm523
  %v525 = vsel %vm524, %v517, %v521
  %v526 = vand.u32 2147483647, %v516
  %vm527 = vcmp.eq.f32.partialorder %v526, 8.507059e+37
  %v528 = vand.u32 %v516, 2147483648
  %v529 = vor.u32 1.1754944e-38, %v528
  %v530 = vsel %vm527, %v529, %v525
  %v531 = vmul.f32 %v506, %v530
  %v532 = vmin.f32 %v531, 1.0
  %v533 = vmax.f32 %v532, -1.0
  %v534 = vmul.f32 %v483, %v483
  %v535 = vmin.f32 16.0, %v534
  %v536 = vmul.f32 %v535, 2.1237322e-06
  %v537 = vadd.f32 %v536, 0.00028619796
  %v538 = vmul.f32 %v535, %v537
  %v539 = vadd.f32 %v538, 0.0036580483
  %v540 = vmul.f32 %v535, %v539
  %v541 = vadd.f32 %v540, 0.05243302
  %v542 = vmul.f32 %v535, %v541
  %v543 = vadd.f32 %v542, 0.18741608
  %v544 = vmul.f32 %v535, %v543
  %v545 = vadd.f32 %v544, 1.1283791
  %v546 = vmul.f32 %v483, %v545
  %v547 = vmul.f32 %v535, 3.8918573e-05
  %v548 = vadd.f32 %v547, 0.001143296
  %v549 = vmul.f32 %v535, %v548
  %v550 = vadd.f32 %v549, 0.014752088
  %v551 = vmul.f32 %v535, %v550
  %v552 = vadd.f32 %v551, 0.112945676
  %v553 = vmul.f32 %v535, %v552
  %v554 = vadd.f32 %v553, 0.4994258
  %v555 = vmul.f32 %v535, %v554
  %v556 = vadd.f32 %v555, 1.0
  %v557 = vrcp.pop %v556
  %v558 = vmul.f32 %v556, %v557
  %v559 = vsub.f32 1.0, %v558
  %v560 = vmul.f32 %v557, %v559
  %v561 = vadd.f32 %v557, %v560
  %vm562 = vweird.f32 %v556
  %vm563 = vweird.f32 %v557
  %vm564 = vmor %vm562, %vm563
  %v565 = vsel %vm564, %v557, %v561
  %v566 = vand.u32 2147483647, %v556
  %vm567 = vcmp.eq.f32.partialorder %v566, 8.507059e+37
  %v568 = vand.u32 %v556, 2147483648
  %v569 = vor.u32 1.1754944e-38, %v568
  %v570 = vsel %vm567, %v569, %v565
  %v571 = vmul.f32 %v546, %v570
  %v572 = vmin.f32 %v571, 1.0
  %v573 = vmax.f32 %v572, -1.0
  %v574 = vmul.f32 %v484, %v484
  %v575 = vmin.f32 16.0, %v574
  %v576 = vmul.f32 %v575, 2.1237322e-06
  %v577 = vadd.f32 %v576, 0.00028619796
  %v578 = vmul.f32 %v575, %v577
  %v579 = vadd.f32 %v578, 0.0036580483
  %v580 = vmul.f32 %v575, %v579
  %v581 = vadd.f32 %v580, 0.05243302
  %v582 = vmul.f32 %v575, %v581
  %v583 = vadd.f32 %v582, 0.18741608
  %v584 = vmul.f32 %v575, %v583
  %v585 = vadd.f32 %v584, 1.1283791
  %v586 = vmul.f32 %v484, %v585
  %v587 = vmul.f32 %v575, 3.8918573e-05
  %v588 = vadd.f32 %v587, 0.001143296
  %v589 = vmul.f32 %v575, %v588
  %v590 = vadd.f32 %v589, 0.014752088
  %v591 = vmul.f32 %v575, %v590
  %v592 = vadd.f32 %v591, 0.112945676
  %v593 = vmul.f32 %v575, %v592
  %v594 = vadd.f32 %v593, 0.4994258
  %v595 = vmul.f32 %v575, %v594
  %v596 = vadd.f32 %v595, 1.0
  %v597 = vrcp.pop %v596
  %v598 = vmul.f32 %v596, %v597
  %v599 = vsub.f32 1.0, %v598
  %v600 = vmul.f32 %v597, %v599
  %v601 = vadd.f32 %v597, %v600
  %vm602 = vweird.f32 %v596
  %vm603 = vweird.f32 %v597
  %vm604 = vmor %vm602, %vm603
  %v605 = vsel %vm604, %v597, %v601
  %v606 = vand.u32 2147483647, %v596
  %vm607 = vcmp.eq.f32.partialorder %v606, 8.507059e+37
  %v608 = vand.u32 %v596, 2147483648
  %v609 = vor.u32 1.1754944e-38, %v608
  %v610 = vsel %vm607, %v609, %v605
  %v611 = vmul.f32 %v586, %v610
  %v612 = vmin.f32 %v611, 1.0
  %v613 = vmax.f32 %v612, -1.0
  %v614 = vmul.f32 %v485, %v485
  %v615 = vmin.f32 16.0, %v614
  %v616 = vmul.f32 %v615, 2.1237322e-06
  %v617 = vadd.f32 %v616, 0.00028619796
  %v618 = vmul.f32 %v615, %v617
  %v619 = vadd.f32 %v618, 0.0036580483
  %v620 = vmul.f32 %v615, %v619
  %v621 = vadd.f32 %v620, 0.05243302
  %v622 = vmul.f32 %v615, %v621
  %v623 = vadd.f32 %v622, 0.18741608
  %v624 = vmul.f32 %v615, %v623
  %v625 = vadd.f32 %v624, 1.1283791
  %v626 = vmul.f32 %v485, %v625
  %v627 = vmul.f32 %v615, 3.8918573e-05
  %v628 = vadd.f32 %v627, 0.001143296
  %v629 = vmul.f32 %v615, %v628
  %v630 = vadd.f32 %v629, 0.014752088
  %v631 = vmul.f32 %v615, %v630
  %v632 = vadd.f32 %v631, 0.112945676
  %v633 = vmul.f32 %v615, %v632
  %v634 = vadd.f32 %v633, 0.4994258
  %v635 = vmul.f32 %v615, %v634
  %v636 = vadd.f32 %v635, 1.0
  %v637 = vrcp.pop %v636
  %v638 = vmul.f32 %v636, %v637
  %v639 = vsub.f32 1.0, %v638
  %v640 = vmul.f32 %v637, %v639
  %v641 = vadd.f32 %v637, %v640
  %vm642 = vweird.f32 %v636
  %vm643 = vweird.f32 %v637
  %vm644 = vmor %vm642, %vm643
  %v645 = vsel %vm644, %v637, %v641
  %v646 = vand.u32 2147483647, %v636
  %vm647 = vcmp.eq.f32.partialorder %v646, 8.507059e+37
  %v648 = vand.u32 %v636, 2147483648
  %v649 = vor.u32 1.1754944e-38, %v648
  %v650 = vsel %vm647, %v649, %v645
  %v651 = vmul.f32 %v626, %v650
  %v652 = vmin.f32 %v651, 1.0
  %v653 = vmax.f32 %v652, -1.0
  %v654 = vmul.f32 %v486, %v486
  %v655 = vmin.f32 16.0, %v654
  %v656 = vmul.f32 %v655, 2.1237322e-06
  %v657 = vadd.f32 %v656, 0.00028619796
  %v658 = vmul.f32 %v655, %v657
  %v659 = vadd.f32 %v658, 0.0036580483
  %v660 = vmul.f32 %v655, %v659
  %v661 = vadd.f32 %v660, 0.05243302
  %v662 = vmul.f32 %v655, %v661
  %v663 = vadd.f32 %v662, 0.18741608
  %v664 = vmul.f32 %v655, %v663
  %v665 = vadd.f32 %v664, 1.1283791
  %v666 = vmul.f32 %v486, %v665
  %v667 = vmul.f32 %v655, 3.8918573e-05
  %v668 = vadd.f32 %v667, 0.001143296
  %v669 = vmul.f32 %v655, %v668
  %v670 = vadd.f32 %v669, 0.014752088
  %v671 = vmul.f32 %v655, %v670
  %v672 = vadd.f32 %v671, 0.112945676
  %v673 = vmul.f32 %v655, %v672
  %v674 = vadd.f32 %v673, 0.4994258
  %v675 = vmul.f32 %v655, %v674
  %v676 = vadd.f32 %v675, 1.0
  %v677 = vrcp.pop %v676
  %v678 = vmul.f32 %v676, %v677
  %v679 = vsub.f32 1.0, %v678
  %v680 = vmul.f32 %v677, %v679
  %v681 = vadd.f32 %v677, %v680
  %vm682 = vweird.f32 %v676
  %vm683 = vweird.f32 %v677
  %vm684 = vmor %vm682, %vm683
  %v685 = vsel %vm684, %v677, %v681
  %v686 = vand.u32 2147483647, %v676
  %vm687 = vcmp.eq.f32.partialorder %v686, 8.507059e+37
  %v688 = vand.u32 %v676, 2147483648
  %v689 = vor.u32 1.1754944e-38, %v688
  %v690 = vsel %vm687, %v689, %v685
  %v691 = vmul.f32 %v666, %v690
  %v692 = vmin.f32 %v691, 1.0
  %v693 = vmax.f32 %v692, -1.0
  %v694 = vmul.f32 %v487, %v487
  %v695 = vmin.f32 16.0, %v694
  %v696 = vmul.f32 %v695, 2.1237322e-06
  %v697 = vadd.f32 %v696, 0.00028619796
  %v698 = vmul.f32 %v695, %v697
  %v699 = vadd.f32 %v698, 0.0036580483
  %v700 = vmul.f32 %v695, %v699
  %v701 = vadd.f32 %v700, 0.05243302
  %v702 = vmul.f32 %v695, %v701
  %v703 = vadd.f32 %v702, 0.18741608
  %v704 = vmul.f32 %v695, %v703
  %v705 = vadd.f32 %v704, 1.1283791
  %v706 = vmul.f32 %v487, %v705
  %v707 = vmul.f32 %v695, 3.8918573e-05
  %v708 = vadd.f32 %v707, 0.001143296
  %v709 = vmul.f32 %v695, %v708
  %v710 = vadd.f32 %v709, 0.014752088
  %v711 = vmul.f32 %v695, %v710
  %v712 = vadd.f32 %v711, 0.112945676
  %v713 = vmul.f32 %v695, %v712
  %v714 = vadd.f32 %v713, 0.4994258
  %v715 = vmul.f32 %v695, %v714
  %v716 = vadd.f32 %v715, 1.0
  %v717 = vrcp.pop %v716
  %v718 = vmul.f32 %v716, %v717
  %v719 = vsub.f32 1.0, %v718
  %v720 = vmul.f32 %v717, %v719
  %v721 = vadd.f32 %v717, %v720
  %vm722 = vweird.f32 %v716
  %vm723 = vweird.f32 %v717
  %vm724 = vmor %vm722, %vm723
  %v725 = vsel %vm724, %v717, %v721
  %v726 = vand.u32 2147483647, %v716
  %vm727 = vcmp.eq.f32.partialorder %v726, 8.507059e+37
  %v728 = vand.u32 %v716, 2147483648
  %v729 = vor.u32 1.1754944e-38, %v728
  %v730 = vsel %vm727, %v729, %v725
  %v731 = vmul.f32 %v706, %v730
  %v732 = vmin.f32 %v731, 1.0
  %v733 = vmax.f32 %v732, -1.0
  %v734 = vmul.f32 %v488, %v488
  %v735 = vmin.f32 16.0, %v734
  %v736 = vmul.f32 %v735, 2.1237322e-06
  %v737 = vadd.f32 %v736, 0.00028619796
  %v738 = vmul.f32 %v735, %v737
  %v739 = vadd.f32 %v738, 0.0036580483
  %v740 = vmul.f32 %v735, %v739
  %v741 = vadd.f32 %v740, 0.05243302
  %v742 = vmul.f32 %v735, %v741
  %v743 = vadd.f32 %v742, 0.18741608
  %v744 = vmul.f32 %v735, %v743
  %v745 = vadd.f32 %v744, 1.1283791
  %v746 = vmul.f32 %v488, %v745
  %v747 = vmul.f32 %v735, 3.8918573e-05
  %v748 = vadd.f32 %v747, 0.001143296
  %v749 = vmul.f32 %v735, %v748
  %v750 = vadd.f32 %v749, 0.014752088
  %v751 = vmul.f32 %v735, %v750
  %v752 = vadd.f32 %v751, 0.112945676
  %v753 = vmul.f32 %v735, %v752
  %v754 = vadd.f32 %v753, 0.4994258
  %v755 = vmul.f32 %v735, %v754
  %v756 = vadd.f32 %v755, 1.0
  %v757 = vrcp.pop %v756
  %v758 = vmul.f32 %v756, %v757
  %v759 = vsub.f32 1.0, %v758
  %v760 = vmul.f32 %v757, %v759
  %v761 = vadd.f32 %v757, %v760
  %vm762 = vweird.f32 %v756
  %vm763 = vweird.f32 %v757
  %vm764 = vmor %vm762, %vm763
  %v765 = vsel %vm764, %v757, %v761
  %v766 = vand.u32 2147483647, %v756
  %vm767 = vcmp.eq.f32.partialorder %v766, 8.507059e+37
  %v768 = vand.u32 %v756, 2147483648
  %v769 = vor.u32 1.1754944e-38, %v768
  %v770 = vsel %vm767, %v769, %v765
  %v771 = vmul.f32 %v746, %v770
  %v772 = vmin.f32 %v771, 1.0
  %v773 = vmax.f32 %v772, -1.0
  %v774 = vmul.f32 %v489, %v489
  %v775 = vmin.f32 16.0, %v774
  %v776 = vmul.f32 %v775, 2.1237322e-06
  %v777 = vadd.f32 %v776, 0.00028619796
  %v778 = vmul.f32 %v775, %v777
  %v779 = vadd.f32 %v778, 0.0036580483
  %v780 = vmul.f32 %v775, %v779
  %v781 = vadd.f32 %v780, 0.05243302
  %v782 = vmul.f32 %v775, %v781
  %v783 = vadd.f32 %v782, 0.18741608
  %v784 = vmul.f32 %v775, %v783
  %v785 = vadd.f32 %v784, 1.1283791
  %v786 = vmul.f32 %v489, %v785
  %v787 = vmul.f32 %v775, 3.8918573e-05
  %v788 = vadd.f32 %v787, 0.001143296
  %v789 = vmul.f32 %v775, %v788
  %v790 = vadd.f32 %v789, 0.014752088
  %v791 = vmul.f32 %v775, %v790
  %v792 = vadd.f32 %v791, 0.112945676
  %v793 = vmul.f32 %v775, %v792
  %v794 = vadd.f32 %v793, 0.4994258
  %v795 = vmul.f32 %v775, %v794
  %v796 = vadd.f32 %v795, 1.0
  %v797 = vrcp.pop %v796
  %v798 = vmul.f32 %v796, %v797
  %v799 = vsub.f32 1.0, %v798
  %v800 = vmul.f32 %v797, %v799
  %v801 = vadd.f32 %v797, %v800
  %vm802 = vweird.f32 %v796
  %vm803 = vweird.f32 %v797
  %vm804 = vmor %vm802, %vm803
  %v805 = vsel %vm804, %v797, %v801
  %v806 = vand.u32 2147483647, %v796
  %vm807 = vcmp.eq.f32.partialorder %v806, 8.507059e+37
  %v808 = vand.u32 %v796, 2147483648
  %v809 = vor.u32 1.1754944e-38, %v808
  %v810 = vsel %vm807, %v809, %v805
  %v811 = vmul.f32 %v786, %v810
  %v812 = vmin.f32 %v811, 1.0
  %v813 = vmax.f32 %v812, -1.0
  %v814 = vmul.f32 %v490, %v490
  %v815 = vmin.f32 16.0, %v814
  %v816 = vmul.f32 %v815, 2.1237322e-06
  %v817 = vadd.f32 %v816, 0.00028619796
  %v818 = vmul.f32 %v815, %v817
  %v819 = vadd.f32 %v818, 0.0036580483
  %v820 = vmul.f32 %v815, %v819
  %v821 = vadd.f32 %v820, 0.05243302
  %v822 = vmul.f32 %v815, %v821
  %v823 = vadd.f32 %v822, 0.18741608
  %v824 = vmul.f32 %v815, %v823
  %v825 = vadd.f32 %v824, 1.1283791
  %v826 = vmul.f32 %v490, %v825
  %v827 = vmul.f32 %v815, 3.8918573e-05
  %v828 = vadd.f32 %v827, 0.001143296
  %v829 = vmul.f32 %v815, %v828
  %v830 = vadd.f32 %v829, 0.014752088
  %v831 = vmul.f32 %v815, %v830
  %v832 = vadd.f32 %v831, 0.112945676
  %v833 = vmul.f32 %v815, %v832
  %v834 = vadd.f32 %v833, 0.4994258
  %v835 = vmul.f32 %v815, %v834
  %v836 = vadd.f32 %v835, 1.0
  %v837 = vrcp.pop %v836
  %v838 = vmul.f32 %v836, %v837
  %v839 = vsub.f32 1.0, %v838
  %v840 = vmul.f32 %v837, %v839
  %v841 = vadd.f32 %v837, %v840
  %vm842 = vweird.f32 %v836
  %vm843 = vweird.f32 %v837
  %vm844 = vmor %vm842, %vm843
  %v845 = vsel %vm844, %v837, %v841
  %v846 = vand.u32 2147483647, %v836
  %vm847 = vcmp.eq.f32.partialorder %v846, 8.507059e+37
  %v848 = vand.u32 %v836, 2147483648
  %v849 = vor.u32 1.1754944e-38, %v848
  %v850 = vsel %vm847, %v849, %v845
  %v851 = vmul.f32 %v826, %v850
  %v852 = vmin.f32 %v851, 1.0
  %v853 = vmax.f32 %v852, -1.0
  %v854 = vmul.f32 %v491, %v491
  %v855 = vmin.f32 16.0, %v854
  %v856 = vmul.f32 %v855, 2.1237322e-06
  %v857 = vadd.f32 %v856, 0.00028619796
  %v858 = vmul.f32 %v855, %v857
  %v859 = vadd.f32 %v858, 0.0036580483
  %v860 = vmul.f32 %v855, %v859
  %v861 = vadd.f32 %v860, 0.05243302
  %v862 = vmul.f32 %v855, %v861
  %v863 = vadd.f32 %v862, 0.18741608
  %v864 = vmul.f32 %v855, %v863
  %v865 = vadd.f32 %v864, 1.1283791
  %v866 = vmul.f32 %v491, %v865
  %v867 = vmul.f32 %v855, 3.8918573e-05
  %v868 = vadd.f32 %v867, 0.001143296
  %v869 = vmul.f32 %v855, %v868
  %v870 = vadd.f32 %v869, 0.014752088
  %v871 = vmul.f32 %v855, %v870
  %v872 = vadd.f32 %v871, 0.112945676
  %v873 = vmul.f32 %v855, %v872
  %v874 = vadd.f32 %v873, 0.4994258
  %v875 = vmul.f32 %v855, %v874
  %v876 = vadd.f32 %v875, 1.0
  %v877 = vrcp.pop %v876
  %v878 = vmul.f32 %v876, %v877
  %v879 = vsub.f32 1.0, %v878
  %v880 = vmul.f32 %v877, %v879
  %v881 = vadd.f32 %v877, %v880
  %vm882 = vweird.f32 %v876
  %vm883 = vweird.f32 %v877
  %vm884 = vmor %vm882, %vm883
  %v885 = vsel %vm884, %v877, %v881
  %v886 = vand.u32 2147483647, %v876
  %vm887 = vcmp.eq.f32.partialorder %v886, 8.507059e+37
  %v888 = vand.u32 %v876, 2147483648
  %v889 = vor.u32 1.1754944e-38, %v888
  %v890 = vsel %vm887, %v889, %v885
  %v891 = vmul.f32 %v866, %v890
  %v892 = vmin.f32 %v891, 1.0
  %v893 = vmax.f32 %v892, -1.0
  %v894 = vmul.f32 %v492, %v492
  %v895 = vmin.f32 16.0, %v894
  %v896 = vmul.f32 %v895, 2.1237322e-06
  %v897 = vadd.f32 %v896, 0.00028619796
  %v898 = vmul.f32 %v895, %v897
  %v899 = vadd.f32 %v898, 0.0036580483
  %v900 = vmul.f32 %v895, %v899
  %v901 = vadd.f32 %v900, 0.05243302
  %v902 = vmul.f32 %v895, %v901
  %v903 = vadd.f32 %v902, 0.18741608
  %v904 = vmul.f32 %v895, %v903
  %v905 = vadd.f32 %v904, 1.1283791
  %v906 = vmul.f32 %v492, %v905
  %v907 = vmul.f32 %v895, 3.8918573e-05
  %v908 = vadd.f32 %v907, 0.001143296
  %v909 = vmul.f32 %v895, %v908
  %v910 = vadd.f32 %v909, 0.014752088
  %v911 = vmul.f32 %v895, %v910
  %v912 = vadd.f32 %v911, 0.112945676
  %v913 = vmul.f32 %v895, %v912
  %v914 = vadd.f32 %v913, 0.4994258
  %v915 = vmul.f32 %v895, %v914
  %v916 = vadd.f32 %v915, 1.0
  %v917 = vrcp.pop %v916
  %v918 = vmul.f32 %v916, %v917
  %v919 = vsub.f32 1.0, %v918
  %v920 = vmul.f32 %v917, %v919
  %v921 = vadd.f32 %v917, %v920
  %vm922 = vweird.f32 %v916
  %vm923 = vweird.f32 %v917
  %vm924 = vmor %vm922, %vm923
  %v925 = vsel %vm924, %v917, %v921
  %v926 = vand.u32 2147483647, %v916
  %vm927 = vcmp.eq.f32.partialorder %v926, 8.507059e+37
  %v928 = vand.u32 %v916, 2147483648
  %v929 = vor.u32 1.1754944e-38, %v928
  %v930 = vsel %vm927, %v929, %v925
  %v931 = vmul.f32 %v906, %v930
  %v932 = vmin.f32 %v931, 1.0
  %v933 = vmax.f32 %v932, -1.0
  %v934 = vmul.f32 %v493, %v493
  %v935 = vmin.f32 16.0, %v934
  %v936 = vmul.f32 %v935, 2.1237322e-06
  %v937 = vadd.f32 %v936, 0.00028619796
  %v938 = vmul.f32 %v935, %v937
  %v939 = vadd.f32 %v938, 0.0036580483
  %v940 = vmul.f32 %v935, %v939
  %v941 = vadd.f32 %v940, 0.05243302
  %v942 = vmul.f32 %v935, %v941
  %v943 = vadd.f32 %v942, 0.18741608
  %v944 = vmul.f32 %v935, %v943
  %v945 = vadd.f32 %v944, 1.1283791
  %v946 = vmul.f32 %v493, %v945
  %v947 = vmul.f32 %v935, 3.8918573e-05
  %v948 = vadd.f32 %v947, 0.001143296
  %v949 = vmul.f32 %v935, %v948
  %v950 = vadd.f32 %v949, 0.014752088
  %v951 = vmul.f32 %v935, %v950
  %v952 = vadd.f32 %v951, 0.112945676
  %v953 = vmul.f32 %v935, %v952
  %v954 = vadd.f32 %v953, 0.4994258
  %v955 = vmul.f32 %v935, %v954
  %v956 = vadd.f32 %v955, 1.0
  %v957 = vrcp.pop %v956
  %v958 = vmul.f32 %v956, %v957
  %v959 = vsub.f32 1.0, %v958
  %v960 = vmul.f32 %v957, %v959
  %v961 = vadd.f32 %v957, %v960
  %vm962 = vweird.f32 %v956
  %vm963 = vweird.f32 %v957
  %vm964 = vmor %vm962, %vm963
  %v965 = vsel %vm964, %v957, %v961
  %v966 = vand.u32 2147483647, %v956
  %vm967 = vcmp.eq.f32.partialorder %v966, 8.507059e+37
  %v968 = vand.u32 %v956, 2147483648
  %v969 = vor.u32 1.1754944e-38, %v968
  %v970 = vsel %vm967, %v969, %v965
  %v971 = vmul.f32 %v946, %v970
  %v972 = vmin.f32 %v971, 1.0
  %v973 = vmax.f32 %v972, -1.0
  %v974 = vadd.f32 %v533, 1.0
  %v975 = vadd.f32 %v573, 1.0
  %v976 = vadd.f32 %v613, 1.0
  %v977 = vadd.f32 %v653, 1.0
  %v978 = vadd.f32 %v693, 1.0
  %v979 = vadd.f32 %v733, 1.0
  %v980 = vadd.f32 %v773, 1.0
  %v981 = vadd.f32 %v813, 1.0
  %v982 = vadd.f32 %v853, 1.0
  %v983 = vadd.f32 %v893, 1.0
  %v984 = vadd.f32 %v933, 1.0
  %v985 = vadd.f32 %v973, 1.0
  %v986 = vmul.f32 %v470, %v974
  %v987 = vmul.f32 %v471, %v975
  %v988 = vmul.f32 %v472, %v976
  %v989 = vmul.f32 %v473, %v977
  %v990 = vmul.f32 %v474, %v978
  %v991 = vmul.f32 %v475, %v979
  %v992 = vmul.f32 %v476, %v980
  %v993 = vmul.f32 %v477, %v981
  %v994 = vmul.f32 %v478, %v982
  %v995 = vmul.f32 %v479, %v983
  %v996 = vmul.f32 %v480, %v984
  %v997 = vmul.f32 %v481, %v985
  %v998 = vpack.c.bf16 %v987, %v986
  %v999 = vpack.c.bf16 %v989, %v988
  %v1000 = vpack.c.bf16 %v991, %v990
  %v1001 = vpack.c.bf16 %v993, %v992
  %v1002 = vpack.c.bf16 %v995, %v994
  %v1003 = vpack.c.bf16 %v997, %v996
  %1004 = vst [vmem:[%s5] sm:$0xff] %v998
  %1005 = vst [vmem:[%s5 + $0x8] sm:$0xff] %v999
  %1006 = vst [vmem:[%s5 + $0x10] sm:$0xff] %v1000
  %1007 = vst [vmem:[%s5 + $0x18] sm:$0xff] %v1001
  %1008 = vst [vmem:[%s5 + $0x20] sm:$0xff] %v1002
  %1009 = vst [vmem:[%s5 + $0x28] sm:$0xff] %v1003
  // Predicated region
  $region22: #{vit_forward.16} parent=0 // pred_check
    _
  $region23: #{vit_forward.16} parent=0 // pred_check_branch
    %1011 = sbr.rel (0) target = $region25
  $region24: #{vit_forward.16} parent=0 // pred_region
    _
  $region25: #{vit_forward.16} parent=0 // pred_fallthru
    _
  // Predicated region
  $region26: #{vit_forward.16} parent=0 // pred_check
    _
  $region27: #{vit_forward.16} parent=0 // pred_check_branch
    %1013 = sbr.rel (0) target = $region29
  $region28: #{vit_forward.16} parent=0 // pred_region
    _
  $region29: #{vit_forward.16} parent=0 // pred_fallthru
    _

</llo_original>
